<compile_context>
chip_gen: v5e
topology: v5e:2x2
jax: 0.10.0
libtpu: 0.0.40
codegen_flags: <defaults>
</compile_context>

<pallas_src>
import functools
import math

import jax
import jax.numpy as jnp
from jax.experimental import pallas as pl
from jax.experimental.pallas import tpu as pltpu

# ----------------------------- config (small) --------------------------------
VOCAB = 101
MAX_POS = 64
HIDDEN = 32
NUM_HEADS = 4
HEAD_DIM = HIDDEN // NUM_HEADS
INTERMEDIATE = 64
NUM_LAYERS = 2
NUM_LABELS = 5
PAD_IDX = 1                      # RoBERTa padding_idx for position ids

BATCH = 2
NUM_CHUNKS = 2
CHUNK_SIZE = 8

# packed-slab geometry (sublane-aligned sections)
VOCAB_PAD = 104                               # 101 padded up to a multiple of 8
EMB_ROWS = VOCAB_PAD + MAX_POS + 8            # word | pos | type (+pad) = 176
LAYER_W_ROWS = 3 * HIDDEN + HIDDEN + INTERMEDIATE + INTERMEDIATE   # 256
VEC_ROWS = 24                                 # 19 used, padded to multiple of 8
HEAD_ROWS = 48                                # first(32) | second(5->8) | third(5->8)
THIRD_B_ROW = 2 + NUM_LAYERS * 8              # row 18 of the vector slab

_VMEM = pl.BlockSpec(memory_space=pltpu.MemorySpace.VMEM)


# --------------------------- fused forward kernel -----------------------------
def fused_forward_kernel(idpos_ref, mask_ref, emb_ref, lw_ref, vec_ref, head_ref,
                         o_ref, *, BN, S, B):
    f32 = jnp.float32
    M = BN * S
    T = (BN // B) * S
    H, I = HIDDEN, INTERMEDIATE
    NH, HD = NUM_HEADS, HEAD_DIM

    def lin(x, w, b=None):
        # PyTorch nn.Linear with W stored (out, in): contract last dims of both
        # operands -> no materialized transpose.
        y = jax.lax.dot_general(x, w, (((1,), (1,)), ((), ())),
                                preferred_element_type=f32)
        if b is not None:
            y = y + b
        return y

    def layernorm(x, g, b, eps=1e-5):
        mu = jnp.mean(x, axis=-1, keepdims=True)
        var = jnp.mean((x - mu) ** 2, axis=-1, keepdims=True)
        return (x - mu) * jax.lax.rsqrt(var + eps) * g + b

    vs = vec_ref[...]                                                  # (VEC_ROWS, 128)

    # ------------- embeddings: one-hot gathers on the MXU, in-kernel ----------
    idp = idpos_ref[...]                                               # (M, 2) int32
    ids_col = idp[:, 0:1]
    pos_col = idp[:, 1:2]
    word_oh = (jax.lax.broadcasted_iota(jnp.int32, (M, VOCAB_PAD), 1)
               == ids_col).astype(f32)                                 # (M, 104)
    pos_oh = (jax.lax.broadcasted_iota(jnp.int32, (M, MAX_POS), 1)
              == pos_col).astype(f32)                                  # (M, 64)
    word_tab = emb_ref[0:VOCAB_PAD, :]                                 # (104, H)
    pos_tab = emb_ref[VOCAB_PAD:VOCAB_PAD + MAX_POS, :]                # (64, H)
    type_vec = emb_ref[VOCAB_PAD + MAX_POS:VOCAB_PAD + MAX_POS + 1, :] # (1, H)

    x = (jax.lax.dot_general(word_oh, word_tab, (((1,), (0,)), ((), ())),
                             preferred_element_type=f32)
         + jax.lax.dot_general(pos_oh, pos_tab, (((1,), (0,)), ((), ())),
                               preferred_element_type=f32)
         + type_vec)                                                   # (M, H)
    x = layernorm(x, vs[0:1, 0:H], vs[1:2, 0:H])

    # ------- additive attention-mask bias, hoisted & head-tiled once ----------
    neg = (1.0 - mask_ref[...]) * (-1e9)                               # (BN, S)
    bias = jnp.concatenate(
        [jnp.broadcast_to(neg[:, None, :], (BN, S, S))] * NH, axis=0)  # (NH*BN, S, S)

    scale = 1.0 / math.sqrt(HD)

    def head_batch(t, off):
        # (M, 3H) projected activations -> (NH*BN, S, HD), heads-major batch.
        parts = [t[:, off + h * HD: off + (h + 1) * HD].reshape(BN, S, HD)
                 for h in range(NH)]
        return jnp.concatenate(parts, axis=0)

    # --------------------------- encoder layers -------------------------------
    for l in range(NUM_LAYERS):
        wl = lw_ref[l]                                                 # (256, H)
        base = 2 + l * 8
        qkv_w = wl[0:3 * H]                                            # (3H, H)
        o_w = wl[3 * H:4 * H]                                          # (H, H)
        fc1_w = wl[4 * H:4 * H + I]                                    # (I, H)
        fc2_wt = wl[4 * H + I:4 * H + 2 * I]                           # (I, H) == W2^T
        qkv_b = vs[base + 0:base + 1, 0:3 * H]
        o_b = vs[base + 1:base + 2, 0:H]
        ln1_g = vs[base + 2:base + 3, 0:H]
        ln1_b = vs[base + 3:base + 4, 0:H]
        fc1_b = vs[base + 4:base + 5, 0:I]
        fc2_b = vs[base + 5:base + 6, 0:H]
        ln2_g = vs[base + 6:base + 7, 0:H]
        ln2_b = vs[base + 7:base + 8, 0:H]

        # fused QKV projection, then head-batched attention (2 batched einsums)
        qkv = lin(x, qkv_w, qkv_b)                                     # (M, 3H)
        qh = head_batch(qkv, 0)
        kh = head_batch(qkv, H)
        vh = head_batch(qkv, 2 * H)

        s = jnp.einsum('bqd,bkd->bqk', qh, kh,
                       preferred_element_type=f32) * scale + bias      # (NH*BN, S, S)
        s = s - jnp.max(s, axis=-1, keepdims=True)
        p = jnp.exp(s)
        p = p / jnp.sum(p, axis=-1, keepdims=True)
        ctx = jnp.einsum('bqk,bkd->bqd', p, vh,
                         preferred_element_type=f32)                   # (NH*BN, S, HD)
        ctx = jnp.concatenate(
            [ctx[h * BN:(h + 1) * BN] for h in range(NH)], axis=-1)    # (BN, S, H)
        ctx = ctx.reshape(M, H)

        x = layernorm(x + lin(ctx, o_w, o_b), ln1_g, ln1_b)

        # TODO(synk): HF RoBERTa uses erf-based GELU; tanh approximation used here.
        ff = jax.nn.gelu(lin(x, fc1_w, fc1_b), approximate=True)       # (M, I)
        ff = jax.lax.dot_general(ff, fc2_wt, (((1,), (0,)), ((), ())),
                                 preferred_element_type=f32) + fc2_b   # (M, H)
        x = layernorm(x + ff, ln2_g, ln2_b)

    # ---------------------------- LAAT head ------------------------------------
    first_w = head_ref[0:H, :]                                         # (H, H)
    second_w = head_ref[H:H + NUM_LABELS, :]                           # (L, H)
    third_w = head_ref[40:40 + NUM_LABELS, :]                          # (L, H)
    third_b = vs[THIRD_B_ROW:THIRD_B_ROW + 1, 0:NUM_LABELS]            # (1, L)

    z = jnp.tanh(lin(x, first_w))                                      # (M, H)
    a = lin(z, second_w)                                               # (M, L)
    # transposed label attention: scores (B, L, T), softmax over the lane axis T
    aT = jnp.swapaxes(a.reshape(B, T, NUM_LABELS), 1, 2)               # (B, L, T)
    aT = aT - jnp.max(aT, axis=-1, keepdims=True)
    e = jnp.exp(aT)
    att = e / jnp.sum(e, axis=-1, keepdims=True)                       # (B, L, T)
    hid = x.reshape(B, T, H)
    wv = jnp.einsum('blt,btd->bld', att, hid,
                    preferred_element_type=f32)                        # (B, L, H)
    logits = jnp.sum(third_w[None, :, :] * wv, axis=2) + third_b       # (B, L)
    o_ref[...] = logits.astype(o_ref.dtype)


# ------------------------------ JAX glue ---------------------------------------
def roberta_laat_forward(params, input_ids, attention_mask):
    """Mirrors RobertaForMultilabelClassification.forward with model_mode='laat'."""
    B, NC, CS = input_ids.shape
    ids = input_ids.reshape(-1, CS).astype(jnp.int32)                  # (BN, S)
    mask_i = attention_mask.reshape(-1, CS).astype(jnp.int32)          # (BN, S)
    mask_f = mask_i.astype(jnp.float32)
    BN, S = ids.shape

    # RoBERTa-style position ids (create_position_ids_from_input_ids semantics).
    # TODO(synk): HF derives the padding indicator from input_ids == pad_token_id;
    #             the attention mask is used as the padding indicator here.
    pos = jnp.cumsum(mask_i, axis=1) * mask_i + PAD_IDX                # (BN, S)
    idpos = jnp.stack([ids.reshape(-1), pos.reshape(-1)], axis=1)      # (M, 2) int32

    kernel = functools.partial(fused_forward_kernel, BN=BN, S=S, B=B)
    logits = pl.pallas_call(
        kernel,
        out_shape=jax.ShapeDtypeStruct((B, NUM_LABELS), jnp.float32),
        in_specs=[_VMEM] * 6,
        out_specs=_VMEM,
    )(idpos, mask_f,
      params["emb_slab"], params["layer_w"], params["vec_slab"], params["head_w"])
    return logits                                                      # (B, NUM_LABELS)


# ---------------------------- deterministic init --------------------------------
def init_params(key):
    keys = iter(jax.random.split(key, 64))

    def dense(shape, scale=0.02):
        return jax.random.normal(next(keys), shape, jnp.float32) * scale

    # --- embedding slab: [word (0:101) | pos (104:168) | type (168)] ---
    emb = jnp.zeros((EMB_ROWS, HIDDEN), jnp.float32)
    emb = emb.at[0:VOCAB].set(dense((VOCAB, HIDDEN)))
    emb = emb.at[VOCAB_PAD:VOCAB_PAD + MAX_POS].set(dense((MAX_POS, HIDDEN)))
    emb = emb.at[VOCAB_PAD + MAX_POS].set(dense((HIDDEN,)))

    # --- per-layer weight slab: rows [qkv_w(96) | o_w(32) | fc1_w(64) | fc2_w^T(64)] ---
    layer_rows = []
    for _ in range(NUM_LAYERS):
        qkv_w = dense((3 * HIDDEN, HIDDEN))
        o_w = dense((HIDDEN, HIDDEN))
        fc1_w = dense((INTERMEDIATE, HIDDEN))
        fc2_w = dense((HIDDEN, INTERMEDIATE))
        layer_rows.append(jnp.concatenate([qkv_w, o_w, fc1_w, fc2_w.T], axis=0))
    layer_w = jnp.stack(layer_rows, axis=0)                            # (L, 256, 32)

    # --- vector slab: one lane-padded row per bias / LN vector ---
    vec = jnp.zeros((VEC_ROWS, 128), jnp.float32)
    vec = vec.at[0, 0:HIDDEN].set(jnp.ones((HIDDEN,), jnp.float32))    # emb LN gamma
    for l in range(NUM_LAYERS):
        base = 2 + l * 8
        vec = vec.at[base + 0, 0:3 * HIDDEN].set(dense((3 * HIDDEN,)))       # qkv bias
        vec = vec.at[base + 1, 0:HIDDEN].set(dense((HIDDEN,)))               # attn-out bias
        vec = vec.at[base + 2, 0:HIDDEN].set(jnp.ones((HIDDEN,), jnp.float32))   # ln1 gamma
        vec = vec.at[base + 4, 0:INTERMEDIATE].set(dense((INTERMEDIATE,)))   # fc1 bias
        vec = vec.at[base + 5, 0:HIDDEN].set(dense((HIDDEN,)))               # fc2 bias
        vec = vec.at[base + 6, 0:HIDDEN].set(jnp.ones((HIDDEN,), jnp.float32))   # ln2 gamma
    vec = vec.at[THIRD_B_ROW, 0:NUM_LABELS].set(dense((NUM_LABELS,)))  # third_linear bias

    # --- LAAT head slab: [first (0:32) | second (32:37) | third (40:45)] ---
    head = jnp.zeros((HEAD_ROWS, HIDDEN), jnp.float32)
    head = head.at[0:HIDDEN].set(dense((HIDDEN, HIDDEN)))
    head = head.at[HIDDEN:HIDDEN + NUM_LABELS].set(dense((NUM_LABELS, HIDDEN)))
    head = head.at[40:40 + NUM_LABELS].set(dense((NUM_LABELS, HIDDEN)))

    return dict(emb_slab=emb, layer_w=layer_w, vec_slab=vec, head_w=head)


# ----------------------------------- main ---------------------------------------
if __name__ == "__main__":
    key = jax.random.PRNGKey(0)
    k_param, k_ids = jax.random.split(key)

    params = init_params(k_param)

    input_ids = jax.random.randint(
        k_ids, (BATCH, NUM_CHUNKS, CHUNK_SIZE), 0, VOCAB, dtype=jnp.int32)
    attention_mask = jnp.ones((BATCH, NUM_CHUNKS, CHUNK_SIZE), jnp.int32)
    # a little padding to exercise the attention mask / position-id path
    attention_mask = attention_mask.at[0, 1, -2:].set(0)

    fwd = jax.jit(roberta_laat_forward)
    logits = fwd(params, input_ids, attention_mask)
    jax.block_until_ready(logits)

    assert logits.shape == (BATCH, NUM_LABELS), logits.shape
    assert bool(jnp.all(jnp.isfinite(logits)))
    print("KERNEL_OK")
</pallas_src>

<mosaic_0001>
module attributes {stable_mosaic.version = 11 : i64} {
  func.func @fused_forward_kernel(%arg0: memref<32x2xi32, #tpu.memory_space<vmem>>, %arg1: memref<4x8xf32, #tpu.memory_space<vmem>>, %arg2: memref<176x32xf32, #tpu.memory_space<vmem>>, %arg3: memref<2x256x32xf32, #tpu.memory_space<vmem>>, %arg4: memref<24x128xf32, #tpu.memory_space<vmem>>, %arg5: memref<48x32xf32, #tpu.memory_space<vmem>>, %arg6: memref<2x5xf32, #tpu.memory_space<vmem>>) attributes {dimension_semantics = [], scalar_prefetch = 0 : i64, scratch_operands = 0 : i64, tpu.core_type = #tpu.core_type<tc>} {
    %c0 = arith.constant 0 : index
    %c0_0 = arith.constant 0 : index
    %0 = vector.load %arg4[%c0, %c0_0] : memref<24x128xf32, #tpu.memory_space<vmem>>, vector<24x128xf32>
    %c0_1 = arith.constant 0 : index
    %c0_2 = arith.constant 0 : index
    %1 = vector.load %arg0[%c0_1, %c0_2] : memref<32x2xi32, #tpu.memory_space<vmem>>, vector<32x2xi32>
    %2 = vector.extract_strided_slice %1 {offsets = [0, 0], sizes = [32, 1], strides = [1, 1]} : vector<32x2xi32> to vector<32x1xi32>
    %3 = vector.extract_strided_slice %1 {offsets = [0, 1], sizes = [32, 1], strides = [1, 1]} : vector<32x2xi32> to vector<32x1xi32>
    %4 = tpu.iota {dimensions = array<i32: 1>} : vector<32x104xi32>
    %5 = vector.broadcast %2 : vector<32x1xi32> to vector<32x104xi32>
    %6 = arith.cmpi eq, %4, %5 : vector<32x104xi32>
    %7 = arith.extui %6 : vector<32x104xi1> to vector<32x104xi32>
    %8 = arith.sitofp %7 : vector<32x104xi32> to vector<32x104xf32>
    %9 = tpu.iota {dimensions = array<i32: 1>} : vector<32x64xi32>
    %10 = vector.broadcast %3 : vector<32x1xi32> to vector<32x64xi32>
    %11 = arith.cmpi eq, %9, %10 : vector<32x64xi32>
    %12 = arith.extui %11 : vector<32x64xi1> to vector<32x64xi32>
    %13 = arith.sitofp %12 : vector<32x64xi32> to vector<32x64xf32>
    %c0_3 = arith.constant 0 : index
    %c0_4 = arith.constant 0 : index
    %14 = vector.load %arg2[%c0_3, %c0_4] : memref<176x32xf32, #tpu.memory_space<vmem>>, vector<104x32xf32>
    %c104 = arith.constant 104 : index
    %c0_5 = arith.constant 0 : index
    %15 = vector.load %arg2[%c104, %c0_5] : memref<176x32xf32, #tpu.memory_space<vmem>>, vector<64x32xf32>
    %c168 = arith.constant 168 : index
    %c0_6 = arith.constant 0 : index
    %16 = vector.load %arg2[%c168, %c0_6] : memref<176x32xf32, #tpu.memory_space<vmem>>, vector<1x32xf32>
    %cst = arith.constant dense<0.000000e+00> : vector<32x32xf32>
    %17 = tpu.matmul %8, %14, %cst {dimension_numbers = #tpu.dot_dimension_numbers<[1], [0], [0], [1], [0, 0, 1, 1], [], []>} : vector<32x104xf32>, vector<104x32xf32>, vector<32x32xf32> -> vector<32x32xf32>
    %cst_7 = arith.constant dense<0.000000e+00> : vector<32x32xf32>
    %18 = tpu.matmul %13, %15, %cst_7 {dimension_numbers = #tpu.dot_dimension_numbers<[1], [0], [0], [1], [0, 0, 1, 1], [], []>} : vector<32x64xf32>, vector<64x32xf32>, vector<32x32xf32> -> vector<32x32xf32>
    %19 = arith.addf %17, %18 : vector<32x32xf32>
    %20 = vector.broadcast %16 : vector<1x32xf32> to vector<32x32xf32>
    %21 = arith.addf %19, %20 : vector<32x32xf32>
    %22 = vector.extract_strided_slice %0 {offsets = [0, 0], sizes = [1, 32], strides = [1, 1]} : vector<24x128xf32> to vector<1x32xf32>
    %23 = vector.extract_strided_slice %0 {offsets = [1, 0], sizes = [1, 32], strides = [1, 1]} : vector<24x128xf32> to vector<1x32xf32>
    %cst_8 = arith.constant dense<0.000000e+00> : vector<32xf32>
    %24 = vector.multi_reduction <add>, %21, %cst_8 [1] : vector<32x32xf32> to vector<32xf32>
    %25 = vector.shape_cast %24 : vector<32xf32> to vector<32x1xf32>
    %cst_9 = arith.constant 3.200000e+01 : f32
    %26 = vector.broadcast %cst_9 : f32 to vector<32x1xf32>
    %27 = arith.divf %25, %26 : vector<32x1xf32>
    %28 = vector.broadcast %27 : vector<32x1xf32> to vector<32x32xf32>
    %29 = arith.subf %21, %28 : vector<32x32xf32>
    %30 = arith.mulf %29, %29 : vector<32x32xf32>
    %cst_10 = arith.constant dense<0.000000e+00> : vector<32xf32>
    %31 = vector.multi_reduction <add>, %30, %cst_10 [1] : vector<32x32xf32> to vector<32xf32>
    %32 = vector.shape_cast %31 : vector<32xf32> to vector<32x1xf32>
    %cst_11 = arith.constant 3.200000e+01 : f32
    %33 = vector.broadcast %cst_11 : f32 to vector<32x1xf32>
    %34 = arith.divf %32, %33 : vector<32x1xf32>
    %35 = vector.broadcast %27 : vector<32x1xf32> to vector<32x32xf32>
    %36 = arith.subf %21, %35 : vector<32x32xf32>
    %cst_12 = arith.constant 9.99999974E-6 : f32
    %37 = vector.broadcast %cst_12 : f32 to vector<32x1xf32>
    %38 = arith.addf %34, %37 : vector<32x1xf32>
    %39 = math.rsqrt %38 : vector<32x1xf32>
    %40 = vector.broadcast %39 : vector<32x1xf32> to vector<32x32xf32>
    %41 = arith.mulf %36, %40 : vector<32x32xf32>
    %42 = vector.broadcast %22 : vector<1x32xf32> to vector<32x32xf32>
    %43 = arith.mulf %41, %42 : vector<32x32xf32>
    %44 = vector.broadcast %23 : vector<1x32xf32> to vector<32x32xf32>
    %45 = arith.addf %43, %44 : vector<32x32xf32>
    %c0_13 = arith.constant 0 : index
    %c0_14 = arith.constant 0 : index
    %46 = vector.load %arg1[%c0_13, %c0_14] : memref<4x8xf32, #tpu.memory_space<vmem>>, vector<4x8xf32>
    %cst_15 = arith.constant 1.000000e+00 : f32
    %47 = vector.broadcast %cst_15 : f32 to vector<4x8xf32>
    %48 = arith.subf %47, %46 : vector<4x8xf32>
    %cst_16 = arith.constant -1.000000e+09 : f32
    %49 = vector.broadcast %cst_16 : f32 to vector<4x8xf32>
    %50 = arith.mulf %48, %49 : vector<4x8xf32>
    %51 = vector.shape_cast %50 : vector<4x8xf32> to vector<4x1x8xf32>
    %52 = vector.shape_cast %51 : vector<4x1x8xf32> to vector<4x1x8xf32>
    %53 = vector.broadcast %52 : vector<4x1x8xf32> to vector<4x8x8xf32>
    %54 = tpu.concatenate %53, %53, %53, %53 in 0 : vector<4x8x8xf32>, vector<4x8x8xf32>, vector<4x8x8xf32>, vector<4x8x8xf32> -> vector<16x8x8xf32>
    %c0_17 = arith.constant 0 : index
    %c0_18 = arith.constant 0 : index
    %c0_19 = arith.constant 0 : index
    %55 = vector.load %arg3[%c0_17, %c0_18, %c0_19] : memref<2x256x32xf32, #tpu.memory_space<vmem>>, vector<1x256x32xf32>
    %56 = vector.shape_cast %55 : vector<1x256x32xf32> to vector<256x32xf32>
    %57 = vector.extract_strided_slice %56 {offsets = [0, 0], sizes = [96, 32], strides = [1, 1]} : vector<256x32xf32> to vector<96x32xf32>
    %58 = vector.extract_strided_slice %56 {offsets = [96, 0], sizes = [32, 32], strides = [1, 1]} : vector<256x32xf32> to vector<32x32xf32>
    %59 = vector.extract_strided_slice %56 {offsets = [128, 0], sizes = [64, 32], strides = [1, 1]} : vector<256x32xf32> to vector<64x32xf32>
    %60 = vector.extract_strided_slice %56 {offsets = [192, 0], sizes = [64, 32], strides = [1, 1]} : vector<256x32xf32> to vector<64x32xf32>
    %61 = vector.extract_strided_slice %0 {offsets = [2, 0], sizes = [1, 96], strides = [1, 1]} : vector<24x128xf32> to vector<1x96xf32>
    %62 = vector.extract_strided_slice %0 {offsets = [3, 0], sizes = [1, 32], strides = [1, 1]} : vector<24x128xf32> to vector<1x32xf32>
    %63 = vector.extract_strided_slice %0 {offsets = [4, 0], sizes = [1, 32], strides = [1, 1]} : vector<24x128xf32> to vector<1x32xf32>
    %64 = vector.extract_strided_slice %0 {offsets = [5, 0], sizes = [1, 32], strides = [1, 1]} : vector<24x128xf32> to vector<1x32xf32>
    %65 = vector.extract_strided_slice %0 {offsets = [6, 0], sizes = [1, 64], strides = [1, 1]} : vector<24x128xf32> to vector<1x64xf32>
    %66 = vector.extract_strided_slice %0 {offsets = [7, 0], sizes = [1, 32], strides = [1, 1]} : vector<24x128xf32> to vector<1x32xf32>
    %67 = vector.extract_strided_slice %0 {offsets = [8, 0], sizes = [1, 32], strides = [1, 1]} : vector<24x128xf32> to vector<1x32xf32>
    %68 = vector.extract_strided_slice %0 {offsets = [9, 0], sizes = [1, 32], strides = [1, 1]} : vector<24x128xf32> to vector<1x32xf32>
    %cst_20 = arith.constant dense<0.000000e+00> : vector<32x96xf32>
    %69 = tpu.matmul %45, %57, %cst_20 {dimension_numbers = #tpu.dot_dimension_numbers<[1], [1], [0], [0], [0, 0, 1, 0], [], []>} : vector<32x32xf32>, vector<96x32xf32>, vector<32x96xf32> -> vector<32x96xf32>
    %70 = vector.broadcast %61 : vector<1x96xf32> to vector<32x96xf32>
    %71 = arith.addf %69, %70 : vector<32x96xf32>
    %72 = vector.extract_strided_slice %71 {offsets = [0, 0], sizes = [32, 8], strides = [1, 1]} : vector<32x96xf32> to vector<32x8xf32>
    %73 = vector.shape_cast %72 : vector<32x8xf32> to vector<4x8x8xf32>
    %74 = vector.extract_strided_slice %71 {offsets = [0, 8], sizes = [32, 8], strides = [1, 1]} : vector<32x96xf32> to vector<32x8xf32>
    %75 = vector.shape_cast %74 : vector<32x8xf32> to vector<4x8x8xf32>
    %76 = vector.extract_strided_slice %71 {offsets = [0, 16], sizes = [32, 8], strides = [1, 1]} : vector<32x96xf32> to vector<32x8xf32>
    %77 = vector.shape_cast %76 : vector<32x8xf32> to vector<4x8x8xf32>
    %78 = vector.extract_strided_slice %71 {offsets = [0, 24], sizes = [32, 8], strides = [1, 1]} : vector<32x96xf32> to vector<32x8xf32>
    %79 = vector.shape_cast %78 : vector<32x8xf32> to vector<4x8x8xf32>
    %80 = tpu.concatenate %73, %75, %77, %79 in 0 : vector<4x8x8xf32>, vector<4x8x8xf32>, vector<4x8x8xf32>, vector<4x8x8xf32> -> vector<16x8x8xf32>
    %81 = vector.extract_strided_slice %71 {offsets = [0, 32], sizes = [32, 8], strides = [1, 1]} : vector<32x96xf32> to vector<32x8xf32>
    %82 = vector.shape_cast %81 : vector<32x8xf32> to vector<4x8x8xf32>
    %83 = vector.extract_strided_slice %71 {offsets = [0, 40], sizes = [32, 8], strides = [1, 1]} : vector<32x96xf32> to vector<32x8xf32>
    %84 = vector.shape_cast %83 : vector<32x8xf32> to vector<4x8x8xf32>
    %85 = vector.extract_strided_slice %71 {offsets = [0, 48], sizes = [32, 8], strides = [1, 1]} : vector<32x96xf32> to vector<32x8xf32>
    %86 = vector.shape_cast %85 : vector<32x8xf32> to vector<4x8x8xf32>
    %87 = vector.extract_strided_slice %71 {offsets = [0, 56], sizes = [32, 8], strides = [1, 1]} : vector<32x96xf32> to vector<32x8xf32>
    %88 = vector.shape_cast %87 : vector<32x8xf32> to vector<4x8x8xf32>
    %89 = tpu.concatenate %82, %84, %86, %88 in 0 : vector<4x8x8xf32>, vector<4x8x8xf32>, vector<4x8x8xf32>, vector<4x8x8xf32> -> vector<16x8x8xf32>
    %90 = vector.extract_strided_slice %71 {offsets = [0, 64], sizes = [32, 8], strides = [1, 1]} : vector<32x96xf32> to vector<32x8xf32>
    %91 = vector.shape_cast %90 : vector<32x8xf32> to vector<4x8x8xf32>
    %92 = vector.extract_strided_slice %71 {offsets = [0, 72], sizes = [32, 8], strides = [1, 1]} : vector<32x96xf32> to vector<32x8xf32>
    %93 = vector.shape_cast %92 : vector<32x8xf32> to vector<4x8x8xf32>
    %94 = vector.extract_strided_slice %71 {offsets = [0, 80], sizes = [32, 8], strides = [1, 1]} : vector<32x96xf32> to vector<32x8xf32>
    %95 = vector.shape_cast %94 : vector<32x8xf32> to vector<4x8x8xf32>
    %96 = vector.extract_strided_slice %71 {offsets = [0, 88], sizes = [32, 8], strides = [1, 1]} : vector<32x96xf32> to vector<32x8xf32>
    %97 = vector.shape_cast %96 : vector<32x8xf32> to vector<4x8x8xf32>
    %98 = tpu.concatenate %91, %93, %95, %97 in 0 : vector<4x8x8xf32>, vector<4x8x8xf32>, vector<4x8x8xf32>, vector<4x8x8xf32> -> vector<16x8x8xf32>
    "tpu.trace_start"() <{level = 10 : i32, message = "bqd,bkd->bqk"}> : () -> ()
    %cst_21 = arith.constant dense<0.000000e+00> : vector<16x8x8xf32>
    %99 = tpu.matmul %80, %89, %cst_21 {dimension_numbers = #tpu.dot_dimension_numbers<[2], [2], [1], [1], [0, 0, 0, 1, 1, 1], [0], [0]>} : vector<16x8x8xf32>, vector<16x8x8xf32>, vector<16x8x8xf32> -> vector<16x8x8xf32>
    "tpu.trace_stop"() : () -> ()
    %cst_22 = arith.constant 0.353553385 : f32
    %100 = vector.broadcast %cst_22 : f32 to vector<16x8x8xf32>
    %101 = arith.mulf %99, %100 : vector<16x8x8xf32>
    %102 = arith.addf %101, %54 : vector<16x8x8xf32>
    %cst_23 = arith.constant dense<0xFF800000> : vector<16x8xf32>
    %103 = vector.multi_reduction <maximumf>, %102, %cst_23 [2] : vector<16x8x8xf32> to vector<16x8xf32>
    %104 = vector.shape_cast %103 : vector<16x8xf32> to vector<16x8x1xf32>
    %105 = vector.broadcast %104 : vector<16x8x1xf32> to vector<16x8x8xf32>
    %106 = arith.subf %102, %105 : vector<16x8x8xf32>
    %107 = math.exp %106 : vector<16x8x8xf32>
    %cst_24 = arith.constant dense<0.000000e+00> : vector<16x8xf32>
    %108 = vector.multi_reduction <add>, %107, %cst_24 [2] : vector<16x8x8xf32> to vector<16x8xf32>
    %109 = vector.shape_cast %108 : vector<16x8xf32> to vector<16x8x1xf32>
    %110 = vector.broadcast %109 : vector<16x8x1xf32> to vector<16x8x8xf32>
    %111 = arith.divf %107, %110 : vector<16x8x8xf32>
    "tpu.trace_start"() <{level = 10 : i32, message = "bqk,bkd->bqd"}> : () -> ()
    %cst_25 = arith.constant dense<0.000000e+00> : vector<16x8x8xf32>
    %112 = tpu.matmul %111, %98, %cst_25 {dimension_numbers = #tpu.dot_dimension_numbers<[2], [1], [1], [2], [0, 0, 0, 1, 1, 2], [0], [0]>} : vector<16x8x8xf32>, vector<16x8x8xf32>, vector<16x8x8xf32> -> vector<16x8x8xf32>
    "tpu.trace_stop"() : () -> ()
    %113 = vector.extract_strided_slice %112 {offsets = [0, 0, 0], sizes = [4, 8, 8], strides = [1, 1, 1]} : vector<16x8x8xf32> to vector<4x8x8xf32>
    %114 = vector.extract_strided_slice %112 {offsets = [4, 0, 0], sizes = [4, 8, 8], strides = [1, 1, 1]} : vector<16x8x8xf32> to vector<4x8x8xf32>
    %115 = vector.extract_strided_slice %112 {offsets = [8, 0, 0], sizes = [4, 8, 8], strides = [1, 1, 1]} : vector<16x8x8xf32> to vector<4x8x8xf32>
    %116 = vector.extract_strided_slice %112 {offsets = [12, 0, 0], sizes = [4, 8, 8], strides = [1, 1, 1]} : vector<16x8x8xf32> to vector<4x8x8xf32>
    %117 = tpu.concatenate %113, %114, %115, %116 in 2 : vector<4x8x8xf32>, vector<4x8x8xf32>, vector<4x8x8xf32>, vector<4x8x8xf32> -> vector<4x8x32xf32>
    %118 = vector.shape_cast %117 : vector<4x8x32xf32> to vector<32x32xf32>
    %cst_26 = arith.constant dense<0.000000e+00> : vector<32x32xf32>
    %119 = tpu.matmul %118, %58, %cst_26 {dimension_numbers = #tpu.dot_dimension_numbers<[1], [1], [0], [0], [0, 0, 1, 0], [], []>} : vector<32x32xf32>, vector<32x32xf32>, vector<32x32xf32> -> vector<32x32xf32>
    %120 = vector.broadcast %62 : vector<1x32xf32> to vector<32x32xf32>
    %121 = arith.addf %119, %120 : vector<32x32xf32>
    %122 = arith.addf %45, %121 : vector<32x32xf32>
    %cst_27 = arith.constant dense<0.000000e+00> : vector<32xf32>
    %123 = vector.multi_reduction <add>, %122, %cst_27 [1] : vector<32x32xf32> to vector<32xf32>
    %124 = vector.shape_cast %123 : vector<32xf32> to vector<32x1xf32>
    %cst_28 = arith.constant 3.200000e+01 : f32
    %125 = vector.broadcast %cst_28 : f32 to vector<32x1xf32>
    %126 = arith.divf %124, %125 : vector<32x1xf32>
    %127 = vector.broadcast %126 : vector<32x1xf32> to vector<32x32xf32>
    %128 = arith.subf %122, %127 : vector<32x32xf32>
    %129 = arith.mulf %128, %128 : vector<32x32xf32>
    %cst_29 = arith.constant dense<0.000000e+00> : vector<32xf32>
    %130 = vector.multi_reduction <add>, %129, %cst_29 [1] : vector<32x32xf32> to vector<32xf32>
    %131 = vector.shape_cast %130 : vector<32xf32> to vector<32x1xf32>
    %cst_30 = arith.constant 3.200000e+01 : f32
    %132 = vector.broadcast %cst_30 : f32 to vector<32x1xf32>
    %133 = arith.divf %131, %132 : vector<32x1xf32>
    %134 = vector.broadcast %126 : vector<32x1xf32> to vector<32x32xf32>
    %135 = arith.subf %122, %134 : vector<32x32xf32>
    %cst_31 = arith.constant 9.99999974E-6 : f32
    %136 = vector.broadcast %cst_31 : f32 to vector<32x1xf32>
    %137 = arith.addf %133, %136 : vector<32x1xf32>
    %138 = math.rsqrt %137 : vector<32x1xf32>
    %139 = vector.broadcast %138 : vector<32x1xf32> to vector<32x32xf32>
    %140 = arith.mulf %135, %139 : vector<32x32xf32>
    %141 = vector.broadcast %63 : vector<1x32xf32> to vector<32x32xf32>
    %142 = arith.mulf %140, %141 : vector<32x32xf32>
    %143 = vector.broadcast %64 : vector<1x32xf32> to vector<32x32xf32>
    %144 = arith.addf %142, %143 : vector<32x32xf32>
    %cst_32 = arith.constant dense<0.000000e+00> : vector<32x64xf32>
    %145 = tpu.matmul %144, %59, %cst_32 {dimension_numbers = #tpu.dot_dimension_numbers<[1], [1], [0], [0], [0, 0, 1, 0], [], []>} : vector<32x32xf32>, vector<64x32xf32>, vector<32x64xf32> -> vector<32x64xf32>
    %146 = vector.broadcast %65 : vector<1x64xf32> to vector<32x64xf32>
    %147 = arith.addf %145, %146 : vector<32x64xf32>
    %148 = arith.mulf %147, %147 : vector<32x64xf32>
    %149 = arith.mulf %147, %148 : vector<32x64xf32>
    %cst_33 = arith.constant 4.471500e-02 : f32
    %150 = vector.broadcast %cst_33 : f32 to vector<32x64xf32>
    %151 = arith.mulf %150, %149 : vector<32x64xf32>
    %152 = arith.addf %147, %151 : vector<32x64xf32>
    %cst_34 = arith.constant 0.797884583 : f32
    %153 = vector.broadcast %cst_34 : f32 to vector<32x64xf32>
    %154 = arith.mulf %153, %152 : vector<32x64xf32>
    %155 = math.tanh %154 : vector<32x64xf32>
    %cst_35 = arith.constant 1.000000e+00 : f32
    %156 = vector.broadcast %cst_35 : f32 to vector<32x64xf32>
    %157 = arith.addf %156, %155 : vector<32x64xf32>
    %cst_36 = arith.constant 5.000000e-01 : f32
    %158 = vector.broadcast %cst_36 : f32 to vector<32x64xf32>
    %159 = arith.mulf %158, %157 : vector<32x64xf32>
    %160 = arith.mulf %147, %159 : vector<32x64xf32>
    %cst_37 = arith.constant dense<0.000000e+00> : vector<32x32xf32>
    %161 = tpu.matmul %160, %60, %cst_37 {dimension_numbers = #tpu.dot_dimension_numbers<[1], [0], [0], [1], [0, 0, 1, 1], [], []>} : vector<32x64xf32>, vector<64x32xf32>, vector<32x32xf32> -> vector<32x32xf32>
    %162 = vector.broadcast %66 : vector<1x32xf32> to vector<32x32xf32>
    %163 = arith.addf %161, %162 : vector<32x32xf32>
    %164 = arith.addf %144, %163 : vector<32x32xf32>
    %cst_38 = arith.constant dense<0.000000e+00> : vector<32xf32>
    %165 = vector.multi_reduction <add>, %164, %cst_38 [1] : vector<32x32xf32> to vector<32xf32>
    %166 = vector.shape_cast %165 : vector<32xf32> to vector<32x1xf32>
    %cst_39 = arith.constant 3.200000e+01 : f32
    %167 = vector.broadcast %cst_39 : f32 to vector<32x1xf32>
    %168 = arith.divf %166, %167 : vector<32x1xf32>
    %169 = vector.broadcast %168 : vector<32x1xf32> to vector<32x32xf32>
    %170 = arith.subf %164, %169 : vector<32x32xf32>
    %171 = arith.mulf %170, %170 : vector<32x32xf32>
    %cst_40 = arith.constant dense<0.000000e+00> : vector<32xf32>
    %172 = vector.multi_reduction <add>, %171, %cst_40 [1] : vector<32x32xf32> to vector<32xf32>
    %173 = vector.shape_cast %172 : vector<32xf32> to vector<32x1xf32>
    %cst_41 = arith.constant 3.200000e+01 : f32
    %174 = vector.broadcast %cst_41 : f32 to vector<32x1xf32>
    %175 = arith.divf %173, %174 : vector<32x1xf32>
    %176 = vector.broadcast %168 : vector<32x1xf32> to vector<32x32xf32>
    %177 = arith.subf %164, %176 : vector<32x32xf32>
    %cst_42 = arith.constant 9.99999974E-6 : f32
    %178 = vector.broadcast %cst_42 : f32 to vector<32x1xf32>
    %179 = arith.addf %175, %178 : vector<32x1xf32>
    %180 = math.rsqrt %179 : vector<32x1xf32>
    %181 = vector.broadcast %180 : vector<32x1xf32> to vector<32x32xf32>
    %182 = arith.mulf %177, %181 : vector<32x32xf32>
    %183 = vector.broadcast %67 : vector<1x32xf32> to vector<32x32xf32>
    %184 = arith.mulf %182, %183 : vector<32x32xf32>
    %185 = vector.broadcast %68 : vector<1x32xf32> to vector<32x32xf32>
    %186 = arith.addf %184, %185 : vector<32x32xf32>
    %c1 = arith.constant 1 : index
    %c0_43 = arith.constant 0 : index
    %c0_44 = arith.constant 0 : index
    %187 = vector.load %arg3[%c1, %c0_43, %c0_44] : memref<2x256x32xf32, #tpu.memory_space<vmem>>, vector<1x256x32xf32>
    %188 = vector.shape_cast %187 : vector<1x256x32xf32> to vector<256x32xf32>
    %189 = vector.extract_strided_slice %188 {offsets = [0, 0], sizes = [96, 32], strides = [1, 1]} : vector<256x32xf32> to vector<96x32xf32>
    %190 = vector.extract_strided_slice %188 {offsets = [96, 0], sizes = [32, 32], strides = [1, 1]} : vector<256x32xf32> to vector<32x32xf32>
    %191 = vector.extract_strided_slice %188 {offsets = [128, 0], sizes = [64, 32], strides = [1, 1]} : vector<256x32xf32> to vector<64x32xf32>
    %192 = vector.extract_strided_slice %188 {offsets = [192, 0], sizes = [64, 32], strides = [1, 1]} : vector<256x32xf32> to vector<64x32xf32>
    %193 = vector.extract_strided_slice %0 {offsets = [10, 0], sizes = [1, 96], strides = [1, 1]} : vector<24x128xf32> to vector<1x96xf32>
    %194 = vector.extract_strided_slice %0 {offsets = [11, 0], sizes = [1, 32], strides = [1, 1]} : vector<24x128xf32> to vector<1x32xf32>
    %195 = vector.extract_strided_slice %0 {offsets = [12, 0], sizes = [1, 32], strides = [1, 1]} : vector<24x128xf32> to vector<1x32xf32>
    %196 = vector.extract_strided_slice %0 {offsets = [13, 0], sizes = [1, 32], strides = [1, 1]} : vector<24x128xf32> to vector<1x32xf32>
    %197 = vector.extract_strided_slice %0 {offsets = [14, 0], sizes = [1, 64], strides = [1, 1]} : vector<24x128xf32> to vector<1x64xf32>
    %198 = vector.extract_strided_slice %0 {offsets = [15, 0], sizes = [1, 32], strides = [1, 1]} : vector<24x128xf32> to vector<1x32xf32>
    %199 = vector.extract_strided_slice %0 {offsets = [16, 0], sizes = [1, 32], strides = [1, 1]} : vector<24x128xf32> to vector<1x32xf32>
    %200 = vector.extract_strided_slice %0 {offsets = [17, 0], sizes = [1, 32], strides = [1, 1]} : vector<24x128xf32> to vector<1x32xf32>
    %cst_45 = arith.constant dense<0.000000e+00> : vector<32x96xf32>
    %201 = tpu.matmul %186, %189, %cst_45 {dimension_numbers = #tpu.dot_dimension_numbers<[1], [1], [0], [0], [0, 0, 1, 0], [], []>} : vector<32x32xf32>, vector<96x32xf32>, vector<32x96xf32> -> vector<32x96xf32>
    %202 = vector.broadcast %193 : vector<1x96xf32> to vector<32x96xf32>
    %203 = arith.addf %201, %202 : vector<32x96xf32>
    %204 = vector.extract_strided_slice %203 {offsets = [0, 0], sizes = [32, 8], strides = [1, 1]} : vector<32x96xf32> to vector<32x8xf32>
    %205 = vector.shape_cast %204 : vector<32x8xf32> to vector<4x8x8xf32>
    %206 = vector.extract_strided_slice %203 {offsets = [0, 8], sizes = [32, 8], strides = [1, 1]} : vector<32x96xf32> to vector<32x8xf32>
    %207 = vector.shape_cast %206 : vector<32x8xf32> to vector<4x8x8xf32>
    %208 = vector.extract_strided_slice %203 {offsets = [0, 16], sizes = [32, 8], strides = [1, 1]} : vector<32x96xf32> to vector<32x8xf32>
    %209 = vector.shape_cast %208 : vector<32x8xf32> to vector<4x8x8xf32>
    %210 = vector.extract_strided_slice %203 {offsets = [0, 24], sizes = [32, 8], strides = [1, 1]} : vector<32x96xf32> to vector<32x8xf32>
    %211 = vector.shape_cast %210 : vector<32x8xf32> to vector<4x8x8xf32>
    %212 = tpu.concatenate %205, %207, %209, %211 in 0 : vector<4x8x8xf32>, vector<4x8x8xf32>, vector<4x8x8xf32>, vector<4x8x8xf32> -> vector<16x8x8xf32>
    %213 = vector.extract_strided_slice %203 {offsets = [0, 32], sizes = [32, 8], strides = [1, 1]} : vector<32x96xf32> to vector<32x8xf32>
    %214 = vector.shape_cast %213 : vector<32x8xf32> to vector<4x8x8xf32>
    %215 = vector.extract_strided_slice %203 {offsets = [0, 40], sizes = [32, 8], strides = [1, 1]} : vector<32x96xf32> to vector<32x8xf32>
    %216 = vector.shape_cast %215 : vector<32x8xf32> to vector<4x8x8xf32>
    %217 = vector.extract_strided_slice %203 {offsets = [0, 48], sizes = [32, 8], strides = [1, 1]} : vector<32x96xf32> to vector<32x8xf32>
    %218 = vector.shape_cast %217 : vector<32x8xf32> to vector<4x8x8xf32>
    %219 = vector.extract_strided_slice %203 {offsets = [0, 56], sizes = [32, 8], strides = [1, 1]} : vector<32x96xf32> to vector<32x8xf32>
    %220 = vector.shape_cast %219 : vector<32x8xf32> to vector<4x8x8xf32>
    %221 = tpu.concatenate %214, %216, %218, %220 in 0 : vector<4x8x8xf32>, vector<4x8x8xf32>, vector<4x8x8xf32>, vector<4x8x8xf32> -> vector<16x8x8xf32>
    %222 = vector.extract_strided_slice %203 {offsets = [0, 64], sizes = [32, 8], strides = [1, 1]} : vector<32x96xf32> to vector<32x8xf32>
    %223 = vector.shape_cast %222 : vector<32x8xf32> to vector<4x8x8xf32>
    %224 = vector.extract_strided_slice %203 {offsets = [0, 72], sizes = [32, 8], strides = [1, 1]} : vector<32x96xf32> to vector<32x8xf32>
    %225 = vector.shape_cast %224 : vector<32x8xf32> to vector<4x8x8xf32>
    %226 = vector.extract_strided_slice %203 {offsets = [0, 80], sizes = [32, 8], strides = [1, 1]} : vector<32x96xf32> to vector<32x8xf32>
    %227 = vector.shape_cast %226 : vector<32x8xf32> to vector<4x8x8xf32>
    %228 = vector.extract_strided_slice %203 {offsets = [0, 88], sizes = [32, 8], strides = [1, 1]} : vector<32x96xf32> to vector<32x8xf32>
    %229 = vector.shape_cast %228 : vector<32x8xf32> to vector<4x8x8xf32>
    %230 = tpu.concatenate %223, %225, %227, %229 in 0 : vector<4x8x8xf32>, vector<4x8x8xf32>, vector<4x8x8xf32>, vector<4x8x8xf32> -> vector<16x8x8xf32>
    "tpu.trace_start"() <{level = 10 : i32, message = "bqd,bkd->bqk"}> : () -> ()
    %cst_46 = arith.constant dense<0.000000e+00> : vector<16x8x8xf32>
    %231 = tpu.matmul %212, %221, %cst_46 {dimension_numbers = #tpu.dot_dimension_numbers<[2], [2], [1], [1], [0, 0, 0, 1, 1, 1], [0], [0]>} : vector<16x8x8xf32>, vector<16x8x8xf32>, vector<16x8x8xf32> -> vector<16x8x8xf32>
    "tpu.trace_stop"() : () -> ()
    %cst_47 = arith.constant 0.353553385 : f32
    %232 = vector.broadcast %cst_47 : f32 to vector<16x8x8xf32>
    %233 = arith.mulf %231, %232 : vector<16x8x8xf32>
    %234 = arith.addf %233, %54 : vector<16x8x8xf32>
    %cst_48 = arith.constant dense<0xFF800000> : vector<16x8xf32>
    %235 = vector.multi_reduction <maximumf>, %234, %cst_48 [2] : vector<16x8x8xf32> to vector<16x8xf32>
    %236 = vector.shape_cast %235 : vector<16x8xf32> to vector<16x8x1xf32>
    %237 = vector.broadcast %236 : vector<16x8x1xf32> to vector<16x8x8xf32>
    %238 = arith.subf %234, %237 : vector<16x8x8xf32>
    %239 = math.exp %238 : vector<16x8x8xf32>
    %cst_49 = arith.constant dense<0.000000e+00> : vector<16x8xf32>
    %240 = vector.multi_reduction <add>, %239, %cst_49 [2] : vector<16x8x8xf32> to vector<16x8xf32>
    %241 = vector.shape_cast %240 : vector<16x8xf32> to vector<16x8x1xf32>
    %242 = vector.broadcast %241 : vector<16x8x1xf32> to vector<16x8x8xf32>
    %243 = arith.divf %239, %242 : vector<16x8x8xf32>
    "tpu.trace_start"() <{level = 10 : i32, message = "bqk,bkd->bqd"}> : () -> ()
    %cst_50 = arith.constant dense<0.000000e+00> : vector<16x8x8xf32>
    %244 = tpu.matmul %243, %230, %cst_50 {dimension_numbers = #tpu.dot_dimension_numbers<[2], [1], [1], [2], [0, 0, 0, 1, 1, 2], [0], [0]>} : vector<16x8x8xf32>, vector<16x8x8xf32>, vector<16x8x8xf32> -> vector<16x8x8xf32>
    "tpu.trace_stop"() : () -> ()
    %245 = vector.extract_strided_slice %244 {offsets = [0, 0, 0], sizes = [4, 8, 8], strides = [1, 1, 1]} : vector<16x8x8xf32> to vector<4x8x8xf32>
    %246 = vector.extract_strided_slice %244 {offsets = [4, 0, 0], sizes = [4, 8, 8], strides = [1, 1, 1]} : vector<16x8x8xf32> to vector<4x8x8xf32>
    %247 = vector.extract_strided_slice %244 {offsets = [8, 0, 0], sizes = [4, 8, 8], strides = [1, 1, 1]} : vector<16x8x8xf32> to vector<4x8x8xf32>
    %248 = vector.extract_strided_slice %244 {offsets = [12, 0, 0], sizes = [4, 8, 8], strides = [1, 1, 1]} : vector<16x8x8xf32> to vector<4x8x8xf32>
    %249 = tpu.concatenate %245, %246, %247, %248 in 2 : vector<4x8x8xf32>, vector<4x8x8xf32>, vector<4x8x8xf32>, vector<4x8x8xf32> -> vector<4x8x32xf32>
    %250 = vector.shape_cast %249 : vector<4x8x32xf32> to vector<32x32xf32>
    %cst_51 = arith.constant dense<0.000000e+00> : vector<32x32xf32>
    %251 = tpu.matmul %250, %190, %cst_51 {dimension_numbers = #tpu.dot_dimension_numbers<[1], [1], [0], [0], [0, 0, 1, 0], [], []>} : vector<32x32xf32>, vector<32x32xf32>, vector<32x32xf32> -> vector<32x32xf32>
    %252 = vector.broadcast %194 : vector<1x32xf32> to vector<32x32xf32>
    %253 = arith.addf %251, %252 : vector<32x32xf32>
    %254 = arith.addf %186, %253 : vector<32x32xf32>
    %cst_52 = arith.constant dense<0.000000e+00> : vector<32xf32>
    %255 = vector.multi_reduction <add>, %254, %cst_52 [1] : vector<32x32xf32> to vector<32xf32>
    %256 = vector.shape_cast %255 : vector<32xf32> to vector<32x1xf32>
    %cst_53 = arith.constant 3.200000e+01 : f32
    %257 = vector.broadcast %cst_53 : f32 to vector<32x1xf32>
    %258 = arith.divf %256, %257 : vector<32x1xf32>
    %259 = vector.broadcast %258 : vector<32x1xf32> to vector<32x32xf32>
    %260 = arith.subf %254, %259 : vector<32x32xf32>
    %261 = arith.mulf %260, %260 : vector<32x32xf32>
    %cst_54 = arith.constant dense<0.000000e+00> : vector<32xf32>
    %262 = vector.multi_reduction <add>, %261, %cst_54 [1] : vector<32x32xf32> to vector<32xf32>
    %263 = vector.shape_cast %262 : vector<32xf32> to vector<32x1xf32>
    %cst_55 = arith.constant 3.200000e+01 : f32
    %264 = vector.broadcast %cst_55 : f32 to vector<32x1xf32>
    %265 = arith.divf %263, %264 : vector<32x1xf32>
    %266 = vector.broadcast %258 : vector<32x1xf32> to vector<32x32xf32>
    %267 = arith.subf %254, %266 : vector<32x32xf32>
    %cst_56 = arith.constant 9.99999974E-6 : f32
    %268 = vector.broadcast %cst_56 : f32 to vector<32x1xf32>
    %269 = arith.addf %265, %268 : vector<32x1xf32>
    %270 = math.rsqrt %269 : vector<32x1xf32>
    %271 = vector.broadcast %270 : vector<32x1xf32> to vector<32x32xf32>
    %272 = arith.mulf %267, %271 : vector<32x32xf32>
    %273 = vector.broadcast %195 : vector<1x32xf32> to vector<32x32xf32>
    %274 = arith.mulf %272, %273 : vector<32x32xf32>
    %275 = vector.broadcast %196 : vector<1x32xf32> to vector<32x32xf32>
    %276 = arith.addf %274, %275 : vector<32x32xf32>
    %cst_57 = arith.constant dense<0.000000e+00> : vector<32x64xf32>
    %277 = tpu.matmul %276, %191, %cst_57 {dimension_numbers = #tpu.dot_dimension_numbers<[1], [1], [0], [0], [0, 0, 1, 0], [], []>} : vector<32x32xf32>, vector<64x32xf32>, vector<32x64xf32> -> vector<32x64xf32>
    %278 = vector.broadcast %197 : vector<1x64xf32> to vector<32x64xf32>
    %279 = arith.addf %277, %278 : vector<32x64xf32>
    %280 = arith.mulf %279, %279 : vector<32x64xf32>
    %281 = arith.mulf %279, %280 : vector<32x64xf32>
    %cst_58 = arith.constant 4.471500e-02 : f32
    %282 = vector.broadcast %cst_58 : f32 to vector<32x64xf32>
    %283 = arith.mulf %282, %281 : vector<32x64xf32>
    %284 = arith.addf %279, %283 : vector<32x64xf32>
    %cst_59 = arith.constant 0.797884583 : f32
    %285 = vector.broadcast %cst_59 : f32 to vector<32x64xf32>
    %286 = arith.mulf %285, %284 : vector<32x64xf32>
    %287 = math.tanh %286 : vector<32x64xf32>
    %cst_60 = arith.constant 1.000000e+00 : f32
    %288 = vector.broadcast %cst_60 : f32 to vector<32x64xf32>
    %289 = arith.addf %288, %287 : vector<32x64xf32>
    %cst_61 = arith.constant 5.000000e-01 : f32
    %290 = vector.broadcast %cst_61 : f32 to vector<32x64xf32>
    %291 = arith.mulf %290, %289 : vector<32x64xf32>
    %292 = arith.mulf %279, %291 : vector<32x64xf32>
    %cst_62 = arith.constant dense<0.000000e+00> : vector<32x32xf32>
    %293 = tpu.matmul %292, %192, %cst_62 {dimension_numbers = #tpu.dot_dimension_numbers<[1], [0], [0], [1], [0, 0, 1, 1], [], []>} : vector<32x64xf32>, vector<64x32xf32>, vector<32x32xf32> -> vector<32x32xf32>
    %294 = vector.broadcast %198 : vector<1x32xf32> to vector<32x32xf32>
    %295 = arith.addf %293, %294 : vector<32x32xf32>
    %296 = arith.addf %276, %295 : vector<32x32xf32>
    %cst_63 = arith.constant dense<0.000000e+00> : vector<32xf32>
    %297 = vector.multi_reduction <add>, %296, %cst_63 [1] : vector<32x32xf32> to vector<32xf32>
    %298 = vector.shape_cast %297 : vector<32xf32> to vector<32x1xf32>
    %cst_64 = arith.constant 3.200000e+01 : f32
    %299 = vector.broadcast %cst_64 : f32 to vector<32x1xf32>
    %300 = arith.divf %298, %299 : vector<32x1xf32>
    %301 = vector.broadcast %300 : vector<32x1xf32> to vector<32x32xf32>
    %302 = arith.subf %296, %301 : vector<32x32xf32>
    %303 = arith.mulf %302, %302 : vector<32x32xf32>
    %cst_65 = arith.constant dense<0.000000e+00> : vector<32xf32>
    %304 = vector.multi_reduction <add>, %303, %cst_65 [1] : vector<32x32xf32> to vector<32xf32>
    %305 = vector.shape_cast %304 : vector<32xf32> to vector<32x1xf32>
    %cst_66 = arith.constant 3.200000e+01 : f32
    %306 = vector.broadcast %cst_66 : f32 to vector<32x1xf32>
    %307 = arith.divf %305, %306 : vector<32x1xf32>
    %308 = vector.broadcast %300 : vector<32x1xf32> to vector<32x32xf32>
    %309 = arith.subf %296, %308 : vector<32x32xf32>
    %cst_67 = arith.constant 9.99999974E-6 : f32
    %310 = vector.broadcast %cst_67 : f32 to vector<32x1xf32>
    %311 = arith.addf %307, %310 : vector<32x1xf32>
    %312 = math.rsqrt %311 : vector<32x1xf32>
    %313 = vector.broadcast %312 : vector<32x1xf32> to vector<32x32xf32>
    %314 = arith.mulf %309, %313 : vector<32x32xf32>
    %315 = vector.broadcast %199 : vector<1x32xf32> to vector<32x32xf32>
    %316 = arith.mulf %314, %315 : vector<32x32xf32>
    %317 = vector.broadcast %200 : vector<1x32xf32> to vector<32x32xf32>
    %318 = arith.addf %316, %317 : vector<32x32xf32>
    %c0_68 = arith.constant 0 : index
    %c0_69 = arith.constant 0 : index
    %319 = vector.load %arg5[%c0_68, %c0_69] : memref<48x32xf32, #tpu.memory_space<vmem>>, vector<32x32xf32>
    %c32 = arith.constant 32 : index
    %c0_70 = arith.constant 0 : index
    %320 = vector.load %arg5[%c32, %c0_70] : memref<48x32xf32, #tpu.memory_space<vmem>>, vector<5x32xf32>
    %c40 = arith.constant 40 : index
    %c0_71 = arith.constant 0 : index
    %321 = vector.load %arg5[%c40, %c0_71] : memref<48x32xf32, #tpu.memory_space<vmem>>, vector<5x32xf32>
    %322 = vector.extract_strided_slice %0 {offsets = [18, 0], sizes = [1, 5], strides = [1, 1]} : vector<24x128xf32> to vector<1x5xf32>
    %cst_72 = arith.constant dense<0.000000e+00> : vector<32x32xf32>
    %323 = tpu.matmul %318, %319, %cst_72 {dimension_numbers = #tpu.dot_dimension_numbers<[1], [1], [0], [0], [0, 0, 1, 0], [], []>} : vector<32x32xf32>, vector<32x32xf32>, vector<32x32xf32> -> vector<32x32xf32>
    %324 = math.tanh %323 : vector<32x32xf32>
    %cst_73 = arith.constant dense<0.000000e+00> : vector<32x5xf32>
    %325 = tpu.matmul %324, %320, %cst_73 {dimension_numbers = #tpu.dot_dimension_numbers<[1], [1], [0], [0], [0, 0, 1, 0], [], []>} : vector<32x32xf32>, vector<5x32xf32>, vector<32x5xf32> -> vector<32x5xf32>
    %326 = vector.shape_cast %325 : vector<32x5xf32> to vector<2x16x5xf32>
    %327 = tpu.transpose %326, [0, 2, 1] : vector<2x16x5xf32> -> vector<2x5x16xf32>
    %cst_74 = arith.constant dense<0xFF800000> : vector<2x5xf32>
    %328 = vector.multi_reduction <maximumf>, %327, %cst_74 [2] : vector<2x5x16xf32> to vector<2x5xf32>
    %329 = vector.shape_cast %328 : vector<2x5xf32> to vector<2x5x1xf32>
    %330 = vector.broadcast %329 : vector<2x5x1xf32> to vector<2x5x16xf32>
    %331 = arith.subf %327, %330 : vector<2x5x16xf32>
    %332 = math.exp %331 : vector<2x5x16xf32>
    %cst_75 = arith.constant dense<0.000000e+00> : vector<2x5xf32>
    %333 = vector.multi_reduction <add>, %332, %cst_75 [2] : vector<2x5x16xf32> to vector<2x5xf32>
    %334 = vector.shape_cast %333 : vector<2x5xf32> to vector<2x5x1xf32>
    %335 = vector.broadcast %334 : vector<2x5x1xf32> to vector<2x5x16xf32>
    %336 = arith.divf %332, %335 : vector<2x5x16xf32>
    %337 = vector.shape_cast %318 : vector<32x32xf32> to vector<2x16x32xf32>
    "tpu.trace_start"() <{level = 10 : i32, message = "blt,btd->bld"}> : () -> ()
    %cst_76 = arith.constant dense<0.000000e+00> : vector<2x5x32xf32>
    %338 = tpu.matmul %336, %337, %cst_76 {dimension_numbers = #tpu.dot_dimension_numbers<[2], [1], [1], [2], [0, 0, 0, 1, 1, 2], [0], [0]>} : vector<2x5x16xf32>, vector<2x16x32xf32>, vector<2x5x32xf32> -> vector<2x5x32xf32>
    "tpu.trace_stop"() : () -> ()
    %339 = vector.shape_cast %321 : vector<5x32xf32> to vector<1x5x32xf32>
    %340 = vector.broadcast %339 : vector<1x5x32xf32> to vector<2x5x32xf32>
    %341 = arith.mulf %340, %338 : vector<2x5x32xf32>
    %cst_77 = arith.constant dense<0.000000e+00> : vector<2x5xf32>
    %342 = vector.multi_reduction <add>, %341, %cst_77 [2] : vector<2x5x32xf32> to vector<2x5xf32>
    %343 = vector.broadcast %322 : vector<1x5xf32> to vector<2x5xf32>
    %344 = arith.addf %342, %343 : vector<2x5xf32>
    %c0_78 = arith.constant 0 : index
    %c0_79 = arith.constant 0 : index
    %345 = vector.load %arg6[%c0_78, %c0_79] : memref<2x5xf32, #tpu.memory_space<vmem>>, vector<2x5xf32>
    tpu.vector_store %arg6[%c0_78, %c0_79], %344 {strides = array<i32>} : memref<2x5xf32, #tpu.memory_space<vmem>>, vector<2x5xf32>,
    return
  }
}

</mosaic_0001>

<llo_original>
// kernel: roberta_laat_forward.1
$region0: #{roberta_laat_forward.1}
  #allocation0 [shape = 'u32[]', space=smem, size = 0x4, offset = 0x4, fixed_abs, tag = 'smem constant byte address 0x4 - core index']
  #allocation1 [shape = 'u32[72,128]{1,0:T(1,128)}', space=vmem, size = 0x9000, scoped, tag = 'internal scratch']
  %s0 = inlined_call_operand.vmem [shape: s32[32,2], index: 0, kind: input, shape index: {}]
  %s1 = inlined_call_operand.vmem [shape: f32[4,8], index: 1, kind: input, shape index: {}]
  %s2 = inlined_call_operand.vmem [shape: f32[176,32], index: 2, kind: input, shape index: {}]
  %s3 = inlined_call_operand.vmem [shape: f32[2,256,32], index: 3, kind: input, shape index: {}]
  %s4 = inlined_call_operand.vmem [shape: f32[24,128], index: 4, kind: input, shape index: {}]
  %s5 = inlined_call_operand.vmem [shape: f32[48,32], index: 5, kind: input, shape index: {}]
  %s6 = inlined_call_operand.hbm [shape: f32[2,5], index: 6, kind: output, shape index: {}]
  %s7 = sld [smem:[#allocation0]]
  $region34: #{roberta_laat_forward.1} parent=0
    _
  %s9 = ssub.s32 1, %s7
  %s10 = scalar_select 0, %s9, %s7
  $region1: #{roberta_laat_forward.1} parent=0
    #allocation2 [shape = 'u8[1024]{0}', space=vmem, size = 0x400, scoped, tag = 'output window, operand 0, single buffered']
    #allocation3 [shape = 's32[1]{0}', space=sflag, size = 0x4, scoped, tag = 'scoped memory for roberta_laat_forward.1']
    %11 = vsyncpa [#allocation3], 0
    // Predicated region
    $region2: #{roberta_laat_forward.1} parent=1 // pred_check
      _
    $region3: #{roberta_laat_forward.1} parent=1 // pred_check_branch
      %13 = sbr.rel (0) target = $region5
    $region4: #{roberta_laat_forward.1} parent=1 // pred_region
      _
    $region5: #{roberta_laat_forward.1} parent=1 // pred_fallthru
      _
    // Predicated region
    $region6: #{roberta_laat_forward.1} parent=1 // pred_check
      _
    $region7: #{roberta_laat_forward.1} parent=1 // pred_check_branch
      %15 = sbr.rel (0) target = $region9
    $region8: #{roberta_laat_forward.1} parent=1 // pred_region
      _
    $region9: #{roberta_laat_forward.1} parent=1 // pred_fallthru
      _
    // Predicated region
    $region10: #{roberta_laat_forward.1} parent=1 // pred_check
      _
    $region11: #{roberta_laat_forward.1} parent=1 // pred_check_branch
      %17 = sbr.rel (0) target = $region13
    $region12: #{roberta_laat_forward.1} parent=1 // pred_region
      _
    $region13: #{roberta_laat_forward.1} parent=1 // pred_fallthru
      _
    // Predicated region
    $region14: #{roberta_laat_forward.1} parent=1 // pred_check
      _
    $region15: #{roberta_laat_forward.1} parent=1 // pred_check_branch
      %19 = sbr.rel (0) target = $region17
    $region16: #{roberta_laat_forward.1} parent=1 // pred_region
      _
    $region17: #{roberta_laat_forward.1} parent=1 // pred_fallthru
      _
    // Predicated region
    $region18: #{roberta_laat_forward.1} parent=1 // pred_check
      _
    $region19: #{roberta_laat_forward.1} parent=1 // pred_check_branch
      %21 = sbr.rel (0) target = $region21
    $region20: #{roberta_laat_forward.1} parent=1 // pred_region
      _
    $region21: #{roberta_laat_forward.1} parent=1 // pred_fallthru
      _
    // Predicated region
    $region22: #{roberta_laat_forward.1} parent=1 // pred_check
      _
    $region23: #{roberta_laat_forward.1} parent=1 // pred_check_branch
      %23 = sbr.rel (0) target = $region25
    $region24: #{roberta_laat_forward.1} parent=1 // pred_region
      _
    $region25: #{roberta_laat_forward.1} parent=1 // pred_fallthru
      _
    %v24 = vld [vmem:[%s4] sm:$0xff]
    %v25 = vld [vmem:[%s4 + $0x8] sm:$0xff]
    %v26 = vld [vmem:[%s4 + $0x10] sm:$0xff]
    %v27 = vld [vmem:[%s0] sm:$0xff]
    %v28 = vld [vmem:[%s0 + $0x8] sm:$0xff]
    %v29 = vld [vmem:[%s0 + $0x10] sm:$0xff]
    %v30 = vld [vmem:[%s0 + $0x18] sm:$0xff]
    %v31 = vlaneseq
    %v32 = vand.u32 %v31, 127
    %33 = vset.pattern.permute.xlu0 0
    %34 = vperm.xlu0 %33, %v27
    %v35 = vpop.permute.xlu0 %34
    %36 = vset.pattern.permute.xlu0 0
    %37 = vperm.xlu0 %36, %v28
    %v38 = vpop.permute.xlu0 %37
    %39 = vset.pattern.permute.xlu0 0
    %40 = vperm.xlu0 %39, %v29
    %v41 = vpop.permute.xlu0 %40
    %42 = vset.pattern.permute.xlu0 0
    %43 = vperm.xlu0 %42, %v30
    %v44 = vpop.permute.xlu0 %43
    %vm45 = vcmp.eq.s32.totalorder %v32, %v35
    %vm46 = vcmp.eq.s32.totalorder %v32, %v38
    %vm47 = vcmp.eq.s32.totalorder %v32, %v41
    %vm48 = vcmp.eq.s32.totalorder %v32, %v44
    %v49 = vsel %vm45, 1, 0
    %v50 = vsel %vm46, 1, 0
    %v51 = vsel %vm47, 1, 0
    %v52 = vsel %vm48, 1, 0
    %v53 = vcvt.s32.f32 %v49
    %v54 = vcvt.s32.f32 %v50
    %v55 = vcvt.s32.f32 %v51
    %v56 = vcvt.s32.f32 %v52
    %57 = vset.pattern.permute.xlu0 1
    %58 = vperm.xlu0 %57, %v27
    %v59 = vpop.permute.xlu0 %58
    %60 = vset.pattern.permute.xlu0 1
    %61 = vperm.xlu0 %60, %v28
    %v62 = vpop.permute.xlu0 %61
    %63 = vset.pattern.permute.xlu0 1
    %64 = vperm.xlu0 %63, %v29
    %v65 = vpop.permute.xlu0 %64
    %66 = vset.pattern.permute.xlu0 1
    %67 = vperm.xlu0 %66, %v30
    %v68 = vpop.permute.xlu0 %67
    %vm69 = vcmp.eq.s32.totalorder %v32, %v59
    %vm70 = vcmp.eq.s32.totalorder %v32, %v62
    %vm71 = vcmp.eq.s32.totalorder %v32, %v65
    %vm72 = vcmp.eq.s32.totalorder %v32, %v68
    %v73 = vsel %vm69, 1, 0
    %v74 = vsel %vm70, 1, 0
    %v75 = vsel %vm71, 1, 0
    %v76 = vsel %vm72, 1, 0
    %v77 = vcvt.s32.f32 %v73
    %v78 = vcvt.s32.f32 %v74
    %v79 = vcvt.s32.f32 %v75
    %v80 = vcvt.s32.f32 %v76
    %v81 = vld [vmem:[%s2] sm:$0xff]
    %v82 = vld [vmem:[%s2 + $0x8] sm:$0xff]
    %v83 = vld [vmem:[%s2 + $0x10] sm:$0xff]
    %v84 = vld [vmem:[%s2 + $0x18] sm:$0xff]
    %v85 = vld [vmem:[%s2 + $0x20] sm:$0xff]
    %v86 = vld [vmem:[%s2 + $0x28] sm:$0xff]
    %v87 = vld [vmem:[%s2 + $0x30] sm:$0xff]
    %v88 = vld [vmem:[%s2 + $0x38] sm:$0xff]
    %v89 = vld [vmem:[%s2 + $0x40] sm:$0xff]
    %v90 = vld [vmem:[%s2 + $0x48] sm:$0xff]
    %v91 = vld [vmem:[%s2 + $0x50] sm:$0xff]
    %v92 = vld [vmem:[%s2 + $0x58] sm:$0xff]
    %v93 = vld [vmem:[%s2 + $0x60] sm:$0xff]
    %v94 = vld [vmem:[%s2 + $0x68] sm:$0xff]
    %v95 = vld [vmem:[%s2 + $0x70] sm:$0xff]
    %v96 = vld [vmem:[%s2 + $0x78] sm:$0xff]
    %v97 = vld [vmem:[%s2 + $0x80] sm:$0xff]
    %v98 = vld [vmem:[%s2 + $0x88] sm:$0xff]
    %v99 = vld [vmem:[%s2 + $0x90] sm:$0xff]
    %v100 = vld [vmem:[%s2 + $0x98] sm:$0xff]
    %v101 = vld [vmem:[%s2 + $0xa0] sm:$0xff]
    %v102 = vld [vmem:[%s2 + $0xa8] sm:$0x1]
    %vm103 = vcmask 523264
    %v105 = vsel %vm103, %v77, 0
    %v108 = vsel %vm103, %v78, 0
    %v111 = vsel %vm103, %v79, 0
    %v114 = vsel %vm103, %v80, 0
    %116 = vmatpush.msra.mxu0 0.0
    %117 = vmatpush.msra.mxu0 0.0
    %118 = vmatpush.msra.mxu0 0.0
    %119 = vmatpush.msra.mxu0 0.0
    %120 = vmatpush.msra.mxu0 0.0
    %121 = vmatpush.msra.mxu0 0.0
    %122 = vmatpush.msra.mxu0 0.0
    %123 = vmatpush.msra.mxu0 0.0
    %124 = vmatpush.msra.mxu0 %v101
    %125 = vmatpush.msra.mxu0 %v100
    %126 = vmatpush.msra.mxu0 %v99
    %127 = vmatpush.msra.mxu0 %v98
    %128 = vmatpush.msra.mxu0 %v97
    %129 = vmatpush.msra.mxu0 %v96
    %130 = vmatpush.msra.mxu0 %v95
    %131 = vmatpush.msra.mxu0 %v94
    %132 = vmatmul.f32.gmra.mxu0 %v105
    %v133 = vpop.f32.mrf.mxu0
    %v134 = vadd.f32 0.0, %v133
    %135 = vmatmul.f32.gmra.mxu0 %v108
    %v136 = vpop.f32.mrf.mxu0
    %v137 = vadd.f32 0.0, %v136
    %138 = vmatmul.f32.gmra.mxu0 %v111
    %v139 = vpop.f32.mrf.mxu0
    %v140 = vadd.f32 0.0, %v139
    %141 = vmatmul.f32.gmra.mxu0 %v114
    %v142 = vpop.f32.mrf.mxu0
    %v143 = vadd.f32 0.0, %v142
    %144 = vdwg.mxu0
    %vm145 = vcmask 850944
    %v147 = vsel %vm145, %v53, 0
    %v150 = vsel %vm145, %v54, 0
    %v153 = vsel %vm145, %v55, 0
    %v156 = vsel %vm145, %v56, 0
    %158 = vmatpush.msra.mxu0 0.0
    %159 = vmatpush.msra.mxu0 0.0
    %160 = vmatpush.msra.mxu0 0.0
    %161 = vmatpush.msra.mxu0 %v93
    %162 = vmatpush.msra.mxu0 %v92
    %163 = vmatpush.msra.mxu0 %v91
    %164 = vmatpush.msra.mxu0 %v90
    %165 = vmatpush.msra.mxu0 %v89
    %166 = vmatpush.msra.mxu0 %v88
    %167 = vmatpush.msra.mxu0 %v87
    %168 = vmatpush.msra.mxu0 %v86
    %169 = vmatpush.msra.mxu0 %v85
    %170 = vmatpush.msra.mxu0 %v84
    %171 = vmatpush.msra.mxu0 %v83
    %172 = vmatpush.msra.mxu0 %v82
    %173 = vmatpush.msra.mxu0 %v81
    %174 = vmatmul.f32.gmra.mxu0 %v147
    %v175 = vpop.f32.mrf.mxu0
    %v176 = vadd.f32 %v134, %v175
    %177 = vmatmul.f32.gmra.mxu0 %v150
    %v178 = vpop.f32.mrf.mxu0
    %v179 = vadd.f32 %v137, %v178
    %180 = vmatmul.f32.gmra.mxu0 %v153
    %v181 = vpop.f32.mrf.mxu0
    %v182 = vadd.f32 %v140, %v181
    %183 = vmatmul.f32.gmra.mxu0 %v156
    %v184 = vpop.f32.mrf.mxu0
    %v185 = vadd.f32 %v143, %v184
    %186 = vdwg.mxu0
    %v187 = vperm.slane %v102, 0
    %v188 = vadd.f32 %v176, %v187
    %v189 = vadd.f32 %v179, %v187
    %v190 = vadd.f32 %v182, %v187
    %v191 = vadd.f32 %v185, %v187
    %vm192 = vcmask 261120
    %v193 = vsel %vm192, %v188, 0.0
    %194 = vadd.xlane.f32.xlu0 %v193
    %v195 = vpop.xlane.xlu0 %194
    %v196 = vsel %vm192, %v189, 0.0
    %197 = vadd.xlane.f32.xlu0 %v196
    %v198 = vpop.xlane.xlu0 %197
    %v199 = vsel %vm192, %v190, 0.0
    %200 = vadd.xlane.f32.xlu0 %v199
    %v201 = vpop.xlane.xlu0 %200
    %v202 = vsel %vm192, %v191, 0.0
    %203 = vadd.xlane.f32.xlu0 %v202
    %v204 = vpop.xlane.xlu0 %203
    %v205 = vrcp.pop 32.0
    %v206 = vmul.f32 32.0, %v205
    %v207 = vsub.f32 1.0, %v206
    %v208 = vmul.f32 %v205, %v207
    %v209 = vadd.f32 %v205, %v208
    %vm210 = vweird.f32 %v205
    %v211 = vsel %vm210, %v205, %v209
    %v212 = vmul.f32 %v195, %v211
    %v213 = vmul.f32 %v198, %v211
    %v214 = vmul.f32 %v201, %v211
    %v215 = vmul.f32 %v204, %v211
    %v216 = vsub.f32 %v188, %v212
    %v217 = vsub.f32 %v189, %v213
    %v218 = vsub.f32 %v190, %v214
    %v219 = vsub.f32 %v191, %v215
    %v220 = vmul.f32 %v216, %v216
    %v221 = vmul.f32 %v217, %v217
    %v222 = vmul.f32 %v218, %v218
    %v223 = vmul.f32 %v219, %v219
    %v224 = vsel %vm192, %v220, 0.0
    %225 = vadd.xlane.f32.xlu0 %v224
    %v226 = vpop.xlane.xlu0 %225
    %v227 = vsel %vm192, %v221, 0.0
    %228 = vadd.xlane.f32.xlu0 %v227
    %v229 = vpop.xlane.xlu0 %228
    %v230 = vsel %vm192, %v222, 0.0
    %231 = vadd.xlane.f32.xlu0 %v230
    %v232 = vpop.xlane.xlu0 %231
    %v233 = vsel %vm192, %v223, 0.0
    %234 = vadd.xlane.f32.xlu0 %v233
    %v235 = vpop.xlane.xlu0 %234
    %v236 = vmul.f32 %v226, %v211
    %v237 = vmul.f32 %v229, %v211
    %v238 = vmul.f32 %v232, %v211
    %v239 = vmul.f32 %v235, %v211
    %v240 = vadd.f32 %v236, 1e-05
    %v241 = vadd.f32 %v237, 1e-05
    %v242 = vadd.f32 %v238, 1e-05
    %v243 = vadd.f32 %v239, 1e-05
    %v244 = vrsqrt.pop %v240
    %v245 = vmul.f32 %v244, %v240
    %v246 = vmul.f32 %v245, %v244
    %v247 = vmul.f32 0.5, %v246
    %v248 = vsub.f32 1.5, %v247
    %v249 = vmul.f32 %v244, %v248
    %vm250 = vweird.f32 %v240
    %vm251 = vweird.f32 %v244
    %vm252 = vmor %vm250, %vm251
    %v253 = vsel %vm252, %v244, %v249
    %v254 = vrsqrt.pop %v241
    %v255 = vmul.f32 %v254, %v241
    %v256 = vmul.f32 %v255, %v254
    %v257 = vmul.f32 0.5, %v256
    %v258 = vsub.f32 1.5, %v257
    %v259 = vmul.f32 %v254, %v258
    %vm260 = vweird.f32 %v241
    %vm261 = vweird.f32 %v254
    %vm262 = vmor %vm260, %vm261
    %v263 = vsel %vm262, %v254, %v259
    %v264 = vrsqrt.pop %v242
    %v265 = vmul.f32 %v264, %v242
    %v266 = vmul.f32 %v265, %v264
    %v267 = vmul.f32 0.5, %v266
    %v268 = vsub.f32 1.5, %v267
    %v269 = vmul.f32 %v264, %v268
    %vm270 = vweird.f32 %v242
    %vm271 = vweird.f32 %v264
    %vm272 = vmor %vm270, %vm271
    %v273 = vsel %vm272, %v264, %v269
    %v274 = vrsqrt.pop %v243
    %v275 = vmul.f32 %v274, %v243
    %v276 = vmul.f32 %v275, %v274
    %v277 = vmul.f32 0.5, %v276
    %v278 = vsub.f32 1.5, %v277
    %v279 = vmul.f32 %v274, %v278
    %vm280 = vweird.f32 %v243
    %vm281 = vweird.f32 %v274
    %vm282 = vmor %vm280, %vm281
    %v283 = vsel %vm282, %v274, %v279
    %v284 = vmul.f32 %v216, %v253
    %v285 = vmul.f32 %v217, %v263
    %v286 = vmul.f32 %v218, %v273
    %v287 = vmul.f32 %v219, %v283
    %v288 = vperm.slane %v24, 0
    %v289 = vmul.f32 %v284, %v288
    %v290 = vmul.f32 %v285, %v288
    %v291 = vmul.f32 %v286, %v288
    %v292 = vmul.f32 %v287, %v288
    %v293 = vperm.slane %v24, 1
    %v294 = vadd.f32 %v289, %v293
    %v295 = vadd.f32 %v290, %v293
    %v296 = vadd.f32 %v291, %v293
    %v297 = vadd.f32 %v292, %v293
    %v298 = vld [vmem:[%s1] sm:$0xf]
    %v299 = vsub.f32 1.0, %v298
    %v300 = vmul.f32 %v299, -1e+09
    %v302 = vrot.slane %v300, 1
    %v303 = vrot.slane %v300, 2
    %v304 = vrot.slane %v300, 3
    %v305 = vperm.slane %v300, 0
    %v306 = vperm.slane %v302, 0
    %v307 = vperm.slane %v303, 0
    %v308 = vperm.slane %v304, 0
    %v313 = vld [vmem:[%s3] sm:$0xff]
    %v314 = vld [vmem:[%s3 + $0x8] sm:$0xff]
    %v315 = vld [vmem:[%s3 + $0x10] sm:$0xff]
    %v316 = vld [vmem:[%s3 + $0x18] sm:$0xff]
    %v317 = vld [vmem:[%s3 + $0x20] sm:$0xff]
    %v318 = vld [vmem:[%s3 + $0x28] sm:$0xff]
    %v319 = vld [vmem:[%s3 + $0x30] sm:$0xff]
    %v320 = vld [vmem:[%s3 + $0x38] sm:$0xff]
    %v321 = vld [vmem:[%s3 + $0x40] sm:$0xff]
    %v322 = vld [vmem:[%s3 + $0x48] sm:$0xff]
    %v323 = vld [vmem:[%s3 + $0x50] sm:$0xff]
    %v324 = vld [vmem:[%s3 + $0x58] sm:$0xff]
    %v325 = vld [vmem:[%s3 + $0x60] sm:$0xff]
    %v326 = vld [vmem:[%s3 + $0x68] sm:$0xff]
    %v327 = vld [vmem:[%s3 + $0x70] sm:$0xff]
    %v328 = vld [vmem:[%s3 + $0x78] sm:$0xff]
    %v329 = vld [vmem:[%s3 + $0x80] sm:$0xff]
    %v330 = vld [vmem:[%s3 + $0x88] sm:$0xff]
    %v331 = vld [vmem:[%s3 + $0x90] sm:$0xff]
    %v332 = vld [vmem:[%s3 + $0x98] sm:$0xff]
    %v333 = vld [vmem:[%s3 + $0xa0] sm:$0xff]
    %v334 = vld [vmem:[%s3 + $0xa8] sm:$0xff]
    %v335 = vld [vmem:[%s3 + $0xb0] sm:$0xff]
    %v336 = vld [vmem:[%s3 + $0xb8] sm:$0xff]
    %v337 = vld [vmem:[%s3 + $0xc0] sm:$0xff]
    %v338 = vld [vmem:[%s3 + $0xc8] sm:$0xff]
    %v339 = vld [vmem:[%s3 + $0xd0] sm:$0xff]
    %v340 = vld [vmem:[%s3 + $0xd8] sm:$0xff]
    %v341 = vld [vmem:[%s3 + $0xe0] sm:$0xff]
    %v342 = vld [vmem:[%s3 + $0xe8] sm:$0xff]
    %v343 = vld [vmem:[%s3 + $0xf0] sm:$0xff]
    %v344 = vld [vmem:[%s3 + $0xf8] sm:$0xff]
    %v345 = vperm.slane %v24, 2
    %v347 = vsel %vm192, %v294, 0
    %v350 = vsel %vm192, %v295, 0
    %v353 = vsel %vm192, %v296, 0
    %v356 = vsel %vm192, %v297, 0
    %v359 = vsel %vm192, %v313, 0
    %v362 = vsel %vm192, %v314, 0
    %v365 = vsel %vm192, %v315, 0
    %v368 = vsel %vm192, %v316, 0
    %v371 = vsel %vm192, %v317, 0
    %v374 = vsel %vm192, %v318, 0
    %v377 = vsel %vm192, %v319, 0
    %v380 = vsel %vm192, %v320, 0
    %v383 = vsel %vm192, %v321, 0
    %v386 = vsel %vm192, %v322, 0
    %v389 = vsel %vm192, %v323, 0
    %v392 = vsel %vm192, %v324, 0
    %394 = vmatpush.xpose.msra.mxu0 0.0
    %395 = vmatpush.xpose.msra.mxu0 0.0
    %396 = vmatpush.xpose.msra.mxu0 0.0
    %397 = vmatpush.xpose.msra.mxu0 0.0
    %398 = vmatpush.xpose.msra.mxu0 %v392
    %399 = vmatpush.xpose.msra.mxu0 %v389
    %400 = vmatpush.xpose.msra.mxu0 %v386
    %401 = vmatpush.xpose.msra.mxu0 %v383
    %402 = vmatpush.xpose.msra.mxu0 %v380
    %403 = vmatpush.xpose.msra.mxu0 %v377
    %404 = vmatpush.xpose.msra.mxu0 %v374
    %405 = vmatpush.xpose.msra.mxu0 %v371
    %406 = vmatpush.xpose.msra.mxu0 %v368
    %407 = vmatpush.xpose.msra.mxu0 %v365
    %408 = vmatpush.xpose.msra.mxu0 %v362
    %409 = vmatpush.xpose.msra.mxu0 %v359
    %410 = vmatmul.f32.gmra.mxu0 %v347
    %v411 = vpop.f32.mrf.mxu0
    %v412 = vadd.f32 %v345, %v411
    %413 = vmatmul.f32.gmra.mxu0 %v350
    %v414 = vpop.f32.mrf.mxu0
    %v415 = vadd.f32 %v345, %v414
    %416 = vmatmul.f32.gmra.mxu0 %v353
    %v417 = vpop.f32.mrf.mxu0
    %v418 = vadd.f32 %v345, %v417
    %419 = vmatmul.f32.gmra.mxu0 %v356
    %v420 = vpop.f32.mrf.mxu0
    %v421 = vadd.f32 %v345, %v420
    %422 = vdwg.mxu0
    %427 = vrot.lane.b32.xlu0 %v412, 120
    %v428 = vpop.permute.xlu0 %427
    %429 = vrot.lane.b32.xlu0 %v415, 120
    %v430 = vpop.permute.xlu0 %429
    %431 = vrot.lane.b32.xlu0 %v418, 120
    %v432 = vpop.permute.xlu0 %431
    %433 = vrot.lane.b32.xlu0 %v421, 120
    %v434 = vpop.permute.xlu0 %433
    %435 = vrot.lane.b32.xlu0 %v412, 112
    %v436 = vpop.permute.xlu0 %435
    %437 = vrot.lane.b32.xlu0 %v415, 112
    %v438 = vpop.permute.xlu0 %437
    %439 = vrot.lane.b32.xlu0 %v418, 112
    %v440 = vpop.permute.xlu0 %439
    %441 = vrot.lane.b32.xlu0 %v421, 112
    %v442 = vpop.permute.xlu0 %441
    %443 = vrot.lane.b32.xlu0 %v412, 104
    %v444 = vpop.permute.xlu0 %443
    %445 = vrot.lane.b32.xlu0 %v415, 104
    %v446 = vpop.permute.xlu0 %445
    %447 = vrot.lane.b32.xlu0 %v418, 104
    %v448 = vpop.permute.xlu0 %447
    %449 = vrot.lane.b32.xlu0 %v421, 104
    %v450 = vpop.permute.xlu0 %449
    %451 = vrot.lane.b32.xlu0 %v412, 96
    %v452 = vpop.permute.xlu0 %451
    %vm453 = vcmask 64512
    %v454 = vsel %vm453, %v412, 0
    %v456 = vsel %vm453, %v452, 0
    %458 = vmatpush.xpose.msra.mxu0 0.0
    %459 = vmatpush.xpose.msra.mxu0 0.0
    %460 = vmatpush.xpose.msra.mxu0 0.0
    %461 = vmatpush.xpose.msra.mxu0 0.0
    %462 = vmatpush.xpose.msra.mxu0 0.0
    %463 = vmatpush.xpose.msra.mxu0 0.0
    %464 = vmatpush.xpose.msra.mxu0 0.0
    %465 = vmatpush.xpose.msra.mxu0 0.0
    %466 = vmatpush.xpose.msra.mxu0 0.0
    %467 = vmatpush.xpose.msra.mxu0 0.0
    %468 = vmatpush.xpose.msra.mxu0 0.0
    %469 = vmatpush.xpose.msra.mxu0 0.0
    %470 = vmatpush.xpose.msra.mxu0 0.0
    %471 = vmatpush.xpose.msra.mxu0 0.0
    %472 = vmatpush.xpose.msra.mxu0 0.0
    %473 = vmatpush.xpose.msra.mxu0 %v456
    %474 = vmatmul.f32.gmra.mxu0 %v454
    %v475 = vpop.f32.mrf.mxu0
    %v476 = vadd.f32 0.0, %v475
    %477 = vdwg.mxu0
    %478 = vrot.lane.b32.xlu0 %v415, 96
    %v479 = vpop.permute.xlu0 %478
    %v480 = vsel %vm453, %v415, 0
    %v482 = vsel %vm453, %v479, 0
    %484 = vmatpush.xpose.msra.mxu0 0.0
    %485 = vmatpush.xpose.msra.mxu0 0.0
    %486 = vmatpush.xpose.msra.mxu0 0.0
    %487 = vmatpush.xpose.msra.mxu0 0.0
    %488 = vmatpush.xpose.msra.mxu0 0.0
    %489 = vmatpush.xpose.msra.mxu0 0.0
    %490 = vmatpush.xpose.msra.mxu0 0.0
    %491 = vmatpush.xpose.msra.mxu0 0.0
    %492 = vmatpush.xpose.msra.mxu0 0.0
    %493 = vmatpush.xpose.msra.mxu0 0.0
    %494 = vmatpush.xpose.msra.mxu0 0.0
    %495 = vmatpush.xpose.msra.mxu0 0.0
    %496 = vmatpush.xpose.msra.mxu0 0.0
    %497 = vmatpush.xpose.msra.mxu0 0.0
    %498 = vmatpush.xpose.msra.mxu0 0.0
    %499 = vmatpush.xpose.msra.mxu0 %v482
    %500 = vmatmul.f32.gmra.mxu0 %v480
    %v501 = vpop.f32.mrf.mxu0
    %v502 = vadd.f32 0.0, %v501
    %503 = vdwg.mxu0
    %504 = vrot.lane.b32.xlu0 %v418, 96
    %v505 = vpop.permute.xlu0 %504
    %v506 = vsel %vm453, %v418, 0
    %v508 = vsel %vm453, %v505, 0
    %510 = vmatpush.xpose.msra.mxu0 0.0
    %511 = vmatpush.xpose.msra.mxu0 0.0
    %512 = vmatpush.xpose.msra.mxu0 0.0
    %513 = vmatpush.xpose.msra.mxu0 0.0
    %514 = vmatpush.xpose.msra.mxu0 0.0
    %515 = vmatpush.xpose.msra.mxu0 0.0
    %516 = vmatpush.xpose.msra.mxu0 0.0
    %517 = vmatpush.xpose.msra.mxu0 0.0
    %518 = vmatpush.xpose.msra.mxu0 0.0
    %519 = vmatpush.xpose.msra.mxu0 0.0
    %520 = vmatpush.xpose.msra.mxu0 0.0
    %521 = vmatpush.xpose.msra.mxu0 0.0
    %522 = vmatpush.xpose.msra.mxu0 0.0
    %523 = vmatpush.xpose.msra.mxu0 0.0
    %524 = vmatpush.xpose.msra.mxu0 0.0
    %525 = vmatpush.xpose.msra.mxu0 %v508
    %526 = vmatmul.f32.gmra.mxu0 %v506
    %v527 = vpop.f32.mrf.mxu0
    %v528 = vadd.f32 0.0, %v527
    %529 = vdwg.mxu0
    %530 = vrot.lane.b32.xlu0 %v421, 96
    %v531 = vpop.permute.xlu0 %530
    %v532 = vsel %vm453, %v421, 0
    %v534 = vsel %vm453, %v531, 0
    %536 = vmatpush.xpose.msra.mxu0 0.0
    %537 = vmatpush.xpose.msra.mxu0 0.0
    %538 = vmatpush.xpose.msra.mxu0 0.0
    %539 = vmatpush.xpose.msra.mxu0 0.0
    %540 = vmatpush.xpose.msra.mxu0 0.0
    %541 = vmatpush.xpose.msra.mxu0 0.0
    %542 = vmatpush.xpose.msra.mxu0 0.0
    %543 = vmatpush.xpose.msra.mxu0 0.0
    %544 = vmatpush.xpose.msra.mxu0 0.0
    %545 = vmatpush.xpose.msra.mxu0 0.0
    %546 = vmatpush.xpose.msra.mxu0 0.0
    %547 = vmatpush.xpose.msra.mxu0 0.0
    %548 = vmatpush.xpose.msra.mxu0 0.0
    %549 = vmatpush.xpose.msra.mxu0 0.0
    %550 = vmatpush.xpose.msra.mxu0 0.0
    %551 = vmatpush.xpose.msra.mxu0 %v534
    %552 = vmatmul.f32.gmra.mxu0 %v532
    %v553 = vpop.f32.mrf.mxu0
    %v554 = vadd.f32 0.0, %v553
    %555 = vdwg.mxu0
    %556 = vrot.lane.b32.xlu0 %v428, 96
    %v557 = vpop.permute.xlu0 %556
    %v558 = vsel %vm453, %v428, 0
    %v560 = vsel %vm453, %v557, 0
    %562 = vmatpush.xpose.msra.mxu0 0.0
    %563 = vmatpush.xpose.msra.mxu0 0.0
    %564 = vmatpush.xpose.msra.mxu0 0.0
    %565 = vmatpush.xpose.msra.mxu0 0.0
    %566 = vmatpush.xpose.msra.mxu0 0.0
    %567 = vmatpush.xpose.msra.mxu0 0.0
    %568 = vmatpush.xpose.msra.mxu0 0.0
    %569 = vmatpush.xpose.msra.mxu0 0.0
    %570 = vmatpush.xpose.msra.mxu0 0.0
    %571 = vmatpush.xpose.msra.mxu0 0.0
    %572 = vmatpush.xpose.msra.mxu0 0.0
    %573 = vmatpush.xpose.msra.mxu0 0.0
    %574 = vmatpush.xpose.msra.mxu0 0.0
    %575 = vmatpush.xpose.msra.mxu0 0.0
    %576 = vmatpush.xpose.msra.mxu0 0.0
    %577 = vmatpush.xpose.msra.mxu0 %v560
    %578 = vmatmul.f32.gmra.mxu0 %v558
    %v579 = vpop.f32.mrf.mxu0
    %v580 = vadd.f32 0.0, %v579
    %581 = vdwg.mxu0
    %582 = vrot.lane.b32.xlu0 %v430, 96
    %v583 = vpop.permute.xlu0 %582
    %v584 = vsel %vm453, %v430, 0
    %v586 = vsel %vm453, %v583, 0
    %588 = vmatpush.xpose.msra.mxu0 0.0
    %589 = vmatpush.xpose.msra.mxu0 0.0
    %590 = vmatpush.xpose.msra.mxu0 0.0
    %591 = vmatpush.xpose.msra.mxu0 0.0
    %592 = vmatpush.xpose.msra.mxu0 0.0
    %593 = vmatpush.xpose.msra.mxu0 0.0
    %594 = vmatpush.xpose.msra.mxu0 0.0
    %595 = vmatpush.xpose.msra.mxu0 0.0
    %596 = vmatpush.xpose.msra.mxu0 0.0
    %597 = vmatpush.xpose.msra.mxu0 0.0
    %598 = vmatpush.xpose.msra.mxu0 0.0
    %599 = vmatpush.xpose.msra.mxu0 0.0
    %600 = vmatpush.xpose.msra.mxu0 0.0
    %601 = vmatpush.xpose.msra.mxu0 0.0
    %602 = vmatpush.xpose.msra.mxu0 0.0
    %603 = vmatpush.xpose.msra.mxu0 %v586
    %604 = vmatmul.f32.gmra.mxu0 %v584
    %v605 = vpop.f32.mrf.mxu0
    %v606 = vadd.f32 0.0, %v605
    %607 = vdwg.mxu0
    %608 = vrot.lane.b32.xlu0 %v432, 96
    %v609 = vpop.permute.xlu0 %608
    %v610 = vsel %vm453, %v432, 0
    %v612 = vsel %vm453, %v609, 0
    %614 = vmatpush.xpose.msra.mxu0 0.0
    %615 = vmatpush.xpose.msra.mxu0 0.0
    %616 = vmatpush.xpose.msra.mxu0 0.0
    %617 = vmatpush.xpose.msra.mxu0 0.0
    %618 = vmatpush.xpose.msra.mxu0 0.0
    %619 = vmatpush.xpose.msra.mxu0 0.0
    %620 = vmatpush.xpose.msra.mxu0 0.0
    %621 = vmatpush.xpose.msra.mxu0 0.0
    %622 = vmatpush.xpose.msra.mxu0 0.0
    %623 = vmatpush.xpose.msra.mxu0 0.0
    %624 = vmatpush.xpose.msra.mxu0 0.0
    %625 = vmatpush.xpose.msra.mxu0 0.0
    %626 = vmatpush.xpose.msra.mxu0 0.0
    %627 = vmatpush.xpose.msra.mxu0 0.0
    %628 = vmatpush.xpose.msra.mxu0 0.0
    %629 = vmatpush.xpose.msra.mxu0 %v612
    %630 = vmatmul.f32.gmra.mxu0 %v610
    %v631 = vpop.f32.mrf.mxu0
    %v632 = vadd.f32 0.0, %v631
    %633 = vdwg.mxu0
    %634 = vrot.lane.b32.xlu0 %v434, 96
    %v635 = vpop.permute.xlu0 %634
    %v636 = vsel %vm453, %v434, 0
    %v638 = vsel %vm453, %v635, 0
    %640 = vmatpush.xpose.msra.mxu0 0.0
    %641 = vmatpush.xpose.msra.mxu0 0.0
    %642 = vmatpush.xpose.msra.mxu0 0.0
    %643 = vmatpush.xpose.msra.mxu0 0.0
    %644 = vmatpush.xpose.msra.mxu0 0.0
    %645 = vmatpush.xpose.msra.mxu0 0.0
    %646 = vmatpush.xpose.msra.mxu0 0.0
    %647 = vmatpush.xpose.msra.mxu0 0.0
    %648 = vmatpush.xpose.msra.mxu0 0.0
    %649 = vmatpush.xpose.msra.mxu0 0.0
    %650 = vmatpush.xpose.msra.mxu0 0.0
    %651 = vmatpush.xpose.msra.mxu0 0.0
    %652 = vmatpush.xpose.msra.mxu0 0.0
    %653 = vmatpush.xpose.msra.mxu0 0.0
    %654 = vmatpush.xpose.msra.mxu0 0.0
    %655 = vmatpush.xpose.msra.mxu0 %v638
    %656 = vmatmul.f32.gmra.mxu0 %v636
    %v657 = vpop.f32.mrf.mxu0
    %v658 = vadd.f32 0.0, %v657
    %659 = vdwg.mxu0
    %660 = vrot.lane.b32.xlu0 %v436, 96
    %v661 = vpop.permute.xlu0 %660
    %v662 = vsel %vm453, %v436, 0
    %v664 = vsel %vm453, %v661, 0
    %666 = vmatpush.xpose.msra.mxu0 0.0
    %667 = vmatpush.xpose.msra.mxu0 0.0
    %668 = vmatpush.xpose.msra.mxu0 0.0
    %669 = vmatpush.xpose.msra.mxu0 0.0
    %670 = vmatpush.xpose.msra.mxu0 0.0
    %671 = vmatpush.xpose.msra.mxu0 0.0
    %672 = vmatpush.xpose.msra.mxu0 0.0
    %673 = vmatpush.xpose.msra.mxu0 0.0
    %674 = vmatpush.xpose.msra.mxu0 0.0
    %675 = vmatpush.xpose.msra.mxu0 0.0
    %676 = vmatpush.xpose.msra.mxu0 0.0
    %677 = vmatpush.xpose.msra.mxu0 0.0
    %678 = vmatpush.xpose.msra.mxu0 0.0
    %679 = vmatpush.xpose.msra.mxu0 0.0
    %680 = vmatpush.xpose.msra.mxu0 0.0
    %681 = vmatpush.xpose.msra.mxu0 %v664
    %682 = vmatmul.f32.gmra.mxu0 %v662
    %v683 = vpop.f32.mrf.mxu0
    %v684 = vadd.f32 0.0, %v683
    %685 = vdwg.mxu0
    %686 = vrot.lane.b32.xlu0 %v438, 96
    %v687 = vpop.permute.xlu0 %686
    %v688 = vsel %vm453, %v438, 0
    %v690 = vsel %vm453, %v687, 0
    %692 = vmatpush.xpose.msra.mxu0 0.0
    %693 = vmatpush.xpose.msra.mxu0 0.0
    %694 = vmatpush.xpose.msra.mxu0 0.0
    %695 = vmatpush.xpose.msra.mxu0 0.0
    %696 = vmatpush.xpose.msra.mxu0 0.0
    %697 = vmatpush.xpose.msra.mxu0 0.0
    %698 = vmatpush.xpose.msra.mxu0 0.0
    %699 = vmatpush.xpose.msra.mxu0 0.0
    %700 = vmatpush.xpose.msra.mxu0 0.0
    %701 = vmatpush.xpose.msra.mxu0 0.0
    %702 = vmatpush.xpose.msra.mxu0 0.0
    %703 = vmatpush.xpose.msra.mxu0 0.0
    %704 = vmatpush.xpose.msra.mxu0 0.0
    %705 = vmatpush.xpose.msra.mxu0 0.0
    %706 = vmatpush.xpose.msra.mxu0 0.0
    %707 = vmatpush.xpose.msra.mxu0 %v690
    %708 = vmatmul.f32.gmra.mxu0 %v688
    %v709 = vpop.f32.mrf.mxu0
    %v710 = vadd.f32 0.0, %v709
    %711 = vdwg.mxu0
    %712 = vrot.lane.b32.xlu0 %v440, 96
    %v713 = vpop.permute.xlu0 %712
    %v714 = vsel %vm453, %v440, 0
    %v716 = vsel %vm453, %v713, 0
    %718 = vmatpush.xpose.msra.mxu0 0.0
    %719 = vmatpush.xpose.msra.mxu0 0.0
    %720 = vmatpush.xpose.msra.mxu0 0.0
    %721 = vmatpush.xpose.msra.mxu0 0.0
    %722 = vmatpush.xpose.msra.mxu0 0.0
    %723 = vmatpush.xpose.msra.mxu0 0.0
    %724 = vmatpush.xpose.msra.mxu0 0.0
    %725 = vmatpush.xpose.msra.mxu0 0.0
    %726 = vmatpush.xpose.msra.mxu0 0.0
    %727 = vmatpush.xpose.msra.mxu0 0.0
    %728 = vmatpush.xpose.msra.mxu0 0.0
    %729 = vmatpush.xpose.msra.mxu0 0.0
    %730 = vmatpush.xpose.msra.mxu0 0.0
    %731 = vmatpush.xpose.msra.mxu0 0.0
    %732 = vmatpush.xpose.msra.mxu0 0.0
    %733 = vmatpush.xpose.msra.mxu0 %v716
    %734 = vmatmul.f32.gmra.mxu0 %v714
    %v735 = vpop.f32.mrf.mxu0
    %v736 = vadd.f32 0.0, %v735
    %737 = vdwg.mxu0
    %738 = vrot.lane.b32.xlu0 %v442, 96
    %v739 = vpop.permute.xlu0 %738
    %v740 = vsel %vm453, %v442, 0
    %v742 = vsel %vm453, %v739, 0
    %744 = vmatpush.xpose.msra.mxu0 0.0
    %745 = vmatpush.xpose.msra.mxu0 0.0
    %746 = vmatpush.xpose.msra.mxu0 0.0
    %747 = vmatpush.xpose.msra.mxu0 0.0
    %748 = vmatpush.xpose.msra.mxu0 0.0
    %749 = vmatpush.xpose.msra.mxu0 0.0
    %750 = vmatpush.xpose.msra.mxu0 0.0
    %751 = vmatpush.xpose.msra.mxu0 0.0
    %752 = vmatpush.xpose.msra.mxu0 0.0
    %753 = vmatpush.xpose.msra.mxu0 0.0
    %754 = vmatpush.xpose.msra.mxu0 0.0
    %755 = vmatpush.xpose.msra.mxu0 0.0
    %756 = vmatpush.xpose.msra.mxu0 0.0
    %757 = vmatpush.xpose.msra.mxu0 0.0
    %758 = vmatpush.xpose.msra.mxu0 0.0
    %759 = vmatpush.xpose.msra.mxu0 %v742
    %760 = vmatmul.f32.gmra.mxu0 %v740
    %v761 = vpop.f32.mrf.mxu0
    %v762 = vadd.f32 0.0, %v761
    %763 = vdwg.mxu0
    %764 = vrot.lane.b32.xlu0 %v444, 96
    %v765 = vpop.permute.xlu0 %764
    %v766 = vsel %vm453, %v444, 0
    %v768 = vsel %vm453, %v765, 0
    %770 = vmatpush.xpose.msra.mxu0 0.0
    %771 = vmatpush.xpose.msra.mxu0 0.0
    %772 = vmatpush.xpose.msra.mxu0 0.0
    %773 = vmatpush.xpose.msra.mxu0 0.0
    %774 = vmatpush.xpose.msra.mxu0 0.0
    %775 = vmatpush.xpose.msra.mxu0 0.0
    %776 = vmatpush.xpose.msra.mxu0 0.0
    %777 = vmatpush.xpose.msra.mxu0 0.0
    %778 = vmatpush.xpose.msra.mxu0 0.0
    %779 = vmatpush.xpose.msra.mxu0 0.0
    %780 = vmatpush.xpose.msra.mxu0 0.0
    %781 = vmatpush.xpose.msra.mxu0 0.0
    %782 = vmatpush.xpose.msra.mxu0 0.0
    %783 = vmatpush.xpose.msra.mxu0 0.0
    %784 = vmatpush.xpose.msra.mxu0 0.0
    %785 = vmatpush.xpose.msra.mxu0 %v768
    %786 = vmatmul.f32.gmra.mxu0 %v766
    %v787 = vpop.f32.mrf.mxu0
    %v788 = vadd.f32 0.0, %v787
    %789 = vdwg.mxu0
    %790 = vrot.lane.b32.xlu0 %v446, 96
    %v791 = vpop.permute.xlu0 %790
    %v792 = vsel %vm453, %v446, 0
    %v794 = vsel %vm453, %v791, 0
    %796 = vmatpush.xpose.msra.mxu0 0.0
    %797 = vmatpush.xpose.msra.mxu0 0.0
    %798 = vmatpush.xpose.msra.mxu0 0.0
    %799 = vmatpush.xpose.msra.mxu0 0.0
    %800 = vmatpush.xpose.msra.mxu0 0.0
    %801 = vmatpush.xpose.msra.mxu0 0.0
    %802 = vmatpush.xpose.msra.mxu0 0.0
    %803 = vmatpush.xpose.msra.mxu0 0.0
    %804 = vmatpush.xpose.msra.mxu0 0.0
    %805 = vmatpush.xpose.msra.mxu0 0.0
    %806 = vmatpush.xpose.msra.mxu0 0.0
    %807 = vmatpush.xpose.msra.mxu0 0.0
    %808 = vmatpush.xpose.msra.mxu0 0.0
    %809 = vmatpush.xpose.msra.mxu0 0.0
    %810 = vmatpush.xpose.msra.mxu0 0.0
    %811 = vmatpush.xpose.msra.mxu0 %v794
    %812 = vmatmul.f32.gmra.mxu0 %v792
    %v813 = vpop.f32.mrf.mxu0
    %v814 = vadd.f32 0.0, %v813
    %815 = vdwg.mxu0
    %816 = vrot.lane.b32.xlu0 %v448, 96
    %v817 = vpop.permute.xlu0 %816
    %v818 = vsel %vm453, %v448, 0
    %v820 = vsel %vm453, %v817, 0
    %822 = vmatpush.xpose.msra.mxu0 0.0
    %823 = vmatpush.xpose.msra.mxu0 0.0
    %824 = vmatpush.xpose.msra.mxu0 0.0
    %825 = vmatpush.xpose.msra.mxu0 0.0
    %826 = vmatpush.xpose.msra.mxu0 0.0
    %827 = vmatpush.xpose.msra.mxu0 0.0
    %828 = vmatpush.xpose.msra.mxu0 0.0
    %829 = vmatpush.xpose.msra.mxu0 0.0
    %830 = vmatpush.xpose.msra.mxu0 0.0
    %831 = vmatpush.xpose.msra.mxu0 0.0
    %832 = vmatpush.xpose.msra.mxu0 0.0
    %833 = vmatpush.xpose.msra.mxu0 0.0
    %834 = vmatpush.xpose.msra.mxu0 0.0
    %835 = vmatpush.xpose.msra.mxu0 0.0
    %836 = vmatpush.xpose.msra.mxu0 0.0
    %837 = vmatpush.xpose.msra.mxu0 %v820
    %838 = vmatmul.f32.gmra.mxu0 %v818
    %v839 = vpop.f32.mrf.mxu0
    %v840 = vadd.f32 0.0, %v839
    %841 = vdwg.mxu0
    %842 = vrot.lane.b32.xlu0 %v450, 96
    %v843 = vpop.permute.xlu0 %842
    %v844 = vsel %vm453, %v450, 0
    %v846 = vsel %vm453, %v843, 0
    %848 = vmatpush.xpose.msra.mxu0 0.0
    %849 = vmatpush.xpose.msra.mxu0 0.0
    %850 = vmatpush.xpose.msra.mxu0 0.0
    %851 = vmatpush.xpose.msra.mxu0 0.0
    %852 = vmatpush.xpose.msra.mxu0 0.0
    %853 = vmatpush.xpose.msra.mxu0 0.0
    %854 = vmatpush.xpose.msra.mxu0 0.0
    %855 = vmatpush.xpose.msra.mxu0 0.0
    %856 = vmatpush.xpose.msra.mxu0 0.0
    %857 = vmatpush.xpose.msra.mxu0 0.0
    %858 = vmatpush.xpose.msra.mxu0 0.0
    %859 = vmatpush.xpose.msra.mxu0 0.0
    %860 = vmatpush.xpose.msra.mxu0 0.0
    %861 = vmatpush.xpose.msra.mxu0 0.0
    %862 = vmatpush.xpose.msra.mxu0 0.0
    %863 = vmatpush.xpose.msra.mxu0 %v846
    %864 = vmatmul.f32.gmra.mxu0 %v844
    %v865 = vpop.f32.mrf.mxu0
    %v866 = vadd.f32 0.0, %v865
    %867 = vdwg.mxu0
    %v868 = vmul.f32 %v476, 0.35355338
    %v869 = vmul.f32 %v502, 0.35355338
    %v870 = vmul.f32 %v528, 0.35355338
    %v871 = vmul.f32 %v554, 0.35355338
    %v872 = vmul.f32 %v580, 0.35355338
    %v873 = vmul.f32 %v606, 0.35355338
    %v874 = vmul.f32 %v632, 0.35355338
    %v875 = vmul.f32 %v658, 0.35355338
    %v876 = vmul.f32 %v684, 0.35355338
    %v877 = vmul.f32 %v710, 0.35355338
    %v878 = vmul.f32 %v736, 0.35355338
    %v879 = vmul.f32 %v762, 0.35355338
    %v880 = vmul.f32 %v788, 0.35355338
    %v881 = vmul.f32 %v814, 0.35355338
    %v882 = vmul.f32 %v840, 0.35355338
    %v883 = vmul.f32 %v866, 0.35355338
    %v884 = vadd.f32 %v868, %v305
    %v885 = vadd.f32 %v869, %v306
    %v886 = vadd.f32 %v870, %v307
    %v887 = vadd.f32 %v871, %v308
    %v888 = vadd.f32 %v872, %v305
    %v889 = vadd.f32 %v873, %v306
    %v890 = vadd.f32 %v874, %v307
    %v891 = vadd.f32 %v875, %v308
    %v892 = vadd.f32 %v876, %v305
    %v893 = vadd.f32 %v877, %v306
    %v894 = vadd.f32 %v878, %v307
    %v895 = vadd.f32 %v879, %v308
    %v896 = vadd.f32 %v880, %v305
    %v897 = vadd.f32 %v881, %v306
    %v898 = vadd.f32 %v882, %v307
    %v899 = vadd.f32 %v883, %v308
    %v900 = vsel %vm453, %v884, -inf
    %901 = vmax.xlane.f32.xlu0 %v900
    %v902 = vpop.xlane.xlu0 %901
    %v903 = vsel %vm453, %v885, -inf
    %904 = vmax.xlane.f32.xlu0 %v903
    %v905 = vpop.xlane.xlu0 %904
    %v906 = vsel %vm453, %v886, -inf
    %907 = vmax.xlane.f32.xlu0 %v906
    %v908 = vpop.xlane.xlu0 %907
    %v909 = vsel %vm453, %v887, -inf
    %910 = vmax.xlane.f32.xlu0 %v909
    %v911 = vpop.xlane.xlu0 %910
    %v912 = vsel %vm453, %v888, -inf
    %913 = vmax.xlane.f32.xlu0 %v912
    %v914 = vpop.xlane.xlu0 %913
    %v915 = vsel %vm453, %v889, -inf
    %916 = vmax.xlane.f32.xlu0 %v915
    %v917 = vpop.xlane.xlu0 %916
    %v918 = vsel %vm453, %v890, -inf
    %919 = vmax.xlane.f32.xlu0 %v918
    %v920 = vpop.xlane.xlu0 %919
    %v921 = vsel %vm453, %v891, -inf
    %922 = vmax.xlane.f32.xlu0 %v921
    %v923 = vpop.xlane.xlu0 %922
    %v924 = vsel %vm453, %v892, -inf
    %925 = vmax.xlane.f32.xlu0 %v924
    %v926 = vpop.xlane.xlu0 %925
    %v927 = vsel %vm453, %v893, -inf
    %928 = vmax.xlane.f32.xlu0 %v927
    %v929 = vpop.xlane.xlu0 %928
    %v930 = vsel %vm453, %v894, -inf
    %931 = vmax.xlane.f32.xlu0 %v930
    %v932 = vpop.xlane.xlu0 %931
    %v933 = vsel %vm453, %v895, -inf
    %934 = vmax.xlane.f32.xlu0 %v933
    %v935 = vpop.xlane.xlu0 %934
    %v936 = vsel %vm453, %v896, -inf
    %937 = vmax.xlane.f32.xlu0 %v936
    %v938 = vpop.xlane.xlu0 %937
    %v939 = vsel %vm453, %v897, -inf
    %940 = vmax.xlane.f32.xlu0 %v939
    %v941 = vpop.xlane.xlu0 %940
    %v942 = vsel %vm453, %v898, -inf
    %943 = vmax.xlane.f32.xlu0 %v942
    %v944 = vpop.xlane.xlu0 %943
    %v945 = vsel %vm453, %v899, -inf
    %946 = vmax.xlane.f32.xlu0 %v945
    %v947 = vpop.xlane.xlu0 %946
    %v948 = vsub.f32 %v884, %v902
    %v949 = vsub.f32 %v885, %v905
    %v950 = vsub.f32 %v886, %v908
    %v951 = vsub.f32 %v887, %v911
    %v952 = vsub.f32 %v888, %v914
    %v953 = vsub.f32 %v889, %v917
    %v954 = vsub.f32 %v890, %v920
    %v955 = vsub.f32 %v891, %v923
    %v956 = vsub.f32 %v892, %v926
    %v957 = vsub.f32 %v893, %v929
    %v958 = vsub.f32 %v894, %v932
    %v959 = vsub.f32 %v895, %v935
    %v960 = vsub.f32 %v896, %v938
    %v961 = vsub.f32 %v897, %v941
    %v962 = vsub.f32 %v898, %v944
    %v963 = vsub.f32 %v899, %v947
    %v964 = vmul.f32 %v948, 1.442695
    %v965 = vpow.pop %v964
    %v966 = vmul.f32 %v949, 1.442695
    %v967 = vpow.pop %v966
    %v968 = vmul.f32 %v950, 1.442695
    %v969 = vpow.pop %v968
    %v970 = vmul.f32 %v951, 1.442695
    %v971 = vpow.pop %v970
    %v972 = vmul.f32 %v952, 1.442695
    %v973 = vpow.pop %v972
    %v974 = vmul.f32 %v953, 1.442695
    %v975 = vpow.pop %v974
    %v976 = vmul.f32 %v954, 1.442695
    %v977 = vpow.pop %v976
    %v978 = vmul.f32 %v955, 1.442695
    %v979 = vpow.pop %v978
    %v980 = vmul.f32 %v956, 1.442695
    %v981 = vpow.pop %v980
    %v982 = vmul.f32 %v957, 1.442695
    %v983 = vpow.pop %v982
    %v984 = vmul.f32 %v958, 1.442695
    %v985 = vpow.pop %v984
    %v986 = vmul.f32 %v959, 1.442695
    %v987 = vpow.pop %v986
    %v988 = vmul.f32 %v960, 1.442695
    %v989 = vpow.pop %v988
    %v990 = vmul.f32 %v961, 1.442695
    %v991 = vpow.pop %v990
    %v992 = vmul.f32 %v962, 1.442695
    %v993 = vpow.pop %v992
    %v994 = vmul.f32 %v963, 1.442695
    %v995 = vpow.pop %v994
    %v996 = vsel %vm453, %v965, 0.0
    %997 = vadd.xlane.f32.xlu0 %v996
    %v998 = vpop.xlane.xlu0 %997
    %v999 = vsel %vm453, %v967, 0.0
    %1000 = vadd.xlane.f32.xlu0 %v999
    %v1001 = vpop.xlane.xlu0 %1000
    %v1002 = vsel %vm453, %v969, 0.0
    %1003 = vadd.xlane.f32.xlu0 %v1002
    %v1004 = vpop.xlane.xlu0 %1003
    %v1005 = vsel %vm453, %v971, 0.0
    %1006 = vadd.xlane.f32.xlu0 %v1005
    %v1007 = vpop.xlane.xlu0 %1006
    %v1008 = vsel %vm453, %v973, 0.0
    %1009 = vadd.xlane.f32.xlu0 %v1008
    %v1010 = vpop.xlane.xlu0 %1009
    %v1011 = vsel %vm453, %v975, 0.0
    %1012 = vadd.xlane.f32.xlu0 %v1011
    %v1013 = vpop.xlane.xlu0 %1012
    %v1014 = vsel %vm453, %v977, 0.0
    %1015 = vadd.xlane.f32.xlu0 %v1014
    %v1016 = vpop.xlane.xlu0 %1015
    %v1017 = vsel %vm453, %v979, 0.0
    %1018 = vadd.xlane.f32.xlu0 %v1017
    %v1019 = vpop.xlane.xlu0 %1018
    %v1020 = vsel %vm453, %v981, 0.0
    %1021 = vadd.xlane.f32.xlu0 %v1020
    %v1022 = vpop.xlane.xlu0 %1021
    %v1023 = vsel %vm453, %v983, 0.0
    %1024 = vadd.xlane.f32.xlu0 %v1023
    %v1025 = vpop.xlane.xlu0 %1024
    %v1026 = vsel %vm453, %v985, 0.0
    %1027 = vadd.xlane.f32.xlu0 %v1026
    %v1028 = vpop.xlane.xlu0 %1027
    %v1029 = vsel %vm453, %v987, 0.0
    %1030 = vadd.xlane.f32.xlu0 %v1029
    %v1031 = vpop.xlane.xlu0 %1030
    %v1032 = vsel %vm453, %v989, 0.0
    %1033 = vadd.xlane.f32.xlu0 %v1032
    %v1034 = vpop.xlane.xlu0 %1033
    %v1035 = vsel %vm453, %v991, 0.0
    %1036 = vadd.xlane.f32.xlu0 %v1035
    %v1037 = vpop.xlane.xlu0 %1036
    %v1038 = vsel %vm453, %v993, 0.0
    %1039 = vadd.xlane.f32.xlu0 %v1038
    %v1040 = vpop.xlane.xlu0 %1039
    %v1041 = vsel %vm453, %v995, 0.0
    %1042 = vadd.xlane.f32.xlu0 %v1041
    %v1043 = vpop.xlane.xlu0 %1042
    %v1044 = vrcp.pop %v998
    %v1045 = vmul.f32 %v998, %v1044
    %v1046 = vsub.f32 1.0, %v1045
    %v1047 = vmul.f32 %v1044, %v1046
    %v1048 = vadd.f32 %v1044, %v1047
    %vm1049 = vweird.f32 %v998
    %vm1050 = vweird.f32 %v1044
    %vm1051 = vmor %vm1049, %vm1050
    %v1052 = vsel %vm1051, %v1044, %v1048
    %v1053 = vand.u32 2147483647, %v998
    %vm1054 = vcmp.eq.f32.partialorder %v1053, 8.507059e+37
    %v1055 = vand.u32 %v998, 2147483648
    %v1056 = vor.u32 1.1754944e-38, %v1055
    %v1057 = vsel %vm1054, %v1056, %v1052
    %v1058 = vmul.f32 %v965, %v1057
    %v1059 = vrcp.pop %v1001
    %v1060 = vmul.f32 %v1001, %v1059
    %v1061 = vsub.f32 1.0, %v1060
    %v1062 = vmul.f32 %v1059, %v1061
    %v1063 = vadd.f32 %v1059, %v1062
    %vm1064 = vweird.f32 %v1001
    %vm1065 = vweird.f32 %v1059
    %vm1066 = vmor %vm1064, %vm1065
    %v1067 = vsel %vm1066, %v1059, %v1063
    %v1068 = vand.u32 2147483647, %v1001
    %vm1069 = vcmp.eq.f32.partialorder %v1068, 8.507059e+37
    %v1070 = vand.u32 %v1001, 2147483648
    %v1071 = vor.u32 1.1754944e-38, %v1070
    %v1072 = vsel %vm1069, %v1071, %v1067
    %v1073 = vmul.f32 %v967, %v1072
    %v1074 = vrcp.pop %v1004
    %v1075 = vmul.f32 %v1004, %v1074
    %v1076 = vsub.f32 1.0, %v1075
    %v1077 = vmul.f32 %v1074, %v1076
    %v1078 = vadd.f32 %v1074, %v1077
    %vm1079 = vweird.f32 %v1004
    %vm1080 = vweird.f32 %v1074
    %vm1081 = vmor %vm1079, %vm1080
    %v1082 = vsel %vm1081, %v1074, %v1078
    %v1083 = vand.u32 2147483647, %v1004
    %vm1084 = vcmp.eq.f32.partialorder %v1083, 8.507059e+37
    %v1085 = vand.u32 %v1004, 2147483648
    %v1086 = vor.u32 1.1754944e-38, %v1085
    %v1087 = vsel %vm1084, %v1086, %v1082
    %v1088 = vmul.f32 %v969, %v1087
    %v1089 = vrcp.pop %v1007
    %v1090 = vmul.f32 %v1007, %v1089
    %v1091 = vsub.f32 1.0, %v1090
    %v1092 = vmul.f32 %v1089, %v1091
    %v1093 = vadd.f32 %v1089, %v1092
    %vm1094 = vweird.f32 %v1007
    %vm1095 = vweird.f32 %v1089
    %vm1096 = vmor %vm1094, %vm1095
    %v1097 = vsel %vm1096, %v1089, %v1093
    %v1098 = vand.u32 2147483647, %v1007
    %vm1099 = vcmp.eq.f32.partialorder %v1098, 8.507059e+37
    %v1100 = vand.u32 %v1007, 2147483648
    %v1101 = vor.u32 1.1754944e-38, %v1100
    %v1102 = vsel %vm1099, %v1101, %v1097
    %v1103 = vmul.f32 %v971, %v1102
    %v1104 = vrcp.pop %v1010
    %v1105 = vmul.f32 %v1010, %v1104
    %v1106 = vsub.f32 1.0, %v1105
    %v1107 = vmul.f32 %v1104, %v1106
    %v1108 = vadd.f32 %v1104, %v1107
    %vm1109 = vweird.f32 %v1010
    %vm1110 = vweird.f32 %v1104
    %vm1111 = vmor %vm1109, %vm1110
    %v1112 = vsel %vm1111, %v1104, %v1108
    %v1113 = vand.u32 2147483647, %v1010
    %vm1114 = vcmp.eq.f32.partialorder %v1113, 8.507059e+37
    %v1115 = vand.u32 %v1010, 2147483648
    %v1116 = vor.u32 1.1754944e-38, %v1115
    %v1117 = vsel %vm1114, %v1116, %v1112
    %v1118 = vmul.f32 %v973, %v1117
    %v1119 = vrcp.pop %v1013
    %v1120 = vmul.f32 %v1013, %v1119
    %v1121 = vsub.f32 1.0, %v1120
    %v1122 = vmul.f32 %v1119, %v1121
    %v1123 = vadd.f32 %v1119, %v1122
    %vm1124 = vweird.f32 %v1013
    %vm1125 = vweird.f32 %v1119
    %vm1126 = vmor %vm1124, %vm1125
    %v1127 = vsel %vm1126, %v1119, %v1123
    %v1128 = vand.u32 2147483647, %v1013
    %vm1129 = vcmp.eq.f32.partialorder %v1128, 8.507059e+37
    %v1130 = vand.u32 %v1013, 2147483648
    %v1131 = vor.u32 1.1754944e-38, %v1130
    %v1132 = vsel %vm1129, %v1131, %v1127
    %v1133 = vmul.f32 %v975, %v1132
    %v1134 = vrcp.pop %v1016
    %v1135 = vmul.f32 %v1016, %v1134
    %v1136 = vsub.f32 1.0, %v1135
    %v1137 = vmul.f32 %v1134, %v1136
    %v1138 = vadd.f32 %v1134, %v1137
    %vm1139 = vweird.f32 %v1016
    %vm1140 = vweird.f32 %v1134
    %vm1141 = vmor %vm1139, %vm1140
    %v1142 = vsel %vm1141, %v1134, %v1138
    %v1143 = vand.u32 2147483647, %v1016
    %vm1144 = vcmp.eq.f32.partialorder %v1143, 8.507059e+37
    %v1145 = vand.u32 %v1016, 2147483648
    %v1146 = vor.u32 1.1754944e-38, %v1145
    %v1147 = vsel %vm1144, %v1146, %v1142
    %v1148 = vmul.f32 %v977, %v1147
    %v1149 = vrcp.pop %v1019
    %v1150 = vmul.f32 %v1019, %v1149
    %v1151 = vsub.f32 1.0, %v1150
    %v1152 = vmul.f32 %v1149, %v1151
    %v1153 = vadd.f32 %v1149, %v1152
    %vm1154 = vweird.f32 %v1019
    %vm1155 = vweird.f32 %v1149
    %vm1156 = vmor %vm1154, %vm1155
    %v1157 = vsel %vm1156, %v1149, %v1153
    %v1158 = vand.u32 2147483647, %v1019
    %vm1159 = vcmp.eq.f32.partialorder %v1158, 8.507059e+37
    %v1160 = vand.u32 %v1019, 2147483648
    %v1161 = vor.u32 1.1754944e-38, %v1160
    %v1162 = vsel %vm1159, %v1161, %v1157
    %v1163 = vmul.f32 %v979, %v1162
    %v1164 = vrcp.pop %v1022
    %v1165 = vmul.f32 %v1022, %v1164
    %v1166 = vsub.f32 1.0, %v1165
    %v1167 = vmul.f32 %v1164, %v1166
    %v1168 = vadd.f32 %v1164, %v1167
    %vm1169 = vweird.f32 %v1022
    %vm1170 = vweird.f32 %v1164
    %vm1171 = vmor %vm1169, %vm1170
    %v1172 = vsel %vm1171, %v1164, %v1168
    %v1173 = vand.u32 2147483647, %v1022
    %vm1174 = vcmp.eq.f32.partialorder %v1173, 8.507059e+37
    %v1175 = vand.u32 %v1022, 2147483648
    %v1176 = vor.u32 1.1754944e-38, %v1175
    %v1177 = vsel %vm1174, %v1176, %v1172
    %v1178 = vmul.f32 %v981, %v1177
    %v1179 = vrcp.pop %v1025
    %v1180 = vmul.f32 %v1025, %v1179
    %v1181 = vsub.f32 1.0, %v1180
    %v1182 = vmul.f32 %v1179, %v1181
    %v1183 = vadd.f32 %v1179, %v1182
    %vm1184 = vweird.f32 %v1025
    %vm1185 = vweird.f32 %v1179
    %vm1186 = vmor %vm1184, %vm1185
    %v1187 = vsel %vm1186, %v1179, %v1183
    %v1188 = vand.u32 2147483647, %v1025
    %vm1189 = vcmp.eq.f32.partialorder %v1188, 8.507059e+37
    %v1190 = vand.u32 %v1025, 2147483648
    %v1191 = vor.u32 1.1754944e-38, %v1190
    %v1192 = vsel %vm1189, %v1191, %v1187
    %v1193 = vmul.f32 %v983, %v1192
    %v1194 = vrcp.pop %v1028
    %v1195 = vmul.f32 %v1028, %v1194
    %v1196 = vsub.f32 1.0, %v1195
    %v1197 = vmul.f32 %v1194, %v1196
    %v1198 = vadd.f32 %v1194, %v1197
    %vm1199 = vweird.f32 %v1028
    %vm1200 = vweird.f32 %v1194
    %vm1201 = vmor %vm1199, %vm1200
    %v1202 = vsel %vm1201, %v1194, %v1198
    %v1203 = vand.u32 2147483647, %v1028
    %vm1204 = vcmp.eq.f32.partialorder %v1203, 8.507059e+37
    %v1205 = vand.u32 %v1028, 2147483648
    %v1206 = vor.u32 1.1754944e-38, %v1205
    %v1207 = vsel %vm1204, %v1206, %v1202
    %v1208 = vmul.f32 %v985, %v1207
    %v1209 = vrcp.pop %v1031
    %v1210 = vmul.f32 %v1031, %v1209
    %v1211 = vsub.f32 1.0, %v1210
    %v1212 = vmul.f32 %v1209, %v1211
    %v1213 = vadd.f32 %v1209, %v1212
    %vm1214 = vweird.f32 %v1031
    %vm1215 = vweird.f32 %v1209
    %vm1216 = vmor %vm1214, %vm1215
    %v1217 = vsel %vm1216, %v1209, %v1213
    %v1218 = vand.u32 2147483647, %v1031
    %vm1219 = vcmp.eq.f32.partialorder %v1218, 8.507059e+37
    %v1220 = vand.u32 %v1031, 2147483648
    %v1221 = vor.u32 1.1754944e-38, %v1220
    %v1222 = vsel %vm1219, %v1221, %v1217
    %v1223 = vmul.f32 %v987, %v1222
    %v1224 = vrcp.pop %v1034
    %v1225 = vmul.f32 %v1034, %v1224
    %v1226 = vsub.f32 1.0, %v1225
    %v1227 = vmul.f32 %v1224, %v1226
    %v1228 = vadd.f32 %v1224, %v1227
    %vm1229 = vweird.f32 %v1034
    %vm1230 = vweird.f32 %v1224
    %vm1231 = vmor %vm1229, %vm1230
    %v1232 = vsel %vm1231, %v1224, %v1228
    %v1233 = vand.u32 2147483647, %v1034
    %vm1234 = vcmp.eq.f32.partialorder %v1233, 8.507059e+37
    %v1235 = vand.u32 %v1034, 2147483648
    %v1236 = vor.u32 1.1754944e-38, %v1235
    %v1237 = vsel %vm1234, %v1236, %v1232
    %v1238 = vmul.f32 %v989, %v1237
    %v1239 = vrcp.pop %v1037
    %v1240 = vmul.f32 %v1037, %v1239
    %v1241 = vsub.f32 1.0, %v1240
    %v1242 = vmul.f32 %v1239, %v1241
    %v1243 = vadd.f32 %v1239, %v1242
    %vm1244 = vweird.f32 %v1037
    %vm1245 = vweird.f32 %v1239
    %vm1246 = vmor %vm1244, %vm1245
    %v1247 = vsel %vm1246, %v1239, %v1243
    %v1248 = vand.u32 2147483647, %v1037
    %vm1249 = vcmp.eq.f32.partialorder %v1248, 8.507059e+37
    %v1250 = vand.u32 %v1037, 2147483648
    %v1251 = vor.u32 1.1754944e-38, %v1250
    %v1252 = vsel %vm1249, %v1251, %v1247
    %v1253 = vmul.f32 %v991, %v1252
    %v1254 = vrcp.pop %v1040
    %v1255 = vmul.f32 %v1040, %v1254
    %v1256 = vsub.f32 1.0, %v1255
    %v1257 = vmul.f32 %v1254, %v1256
    %v1258 = vadd.f32 %v1254, %v1257
    %vm1259 = vweird.f32 %v1040
    %vm1260 = vweird.f32 %v1254
    %vm1261 = vmor %vm1259, %vm1260
    %v1262 = vsel %vm1261, %v1254, %v1258
    %v1263 = vand.u32 2147483647, %v1040
    %vm1264 = vcmp.eq.f32.partialorder %v1263, 8.507059e+37
    %v1265 = vand.u32 %v1040, 2147483648
    %v1266 = vor.u32 1.1754944e-38, %v1265
    %v1267 = vsel %vm1264, %v1266, %v1262
    %v1268 = vmul.f32 %v993, %v1267
    %v1269 = vrcp.pop %v1043
    %v1270 = vmul.f32 %v1043, %v1269
    %v1271 = vsub.f32 1.0, %v1270
    %v1272 = vmul.f32 %v1269, %v1271
    %v1273 = vadd.f32 %v1269, %v1272
    %vm1274 = vweird.f32 %v1043
    %vm1275 = vweird.f32 %v1269
    %vm1276 = vmor %vm1274, %vm1275
    %v1277 = vsel %vm1276, %v1269, %v1273
    %v1278 = vand.u32 2147483647, %v1043
    %vm1279 = vcmp.eq.f32.partialorder %v1278, 8.507059e+37
    %v1280 = vand.u32 %v1043, 2147483648
    %v1281 = vor.u32 1.1754944e-38, %v1280
    %v1282 = vsel %vm1279, %v1281, %v1277
    %v1283 = vmul.f32 %v995, %v1282
    %1284 = vrot.lane.b32.xlu0 %v412, 64
    %v1285 = vpop.permute.xlu0 %1284
    %v1288 = vsel %vm453, %v1058, 0
    %1290 = vmatpush.msra.mxu0 0.0
    %1291 = vmatpush.msra.mxu0 0.0
    %1292 = vmatpush.msra.mxu0 0.0
    %1293 = vmatpush.msra.mxu0 0.0
    %1294 = vmatpush.msra.mxu0 0.0
    %1295 = vmatpush.msra.mxu0 0.0
    %1296 = vmatpush.msra.mxu0 0.0
    %1297 = vmatpush.msra.mxu0 0.0
    %1298 = vmatpush.msra.mxu0 0.0
    %1299 = vmatpush.msra.mxu0 0.0
    %1300 = vmatpush.msra.mxu0 0.0
    %1301 = vmatpush.msra.mxu0 0.0
    %1302 = vmatpush.msra.mxu0 0.0
    %1303 = vmatpush.msra.mxu0 0.0
    %1304 = vmatpush.msra.mxu0 0.0
    %1305 = vmatpush.msra.mxu0 %v1285
    %1306 = vmatmul.f32.gmra.mxu0 %v1288
    %v1307 = vpop.f32.mrf.mxu0
    %v1308 = vadd.f32 0.0, %v1307
    %1309 = vdwg.mxu0
    %1310 = vrot.lane.b32.xlu0 %v415, 64
    %v1311 = vpop.permute.xlu0 %1310
    %v1314 = vsel %vm453, %v1073, 0
    %1316 = vmatpush.msra.mxu0 0.0
    %1317 = vmatpush.msra.mxu0 0.0
    %1318 = vmatpush.msra.mxu0 0.0
    %1319 = vmatpush.msra.mxu0 0.0
    %1320 = vmatpush.msra.mxu0 0.0
    %1321 = vmatpush.msra.mxu0 0.0
    %1322 = vmatpush.msra.mxu0 0.0
    %1323 = vmatpush.msra.mxu0 0.0
    %1324 = vmatpush.msra.mxu0 0.0
    %1325 = vmatpush.msra.mxu0 0.0
    %1326 = vmatpush.msra.mxu0 0.0
    %1327 = vmatpush.msra.mxu0 0.0
    %1328 = vmatpush.msra.mxu0 0.0
    %1329 = vmatpush.msra.mxu0 0.0
    %1330 = vmatpush.msra.mxu0 0.0
    %1331 = vmatpush.msra.mxu0 %v1311
    %1332 = vmatmul.f32.gmra.mxu0 %v1314
    %v1333 = vpop.f32.mrf.mxu0
    %v1334 = vadd.f32 0.0, %v1333
    %1335 = vdwg.mxu0
    %1336 = vrot.lane.b32.xlu0 %v418, 64
    %v1337 = vpop.permute.xlu0 %1336
    %v1340 = vsel %vm453, %v1088, 0
    %1342 = vmatpush.msra.mxu0 0.0
    %1343 = vmatpush.msra.mxu0 0.0
    %1344 = vmatpush.msra.mxu0 0.0
    %1345 = vmatpush.msra.mxu0 0.0
    %1346 = vmatpush.msra.mxu0 0.0
    %1347 = vmatpush.msra.mxu0 0.0
    %1348 = vmatpush.msra.mxu0 0.0
    %1349 = vmatpush.msra.mxu0 0.0
    %1350 = vmatpush.msra.mxu0 0.0
    %1351 = vmatpush.msra.mxu0 0.0
    %1352 = vmatpush.msra.mxu0 0.0
    %1353 = vmatpush.msra.mxu0 0.0
    %1354 = vmatpush.msra.mxu0 0.0
    %1355 = vmatpush.msra.mxu0 0.0
    %1356 = vmatpush.msra.mxu0 0.0
    %1357 = vmatpush.msra.mxu0 %v1337
    %1358 = vmatmul.f32.gmra.mxu0 %v1340
    %v1359 = vpop.f32.mrf.mxu0
    %v1360 = vadd.f32 0.0, %v1359
    %1361 = vdwg.mxu0
    %1362 = vrot.lane.b32.xlu0 %v421, 64
    %v1363 = vpop.permute.xlu0 %1362
    %v1366 = vsel %vm453, %v1103, 0
    %1368 = vmatpush.msra.mxu0 0.0
    %1369 = vmatpush.msra.mxu0 0.0
    %1370 = vmatpush.msra.mxu0 0.0
    %1371 = vmatpush.msra.mxu0 0.0
    %1372 = vmatpush.msra.mxu0 0.0
    %1373 = vmatpush.msra.mxu0 0.0
    %1374 = vmatpush.msra.mxu0 0.0
    %1375 = vmatpush.msra.mxu0 0.0
    %1376 = vmatpush.msra.mxu0 0.0
    %1377 = vmatpush.msra.mxu0 0.0
    %1378 = vmatpush.msra.mxu0 0.0
    %1379 = vmatpush.msra.mxu0 0.0
    %1380 = vmatpush.msra.mxu0 0.0
    %1381 = vmatpush.msra.mxu0 0.0
    %1382 = vmatpush.msra.mxu0 0.0
    %1383 = vmatpush.msra.mxu0 %v1363
    %1384 = vmatmul.f32.gmra.mxu0 %v1366
    %v1385 = vpop.f32.mrf.mxu0
    %v1386 = vadd.f32 0.0, %v1385
    %1387 = vdwg.mxu0
    %1388 = vrot.lane.b32.xlu0 %v428, 64
    %v1389 = vpop.permute.xlu0 %1388
    %v1392 = vsel %vm453, %v1118, 0
    %1394 = vmatpush.msra.mxu0 0.0
    %1395 = vmatpush.msra.mxu0 0.0
    %1396 = vmatpush.msra.mxu0 0.0
    %1397 = vmatpush.msra.mxu0 0.0
    %1398 = vmatpush.msra.mxu0 0.0
    %1399 = vmatpush.msra.mxu0 0.0
    %1400 = vmatpush.msra.mxu0 0.0
    %1401 = vmatpush.msra.mxu0 0.0
    %1402 = vmatpush.msra.mxu0 0.0
    %1403 = vmatpush.msra.mxu0 0.0
    %1404 = vmatpush.msra.mxu0 0.0
    %1405 = vmatpush.msra.mxu0 0.0
    %1406 = vmatpush.msra.mxu0 0.0
    %1407 = vmatpush.msra.mxu0 0.0
    %1408 = vmatpush.msra.mxu0 0.0
    %1409 = vmatpush.msra.mxu0 %v1389
    %1410 = vmatmul.f32.gmra.mxu0 %v1392
    %v1411 = vpop.f32.mrf.mxu0
    %v1412 = vadd.f32 0.0, %v1411
    %1413 = vdwg.mxu0
    %1414 = vrot.lane.b32.xlu0 %v430, 64
    %v1415 = vpop.permute.xlu0 %1414
    %v1418 = vsel %vm453, %v1133, 0
    %1420 = vmatpush.msra.mxu0 0.0
    %1421 = vmatpush.msra.mxu0 0.0
    %1422 = vmatpush.msra.mxu0 0.0
    %1423 = vmatpush.msra.mxu0 0.0
    %1424 = vmatpush.msra.mxu0 0.0
    %1425 = vmatpush.msra.mxu0 0.0
    %1426 = vmatpush.msra.mxu0 0.0
    %1427 = vmatpush.msra.mxu0 0.0
    %1428 = vmatpush.msra.mxu0 0.0
    %1429 = vmatpush.msra.mxu0 0.0
    %1430 = vmatpush.msra.mxu0 0.0
    %1431 = vmatpush.msra.mxu0 0.0
    %1432 = vmatpush.msra.mxu0 0.0
    %1433 = vmatpush.msra.mxu0 0.0
    %1434 = vmatpush.msra.mxu0 0.0
    %1435 = vmatpush.msra.mxu0 %v1415
    %1436 = vmatmul.f32.gmra.mxu0 %v1418
    %v1437 = vpop.f32.mrf.mxu0
    %v1438 = vadd.f32 0.0, %v1437
    %1439 = vdwg.mxu0
    %1440 = vrot.lane.b32.xlu0 %v432, 64
    %v1441 = vpop.permute.xlu0 %1440
    %v1444 = vsel %vm453, %v1148, 0
    %1446 = vmatpush.msra.mxu0 0.0
    %1447 = vmatpush.msra.mxu0 0.0
    %1448 = vmatpush.msra.mxu0 0.0
    %1449 = vmatpush.msra.mxu0 0.0
    %1450 = vmatpush.msra.mxu0 0.0
    %1451 = vmatpush.msra.mxu0 0.0
    %1452 = vmatpush.msra.mxu0 0.0
    %1453 = vmatpush.msra.mxu0 0.0
    %1454 = vmatpush.msra.mxu0 0.0
    %1455 = vmatpush.msra.mxu0 0.0
    %1456 = vmatpush.msra.mxu0 0.0
    %1457 = vmatpush.msra.mxu0 0.0
    %1458 = vmatpush.msra.mxu0 0.0
    %1459 = vmatpush.msra.mxu0 0.0
    %1460 = vmatpush.msra.mxu0 0.0
    %1461 = vmatpush.msra.mxu0 %v1441
    %1462 = vmatmul.f32.gmra.mxu0 %v1444
    %v1463 = vpop.f32.mrf.mxu0
    %v1464 = vadd.f32 0.0, %v1463
    %1465 = vdwg.mxu0
    %1466 = vrot.lane.b32.xlu0 %v434, 64
    %v1467 = vpop.permute.xlu0 %1466
    %v1470 = vsel %vm453, %v1163, 0
    %1472 = vmatpush.msra.mxu0 0.0
    %1473 = vmatpush.msra.mxu0 0.0
    %1474 = vmatpush.msra.mxu0 0.0
    %1475 = vmatpush.msra.mxu0 0.0
    %1476 = vmatpush.msra.mxu0 0.0
    %1477 = vmatpush.msra.mxu0 0.0
    %1478 = vmatpush.msra.mxu0 0.0
    %1479 = vmatpush.msra.mxu0 0.0
    %1480 = vmatpush.msra.mxu0 0.0
    %1481 = vmatpush.msra.mxu0 0.0
    %1482 = vmatpush.msra.mxu0 0.0
    %1483 = vmatpush.msra.mxu0 0.0
    %1484 = vmatpush.msra.mxu0 0.0
    %1485 = vmatpush.msra.mxu0 0.0
    %1486 = vmatpush.msra.mxu0 0.0
    %1487 = vmatpush.msra.mxu0 %v1467
    %1488 = vmatmul.f32.gmra.mxu0 %v1470
    %v1489 = vpop.f32.mrf.mxu0
    %v1490 = vadd.f32 0.0, %v1489
    %1491 = vdwg.mxu0
    %1492 = vrot.lane.b32.xlu0 %v436, 64
    %v1493 = vpop.permute.xlu0 %1492
    %v1496 = vsel %vm453, %v1178, 0
    %1498 = vmatpush.msra.mxu0 0.0
    %1499 = vmatpush.msra.mxu0 0.0
    %1500 = vmatpush.msra.mxu0 0.0
    %1501 = vmatpush.msra.mxu0 0.0
    %1502 = vmatpush.msra.mxu0 0.0
    %1503 = vmatpush.msra.mxu0 0.0
    %1504 = vmatpush.msra.mxu0 0.0
    %1505 = vmatpush.msra.mxu0 0.0
    %1506 = vmatpush.msra.mxu0 0.0
    %1507 = vmatpush.msra.mxu0 0.0
    %1508 = vmatpush.msra.mxu0 0.0
    %1509 = vmatpush.msra.mxu0 0.0
    %1510 = vmatpush.msra.mxu0 0.0
    %1511 = vmatpush.msra.mxu0 0.0
    %1512 = vmatpush.msra.mxu0 0.0
    %1513 = vmatpush.msra.mxu0 %v1493
    %1514 = vmatmul.f32.gmra.mxu0 %v1496
    %v1515 = vpop.f32.mrf.mxu0
    %v1516 = vadd.f32 0.0, %v1515
    %1517 = vdwg.mxu0
    %1518 = vrot.lane.b32.xlu0 %v438, 64
    %v1519 = vpop.permute.xlu0 %1518
    %v1522 = vsel %vm453, %v1193, 0
    %1524 = vmatpush.msra.mxu0 0.0
    %1525 = vmatpush.msra.mxu0 0.0
    %1526 = vmatpush.msra.mxu0 0.0
    %1527 = vmatpush.msra.mxu0 0.0
    %1528 = vmatpush.msra.mxu0 0.0
    %1529 = vmatpush.msra.mxu0 0.0
    %1530 = vmatpush.msra.mxu0 0.0
    %1531 = vmatpush.msra.mxu0 0.0
    %1532 = vmatpush.msra.mxu0 0.0
    %1533 = vmatpush.msra.mxu0 0.0
    %1534 = vmatpush.msra.mxu0 0.0
    %1535 = vmatpush.msra.mxu0 0.0
    %1536 = vmatpush.msra.mxu0 0.0
    %1537 = vmatpush.msra.mxu0 0.0
    %1538 = vmatpush.msra.mxu0 0.0
    %1539 = vmatpush.msra.mxu0 %v1519
    %1540 = vmatmul.f32.gmra.mxu0 %v1522
    %v1541 = vpop.f32.mrf.mxu0
    %v1542 = vadd.f32 0.0, %v1541
    %1543 = vdwg.mxu0
    %1544 = vrot.lane.b32.xlu0 %v440, 64
    %v1545 = vpop.permute.xlu0 %1544
    %v1548 = vsel %vm453, %v1208, 0
    %1550 = vmatpush.msra.mxu0 0.0
    %1551 = vmatpush.msra.mxu0 0.0
    %1552 = vmatpush.msra.mxu0 0.0
    %1553 = vmatpush.msra.mxu0 0.0
    %1554 = vmatpush.msra.mxu0 0.0
    %1555 = vmatpush.msra.mxu0 0.0
    %1556 = vmatpush.msra.mxu0 0.0
    %1557 = vmatpush.msra.mxu0 0.0
    %1558 = vmatpush.msra.mxu0 0.0
    %1559 = vmatpush.msra.mxu0 0.0
    %1560 = vmatpush.msra.mxu0 0.0
    %1561 = vmatpush.msra.mxu0 0.0
    %1562 = vmatpush.msra.mxu0 0.0
    %1563 = vmatpush.msra.mxu0 0.0
    %1564 = vmatpush.msra.mxu0 0.0
    %1565 = vmatpush.msra.mxu0 %v1545
    %1566 = vmatmul.f32.gmra.mxu0 %v1548
    %v1567 = vpop.f32.mrf.mxu0
    %v1568 = vadd.f32 0.0, %v1567
    %1569 = vdwg.mxu0
    %1570 = vrot.lane.b32.xlu0 %v442, 64
    %v1571 = vpop.permute.xlu0 %1570
    %v1574 = vsel %vm453, %v1223, 0
    %1576 = vmatpush.msra.mxu0 0.0
    %1577 = vmatpush.msra.mxu0 0.0
    %1578 = vmatpush.msra.mxu0 0.0
    %1579 = vmatpush.msra.mxu0 0.0
    %1580 = vmatpush.msra.mxu0 0.0
    %1581 = vmatpush.msra.mxu0 0.0
    %1582 = vmatpush.msra.mxu0 0.0
    %1583 = vmatpush.msra.mxu0 0.0
    %1584 = vmatpush.msra.mxu0 0.0
    %1585 = vmatpush.msra.mxu0 0.0
    %1586 = vmatpush.msra.mxu0 0.0
    %1587 = vmatpush.msra.mxu0 0.0
    %1588 = vmatpush.msra.mxu0 0.0
    %1589 = vmatpush.msra.mxu0 0.0
    %1590 = vmatpush.msra.mxu0 0.0
    %1591 = vmatpush.msra.mxu0 %v1571
    %1592 = vmatmul.f32.gmra.mxu0 %v1574
    %v1593 = vpop.f32.mrf.mxu0
    %v1594 = vadd.f32 0.0, %v1593
    %1595 = vdwg.mxu0
    %1596 = vrot.lane.b32.xlu0 %v444, 64
    %v1597 = vpop.permute.xlu0 %1596
    %v1600 = vsel %vm453, %v1238, 0
    %1602 = vmatpush.msra.mxu0 0.0
    %1603 = vmatpush.msra.mxu0 0.0
    %1604 = vmatpush.msra.mxu0 0.0
    %1605 = vmatpush.msra.mxu0 0.0
    %1606 = vmatpush.msra.mxu0 0.0
    %1607 = vmatpush.msra.mxu0 0.0
    %1608 = vmatpush.msra.mxu0 0.0
    %1609 = vmatpush.msra.mxu0 0.0
    %1610 = vmatpush.msra.mxu0 0.0
    %1611 = vmatpush.msra.mxu0 0.0
    %1612 = vmatpush.msra.mxu0 0.0
    %1613 = vmatpush.msra.mxu0 0.0
    %1614 = vmatpush.msra.mxu0 0.0
    %1615 = vmatpush.msra.mxu0 0.0
    %1616 = vmatpush.msra.mxu0 0.0
    %1617 = vmatpush.msra.mxu0 %v1597
    %1618 = vmatmul.f32.gmra.mxu0 %v1600
    %v1619 = vpop.f32.mrf.mxu0
    %v1620 = vadd.f32 0.0, %v1619
    %1621 = vdwg.mxu0
    %1622 = vrot.lane.b32.xlu0 %v446, 64
    %v1623 = vpop.permute.xlu0 %1622
    %v1626 = vsel %vm453, %v1253, 0
    %1628 = vmatpush.msra.mxu0 0.0
    %1629 = vmatpush.msra.mxu0 0.0
    %1630 = vmatpush.msra.mxu0 0.0
    %1631 = vmatpush.msra.mxu0 0.0
    %1632 = vmatpush.msra.mxu0 0.0
    %1633 = vmatpush.msra.mxu0 0.0
    %1634 = vmatpush.msra.mxu0 0.0
    %1635 = vmatpush.msra.mxu0 0.0
    %1636 = vmatpush.msra.mxu0 0.0
    %1637 = vmatpush.msra.mxu0 0.0
    %1638 = vmatpush.msra.mxu0 0.0
    %1639 = vmatpush.msra.mxu0 0.0
    %1640 = vmatpush.msra.mxu0 0.0
    %1641 = vmatpush.msra.mxu0 0.0
    %1642 = vmatpush.msra.mxu0 0.0
    %1643 = vmatpush.msra.mxu0 %v1623
    %1644 = vmatmul.f32.gmra.mxu0 %v1626
    %v1645 = vpop.f32.mrf.mxu0
    %v1646 = vadd.f32 0.0, %v1645
    %1647 = vdwg.mxu0
    %1648 = vrot.lane.b32.xlu0 %v448, 64
    %v1649 = vpop.permute.xlu0 %1648
    %v1652 = vsel %vm453, %v1268, 0
    %1654 = vmatpush.msra.mxu0 0.0
    %1655 = vmatpush.msra.mxu0 0.0
    %1656 = vmatpush.msra.mxu0 0.0
    %1657 = vmatpush.msra.mxu0 0.0
    %1658 = vmatpush.msra.mxu0 0.0
    %1659 = vmatpush.msra.mxu0 0.0
    %1660 = vmatpush.msra.mxu0 0.0
    %1661 = vmatpush.msra.mxu0 0.0
    %1662 = vmatpush.msra.mxu0 0.0
    %1663 = vmatpush.msra.mxu0 0.0
    %1664 = vmatpush.msra.mxu0 0.0
    %1665 = vmatpush.msra.mxu0 0.0
    %1666 = vmatpush.msra.mxu0 0.0
    %1667 = vmatpush.msra.mxu0 0.0
    %1668 = vmatpush.msra.mxu0 0.0
    %1669 = vmatpush.msra.mxu0 %v1649
    %1670 = vmatmul.f32.gmra.mxu0 %v1652
    %v1671 = vpop.f32.mrf.mxu0
    %v1672 = vadd.f32 0.0, %v1671
    %1673 = vdwg.mxu0
    %1674 = vrot.lane.b32.xlu0 %v450, 64
    %v1675 = vpop.permute.xlu0 %1674
    %v1678 = vsel %vm453, %v1283, 0
    %1680 = vmatpush.msra.mxu0 0.0
    %1681 = vmatpush.msra.mxu0 0.0
    %1682 = vmatpush.msra.mxu0 0.0
    %1683 = vmatpush.msra.mxu0 0.0
    %1684 = vmatpush.msra.mxu0 0.0
    %1685 = vmatpush.msra.mxu0 0.0
    %1686 = vmatpush.msra.mxu0 0.0
    %1687 = vmatpush.msra.mxu0 0.0
    %1688 = vmatpush.msra.mxu0 0.0
    %1689 = vmatpush.msra.mxu0 0.0
    %1690 = vmatpush.msra.mxu0 0.0
    %1691 = vmatpush.msra.mxu0 0.0
    %1692 = vmatpush.msra.mxu0 0.0
    %1693 = vmatpush.msra.mxu0 0.0
    %1694 = vmatpush.msra.mxu0 0.0
    %1695 = vmatpush.msra.mxu0 %v1675
    %1696 = vmatmul.f32.gmra.mxu0 %v1678
    %v1697 = vpop.f32.mrf.mxu0
    %v1698 = vadd.f32 0.0, %v1697
    %1699 = vdwg.mxu0
    %1704 = vrot.lane.b32.xlu0 %v1412, 8
    %v1705 = vpop.permute.xlu0 %1704
    %1706 = vrot.lane.b32.xlu0 %v1438, 8
    %v1707 = vpop.permute.xlu0 %1706
    %1708 = vrot.lane.b32.xlu0 %v1464, 8
    %v1709 = vpop.permute.xlu0 %1708
    %1710 = vrot.lane.b32.xlu0 %v1490, 8
    %v1711 = vpop.permute.xlu0 %1710
    %1720 = vrot.lane.b32.xlu0 %v1516, 16
    %v1721 = vpop.permute.xlu0 %1720
    %1722 = vrot.lane.b32.xlu0 %v1542, 16
    %v1723 = vpop.permute.xlu0 %1722
    %1724 = vrot.lane.b32.xlu0 %v1568, 16
    %v1725 = vpop.permute.xlu0 %1724
    %1726 = vrot.lane.b32.xlu0 %v1594, 16
    %v1727 = vpop.permute.xlu0 %1726
    %1736 = vrot.lane.b32.xlu0 %v1620, 24
    %v1737 = vpop.permute.xlu0 %1736
    %1738 = vrot.lane.b32.xlu0 %v1646, 24
    %v1739 = vpop.permute.xlu0 %1738
    %1740 = vrot.lane.b32.xlu0 %v1672, 24
    %v1741 = vpop.permute.xlu0 %1740
    %1742 = vrot.lane.b32.xlu0 %v1698, 24
    %v1743 = vpop.permute.xlu0 %1742
    %v1748 = vsel %vm453, %v1308, %v1705
    %v1749 = vsel %vm453, %v1334, %v1707
    %v1750 = vsel %vm453, %v1360, %v1709
    %v1751 = vsel %vm453, %v1386, %v1711
    %vm1752 = vcmask 130048
    %v1753 = vsel %vm1752, %v1748, %v1721
    %v1754 = vsel %vm1752, %v1749, %v1723
    %v1755 = vsel %vm1752, %v1750, %v1725
    %v1756 = vsel %vm1752, %v1751, %v1727
    %vm1757 = vcmask 195584
    %v1758 = vsel %vm1757, %v1753, %v1737
    %v1759 = vsel %vm1757, %v1754, %v1739
    %v1760 = vsel %vm1757, %v1755, %v1741
    %v1761 = vsel %vm1757, %v1756, %v1743
    %v1762 = vperm.slane %v24, 3
    %v1764 = vsel %vm192, %v1758, 0
    %v1767 = vsel %vm192, %v1759, 0
    %v1770 = vsel %vm192, %v1760, 0
    %v1773 = vsel %vm192, %v1761, 0
    %v1776 = vsel %vm192, %v325, 0
    %v1779 = vsel %vm192, %v326, 0
    %v1782 = vsel %vm192, %v327, 0
    %v1785 = vsel %vm192, %v328, 0
    %1787 = vmatpush.xpose.msra.mxu0 0.0
    %1788 = vmatpush.xpose.msra.mxu0 0.0
    %1789 = vmatpush.xpose.msra.mxu0 0.0
    %1790 = vmatpush.xpose.msra.mxu0 0.0
    %1791 = vmatpush.xpose.msra.mxu0 0.0
    %1792 = vmatpush.xpose.msra.mxu0 0.0
    %1793 = vmatpush.xpose.msra.mxu0 0.0
    %1794 = vmatpush.xpose.msra.mxu0 0.0
    %1795 = vmatpush.xpose.msra.mxu0 0.0
    %1796 = vmatpush.xpose.msra.mxu0 0.0
    %1797 = vmatpush.xpose.msra.mxu0 0.0
    %1798 = vmatpush.xpose.msra.mxu0 0.0
    %1799 = vmatpush.xpose.msra.mxu0 %v1785
    %1800 = vmatpush.xpose.msra.mxu0 %v1782
    %1801 = vmatpush.xpose.msra.mxu0 %v1779
    %1802 = vmatpush.xpose.msra.mxu0 %v1776
    %1803 = vmatmul.f32.gmra.mxu0 %v1764
    %v1804 = vpop.f32.mrf.mxu0
    %v1805 = vadd.f32 %v1762, %v1804
    %1806 = vmatmul.f32.gmra.mxu0 %v1767
    %v1807 = vpop.f32.mrf.mxu0
    %v1808 = vadd.f32 %v1762, %v1807
    %1809 = vmatmul.f32.gmra.mxu0 %v1770
    %v1810 = vpop.f32.mrf.mxu0
    %v1811 = vadd.f32 %v1762, %v1810
    %1812 = vmatmul.f32.gmra.mxu0 %v1773
    %v1813 = vpop.f32.mrf.mxu0
    %v1814 = vadd.f32 %v1762, %v1813
    %1815 = vdwg.mxu0
    %v1816 = vadd.f32 %v294, %v1805
    %v1817 = vadd.f32 %v295, %v1808
    %v1818 = vadd.f32 %v296, %v1811
    %v1819 = vadd.f32 %v297, %v1814
    %v1820 = vsel %vm192, %v1816, 0.0
    %1821 = vadd.xlane.f32.xlu0 %v1820
    %v1822 = vpop.xlane.xlu0 %1821
    %v1823 = vsel %vm192, %v1817, 0.0
    %1824 = vadd.xlane.f32.xlu0 %v1823
    %v1825 = vpop.xlane.xlu0 %1824
    %v1826 = vsel %vm192, %v1818, 0.0
    %1827 = vadd.xlane.f32.xlu0 %v1826
    %v1828 = vpop.xlane.xlu0 %1827
    %v1829 = vsel %vm192, %v1819, 0.0
    %1830 = vadd.xlane.f32.xlu0 %v1829
    %v1831 = vpop.xlane.xlu0 %1830
    %v1832 = vmul.f32 %v1822, %v211
    %v1833 = vmul.f32 %v1825, %v211
    %v1834 = vmul.f32 %v1828, %v211
    %v1835 = vmul.f32 %v1831, %v211
    %v1836 = vsub.f32 %v1816, %v1832
    %v1837 = vsub.f32 %v1817, %v1833
    %v1838 = vsub.f32 %v1818, %v1834
    %v1839 = vsub.f32 %v1819, %v1835
    %v1840 = vmul.f32 %v1836, %v1836
    %v1841 = vmul.f32 %v1837, %v1837
    %v1842 = vmul.f32 %v1838, %v1838
    %v1843 = vmul.f32 %v1839, %v1839
    %v1844 = vsel %vm192, %v1840, 0.0
    %1845 = vadd.xlane.f32.xlu0 %v1844
    %v1846 = vpop.xlane.xlu0 %1845
    %v1847 = vsel %vm192, %v1841, 0.0
    %1848 = vadd.xlane.f32.xlu0 %v1847
    %v1849 = vpop.xlane.xlu0 %1848
    %v1850 = vsel %vm192, %v1842, 0.0
    %1851 = vadd.xlane.f32.xlu0 %v1850
    %v1852 = vpop.xlane.xlu0 %1851
    %v1853 = vsel %vm192, %v1843, 0.0
    %1854 = vadd.xlane.f32.xlu0 %v1853
    %v1855 = vpop.xlane.xlu0 %1854
    %v1856 = vmul.f32 %v1846, %v211
    %v1857 = vmul.f32 %v1849, %v211
    %v1858 = vmul.f32 %v1852, %v211
    %v1859 = vmul.f32 %v1855, %v211
    %v1860 = vadd.f32 %v1856, 1e-05
    %v1861 = vadd.f32 %v1857, 1e-05
    %v1862 = vadd.f32 %v1858, 1e-05
    %v1863 = vadd.f32 %v1859, 1e-05
    %v1864 = vrsqrt.pop %v1860
    %v1865 = vmul.f32 %v1864, %v1860
    %v1866 = vmul.f32 %v1865, %v1864
    %v1867 = vmul.f32 0.5, %v1866
    %v1868 = vsub.f32 1.5, %v1867
    %v1869 = vmul.f32 %v1864, %v1868
    %vm1870 = vweird.f32 %v1860
    %vm1871 = vweird.f32 %v1864
    %vm1872 = vmor %vm1870, %vm1871
    %v1873 = vsel %vm1872, %v1864, %v1869
    %v1874 = vrsqrt.pop %v1861
    %v1875 = vmul.f32 %v1874, %v1861
    %v1876 = vmul.f32 %v1875, %v1874
    %v1877 = vmul.f32 0.5, %v1876
    %v1878 = vsub.f32 1.5, %v1877
    %v1879 = vmul.f32 %v1874, %v1878
    %vm1880 = vweird.f32 %v1861
    %vm1881 = vweird.f32 %v1874
    %vm1882 = vmor %vm1880, %vm1881
    %v1883 = vsel %vm1882, %v1874, %v1879
    %v1884 = vrsqrt.pop %v1862
    %v1885 = vmul.f32 %v1884, %v1862
    %v1886 = vmul.f32 %v1885, %v1884
    %v1887 = vmul.f32 0.5, %v1886
    %v1888 = vsub.f32 1.5, %v1887
    %v1889 = vmul.f32 %v1884, %v1888
    %vm1890 = vweird.f32 %v1862
    %vm1891 = vweird.f32 %v1884
    %vm1892 = vmor %vm1890, %vm1891
    %v1893 = vsel %vm1892, %v1884, %v1889
    %v1894 = vrsqrt.pop %v1863
    %v1895 = vmul.f32 %v1894, %v1863
    %v1896 = vmul.f32 %v1895, %v1894
    %v1897 = vmul.f32 0.5, %v1896
    %v1898 = vsub.f32 1.5, %v1897
    %v1899 = vmul.f32 %v1894, %v1898
    %vm1900 = vweird.f32 %v1863
    %vm1901 = vweird.f32 %v1894
    %vm1902 = vmor %vm1900, %vm1901
    %v1903 = vsel %vm1902, %v1894, %v1899
    %v1904 = vmul.f32 %v1836, %v1873
    %v1905 = vmul.f32 %v1837, %v1883
    %v1906 = vmul.f32 %v1838, %v1893
    %v1907 = vmul.f32 %v1839, %v1903
    %v1908 = vperm.slane %v24, 4
    %v1909 = vmul.f32 %v1904, %v1908
    %v1910 = vmul.f32 %v1905, %v1908
    %v1911 = vmul.f32 %v1906, %v1908
    %v1912 = vmul.f32 %v1907, %v1908
    %v1913 = vperm.slane %v24, 5
    %v1914 = vadd.f32 %v1909, %v1913
    %v1915 = vadd.f32 %v1910, %v1913
    %v1916 = vadd.f32 %v1911, %v1913
    %v1917 = vadd.f32 %v1912, %v1913
    %v1918 = vperm.slane %v24, 6
    %v1920 = vsel %vm192, %v1914, 0
    %v1923 = vsel %vm192, %v1915, 0
    %v1926 = vsel %vm192, %v1916, 0
    %v1929 = vsel %vm192, %v1917, 0
    %v1932 = vsel %vm192, %v329, 0
    %v1935 = vsel %vm192, %v330, 0
    %v1938 = vsel %vm192, %v331, 0
    %v1941 = vsel %vm192, %v332, 0
    %v1944 = vsel %vm192, %v333, 0
    %v1947 = vsel %vm192, %v334, 0
    %v1950 = vsel %vm192, %v335, 0
    %v1953 = vsel %vm192, %v336, 0
    %1955 = vmatpush.xpose.msra.mxu0 0.0
    %1956 = vmatpush.xpose.msra.mxu0 0.0
    %1957 = vmatpush.xpose.msra.mxu0 0.0
    %1958 = vmatpush.xpose.msra.mxu0 0.0
    %1959 = vmatpush.xpose.msra.mxu0 0.0
    %1960 = vmatpush.xpose.msra.mxu0 0.0
    %1961 = vmatpush.xpose.msra.mxu0 0.0
    %1962 = vmatpush.xpose.msra.mxu0 0.0
    %1963 = vmatpush.xpose.msra.mxu0 %v1953
    %1964 = vmatpush.xpose.msra.mxu0 %v1950
    %1965 = vmatpush.xpose.msra.mxu0 %v1947
    %1966 = vmatpush.xpose.msra.mxu0 %v1944
    %1967 = vmatpush.xpose.msra.mxu0 %v1941
    %1968 = vmatpush.xpose.msra.mxu0 %v1938
    %1969 = vmatpush.xpose.msra.mxu0 %v1935
    %1970 = vmatpush.xpose.msra.mxu0 %v1932
    %1971 = vmatmul.f32.gmra.mxu0 %v1920
    %v1972 = vpop.f32.mrf.mxu0
    %v1973 = vadd.f32 %v1918, %v1972
    %1974 = vmatmul.f32.gmra.mxu0 %v1923
    %v1975 = vpop.f32.mrf.mxu0
    %v1976 = vadd.f32 %v1918, %v1975
    %1977 = vmatmul.f32.gmra.mxu0 %v1926
    %v1978 = vpop.f32.mrf.mxu0
    %v1979 = vadd.f32 %v1918, %v1978
    %1980 = vmatmul.f32.gmra.mxu0 %v1929
    %v1981 = vpop.f32.mrf.mxu0
    %v1982 = vadd.f32 %v1918, %v1981
    %1983 = vdwg.mxu0
    %v1984 = vmul.f32 %v1973, %v1973
    %v1985 = vmul.f32 %v1976, %v1976
    %v1986 = vmul.f32 %v1979, %v1979
    %v1987 = vmul.f32 %v1982, %v1982
    %v1988 = vmul.f32 %v1973, %v1984
    %v1989 = vmul.f32 %v1976, %v1985
    %v1990 = vmul.f32 %v1979, %v1986
    %v1991 = vmul.f32 %v1982, %v1987
    %v1992 = vmul.f32 %v1988, 0.044715
    %v1993 = vmul.f32 %v1989, 0.044715
    %v1994 = vmul.f32 %v1990, 0.044715
    %v1995 = vmul.f32 %v1991, 0.044715
    %v1996 = vadd.f32 %v1973, %v1992
    %v1997 = vadd.f32 %v1976, %v1993
    %v1998 = vadd.f32 %v1979, %v1994
    %v1999 = vadd.f32 %v1982, %v1995
    %v2000 = vmul.f32 %v1996, 0.7978846
    %v2001 = vmul.f32 %v1997, 0.7978846
    %v2002 = vmul.f32 %v1998, 0.7978846
    %v2003 = vmul.f32 %v1999, 0.7978846
    %v2004 = vtanh.pop %v2000
    %v2005 = vtanh.pop %v2001
    %v2006 = vtanh.pop %v2002
    %v2007 = vtanh.pop %v2003
    %v2008 = vadd.f32 %v2004, 1.0
    %v2009 = vadd.f32 %v2005, 1.0
    %v2010 = vadd.f32 %v2006, 1.0
    %v2011 = vadd.f32 %v2007, 1.0
    %v2012 = vmul.f32 %v2008, 0.5
    %v2013 = vmul.f32 %v2009, 0.5
    %v2014 = vmul.f32 %v2010, 0.5
    %v2015 = vmul.f32 %v2011, 0.5
    %v2016 = vmul.f32 %v1973, %v2012
    %v2017 = vmul.f32 %v1976, %v2013
    %v2018 = vmul.f32 %v1979, %v2014
    %v2019 = vmul.f32 %v1982, %v2015
    %v2020 = vperm.slane %v24, 7
    %v2022 = vsel %vm103, %v2016, 0
    %v2025 = vsel %vm103, %v2017, 0
    %v2028 = vsel %vm103, %v2018, 0
    %v2031 = vsel %vm103, %v2019, 0
    %2033 = vmatpush.msra.mxu0 0.0
    %2034 = vmatpush.msra.mxu0 0.0
    %2035 = vmatpush.msra.mxu0 0.0
    %2036 = vmatpush.msra.mxu0 0.0
    %2037 = vmatpush.msra.mxu0 0.0
    %2038 = vmatpush.msra.mxu0 0.0
    %2039 = vmatpush.msra.mxu0 0.0
    %2040 = vmatpush.msra.mxu0 0.0
    %2041 = vmatpush.msra.mxu0 %v344
    %2042 = vmatpush.msra.mxu0 %v343
    %2043 = vmatpush.msra.mxu0 %v342
    %2044 = vmatpush.msra.mxu0 %v341
    %2045 = vmatpush.msra.mxu0 %v340
    %2046 = vmatpush.msra.mxu0 %v339
    %2047 = vmatpush.msra.mxu0 %v338
    %2048 = vmatpush.msra.mxu0 %v337
    %2049 = vmatmul.f32.gmra.mxu0 %v2022
    %v2050 = vpop.f32.mrf.mxu0
    %v2051 = vadd.f32 %v2020, %v2050
    %2052 = vmatmul.f32.gmra.mxu0 %v2025
    %v2053 = vpop.f32.mrf.mxu0
    %v2054 = vadd.f32 %v2020, %v2053
    %2055 = vmatmul.f32.gmra.mxu0 %v2028
    %v2056 = vpop.f32.mrf.mxu0
    %v2057 = vadd.f32 %v2020, %v2056
    %2058 = vmatmul.f32.gmra.mxu0 %v2031
    %v2059 = vpop.f32.mrf.mxu0
    %v2060 = vadd.f32 %v2020, %v2059
    %2061 = vdwg.mxu0
    %v2062 = vadd.f32 %v1914, %v2051
    %v2063 = vadd.f32 %v1915, %v2054
    %v2064 = vadd.f32 %v1916, %v2057
    %v2065 = vadd.f32 %v1917, %v2060
    %v2066 = vsel %vm192, %v2062, 0.0
    %2067 = vadd.xlane.f32.xlu0 %v2066
    %v2068 = vpop.xlane.xlu0 %2067
    %v2069 = vsel %vm192, %v2063, 0.0
    %2070 = vadd.xlane.f32.xlu0 %v2069
    %v2071 = vpop.xlane.xlu0 %2070
    %v2072 = vsel %vm192, %v2064, 0.0
    %2073 = vadd.xlane.f32.xlu0 %v2072
    %v2074 = vpop.xlane.xlu0 %2073
    %v2075 = vsel %vm192, %v2065, 0.0
    %2076 = vadd.xlane.f32.xlu0 %v2075
    %v2077 = vpop.xlane.xlu0 %2076
    %v2078 = vmul.f32 %v2068, %v211
    %v2079 = vmul.f32 %v2071, %v211
    %v2080 = vmul.f32 %v2074, %v211
    %v2081 = vmul.f32 %v2077, %v211
    %v2082 = vsub.f32 %v2062, %v2078
    %v2083 = vsub.f32 %v2063, %v2079
    %v2084 = vsub.f32 %v2064, %v2080
    %v2085 = vsub.f32 %v2065, %v2081
    %v2086 = vmul.f32 %v2082, %v2082
    %v2087 = vmul.f32 %v2083, %v2083
    %v2088 = vmul.f32 %v2084, %v2084
    %v2089 = vmul.f32 %v2085, %v2085
    %v2090 = vsel %vm192, %v2086, 0.0
    %2091 = vadd.xlane.f32.xlu0 %v2090
    %v2092 = vpop.xlane.xlu0 %2091
    %v2093 = vsel %vm192, %v2087, 0.0
    %2094 = vadd.xlane.f32.xlu0 %v2093
    %v2095 = vpop.xlane.xlu0 %2094
    %v2096 = vsel %vm192, %v2088, 0.0
    %2097 = vadd.xlane.f32.xlu0 %v2096
    %v2098 = vpop.xlane.xlu0 %2097
    %v2099 = vsel %vm192, %v2089, 0.0
    %2100 = vadd.xlane.f32.xlu0 %v2099
    %v2101 = vpop.xlane.xlu0 %2100
    %v2102 = vmul.f32 %v2092, %v211
    %v2103 = vmul.f32 %v2095, %v211
    %v2104 = vmul.f32 %v2098, %v211
    %v2105 = vmul.f32 %v2101, %v211
    %v2106 = vadd.f32 %v2102, 1e-05
    %v2107 = vadd.f32 %v2103, 1e-05
    %v2108 = vadd.f32 %v2104, 1e-05
    %v2109 = vadd.f32 %v2105, 1e-05
    %v2110 = vrsqrt.pop %v2106
    %v2111 = vmul.f32 %v2110, %v2106
    %v2112 = vmul.f32 %v2111, %v2110
    %v2113 = vmul.f32 0.5, %v2112
    %v2114 = vsub.f32 1.5, %v2113
    %v2115 = vmul.f32 %v2110, %v2114
    %vm2116 = vweird.f32 %v2106
    %vm2117 = vweird.f32 %v2110
    %vm2118 = vmor %vm2116, %vm2117
    %v2119 = vsel %vm2118, %v2110, %v2115
    %v2120 = vrsqrt.pop %v2107
    %v2121 = vmul.f32 %v2120, %v2107
    %v2122 = vmul.f32 %v2121, %v2120
    %v2123 = vmul.f32 0.5, %v2122
    %v2124 = vsub.f32 1.5, %v2123
    %v2125 = vmul.f32 %v2120, %v2124
    %vm2126 = vweird.f32 %v2107
    %vm2127 = vweird.f32 %v2120
    %vm2128 = vmor %vm2126, %vm2127
    %v2129 = vsel %vm2128, %v2120, %v2125
    %v2130 = vrsqrt.pop %v2108
    %v2131 = vmul.f32 %v2130, %v2108
    %v2132 = vmul.f32 %v2131, %v2130
    %v2133 = vmul.f32 0.5, %v2132
    %v2134 = vsub.f32 1.5, %v2133
    %v2135 = vmul.f32 %v2130, %v2134
    %vm2136 = vweird.f32 %v2108
    %vm2137 = vweird.f32 %v2130
    %vm2138 = vmor %vm2136, %vm2137
    %v2139 = vsel %vm2138, %v2130, %v2135
    %v2140 = vrsqrt.pop %v2109
    %v2141 = vmul.f32 %v2140, %v2109
    %v2142 = vmul.f32 %v2141, %v2140
    %v2143 = vmul.f32 0.5, %v2142
    %v2144 = vsub.f32 1.5, %v2143
    %v2145 = vmul.f32 %v2140, %v2144
    %vm2146 = vweird.f32 %v2109
    %vm2147 = vweird.f32 %v2140
    %vm2148 = vmor %vm2146, %vm2147
    %v2149 = vsel %vm2148, %v2140, %v2145
    %v2150 = vmul.f32 %v2082, %v2119
    %v2151 = vmul.f32 %v2083, %v2129
    %v2152 = vmul.f32 %v2084, %v2139
    %v2153 = vmul.f32 %v2085, %v2149
    %v2154 = vperm.slane %v25, 0
    %v2155 = vmul.f32 %v2150, %v2154
    %v2156 = vmul.f32 %v2151, %v2154
    %v2157 = vmul.f32 %v2152, %v2154
    %v2158 = vmul.f32 %v2153, %v2154
    %v2159 = vperm.slane %v25, 1
    %v2160 = vadd.f32 %v2155, %v2159
    %v2161 = vadd.f32 %v2156, %v2159
    %v2162 = vadd.f32 %v2157, %v2159
    %v2163 = vadd.f32 %v2158, %v2159
    %s2164 = scalar_lea.vmem %s3, 256
    %v2165 = vld [vmem:[%s2164] sm:$0xff]
    %v2166 = vld [vmem:[%s2164 + $0x8] sm:$0xff]
    %v2167 = vld [vmem:[%s2164 + $0x10] sm:$0xff]
    %v2168 = vld [vmem:[%s2164 + $0x18] sm:$0xff]
    %v2169 = vld [vmem:[%s2164 + $0x20] sm:$0xff]
    %v2170 = vld [vmem:[%s2164 + $0x28] sm:$0xff]
    %v2171 = vld [vmem:[%s2164 + $0x30] sm:$0xff]
    %v2172 = vld [vmem:[%s2164 + $0x38] sm:$0xff]
    %v2173 = vld [vmem:[%s2164 + $0x40] sm:$0xff]
    %v2174 = vld [vmem:[%s2164 + $0x48] sm:$0xff]
    %v2175 = vld [vmem:[%s2164 + $0x50] sm:$0xff]
    %v2176 = vld [vmem:[%s2164 + $0x58] sm:$0xff]
    %v2177 = vld [vmem:[%s2164 + $0x60] sm:$0xff]
    %v2178 = vld [vmem:[%s2164 + $0x68] sm:$0xff]
    %v2179 = vld [vmem:[%s2164 + $0x70] sm:$0xff]
    %v2180 = vld [vmem:[%s2164 + $0x78] sm:$0xff]
    %v2181 = vld [vmem:[%s2164 + $0x80] sm:$0xff]
    %v2182 = vld [vmem:[%s2164 + $0x88] sm:$0xff]
    %v2183 = vld [vmem:[%s2164 + $0x90] sm:$0xff]
    %v2184 = vld [vmem:[%s2164 + $0x98] sm:$0xff]
    %v2185 = vld [vmem:[%s2164 + $0xa0] sm:$0xff]
    %v2186 = vld [vmem:[%s2164 + $0xa8] sm:$0xff]
    %v2187 = vld [vmem:[%s2164 + $0xb0] sm:$0xff]
    %v2188 = vld [vmem:[%s2164 + $0xb8] sm:$0xff]
    %v2189 = vld [vmem:[%s2164 + $0xc0] sm:$0xff]
    %v2190 = vld [vmem:[%s2164 + $0xc8] sm:$0xff]
    %v2191 = vld [vmem:[%s2164 + $0xd0] sm:$0xff]
    %v2192 = vld [vmem:[%s2164 + $0xd8] sm:$0xff]
    %v2193 = vld [vmem:[%s2164 + $0xe0] sm:$0xff]
    %v2194 = vld [vmem:[%s2164 + $0xe8] sm:$0xff]
    %v2195 = vld [vmem:[%s2164 + $0xf0] sm:$0xff]
    %v2196 = vld [vmem:[%s2164 + $0xf8] sm:$0xff]
    %v2197 = vperm.slane %v25, 2
    %v2199 = vsel %vm192, %v2160, 0
    %v2202 = vsel %vm192, %v2161, 0
    %v2205 = vsel %vm192, %v2162, 0
    %v2208 = vsel %vm192, %v2163, 0
    %v2211 = vsel %vm192, %v2165, 0
    %v2214 = vsel %vm192, %v2166, 0
    %v2217 = vsel %vm192, %v2167, 0
    %v2220 = vsel %vm192, %v2168, 0
    %v2223 = vsel %vm192, %v2169, 0
    %v2226 = vsel %vm192, %v2170, 0
    %v2229 = vsel %vm192, %v2171, 0
    %v2232 = vsel %vm192, %v2172, 0
    %v2235 = vsel %vm192, %v2173, 0
    %v2238 = vsel %vm192, %v2174, 0
    %v2241 = vsel %vm192, %v2175, 0
    %v2244 = vsel %vm192, %v2176, 0
    %2246 = vmatpush.xpose.msra.mxu0 0.0
    %2247 = vmatpush.xpose.msra.mxu0 0.0
    %2248 = vmatpush.xpose.msra.mxu0 0.0
    %2249 = vmatpush.xpose.msra.mxu0 0.0
    %2250 = vmatpush.xpose.msra.mxu0 %v2244
    %2251 = vmatpush.xpose.msra.mxu0 %v2241
    %2252 = vmatpush.xpose.msra.mxu0 %v2238
    %2253 = vmatpush.xpose.msra.mxu0 %v2235
    %2254 = vmatpush.xpose.msra.mxu0 %v2232
    %2255 = vmatpush.xpose.msra.mxu0 %v2229
    %2256 = vmatpush.xpose.msra.mxu0 %v2226
    %2257 = vmatpush.xpose.msra.mxu0 %v2223
    %2258 = vmatpush.xpose.msra.mxu0 %v2220
    %2259 = vmatpush.xpose.msra.mxu0 %v2217
    %2260 = vmatpush.xpose.msra.mxu0 %v2214
    %2261 = vmatpush.xpose.msra.mxu0 %v2211
    %2262 = vmatmul.f32.gmra.mxu0 %v2199
    %v2263 = vpop.f32.mrf.mxu0
    %v2264 = vadd.f32 %v2197, %v2263
    %2265 = vmatmul.f32.gmra.mxu0 %v2202
    %v2266 = vpop.f32.mrf.mxu0
    %v2267 = vadd.f32 %v2197, %v2266
    %2268 = vmatmul.f32.gmra.mxu0 %v2205
    %v2269 = vpop.f32.mrf.mxu0
    %v2270 = vadd.f32 %v2197, %v2269
    %2271 = vmatmul.f32.gmra.mxu0 %v2208
    %v2272 = vpop.f32.mrf.mxu0
    %v2273 = vadd.f32 %v2197, %v2272
    %2274 = vdwg.mxu0
    %2279 = vrot.lane.b32.xlu0 %v2264, 120
    %v2280 = vpop.permute.xlu0 %2279
    %2281 = vrot.lane.b32.xlu0 %v2267, 120
    %v2282 = vpop.permute.xlu0 %2281
    %2283 = vrot.lane.b32.xlu0 %v2270, 120
    %v2284 = vpop.permute.xlu0 %2283
    %2285 = vrot.lane.b32.xlu0 %v2273, 120
    %v2286 = vpop.permute.xlu0 %2285
    %2287 = vrot.lane.b32.xlu0 %v2264, 112
    %v2288 = vpop.permute.xlu0 %2287
    %2289 = vrot.lane.b32.xlu0 %v2267, 112
    %v2290 = vpop.permute.xlu0 %2289
    %2291 = vrot.lane.b32.xlu0 %v2270, 112
    %v2292 = vpop.permute.xlu0 %2291
    %2293 = vrot.lane.b32.xlu0 %v2273, 112
    %v2294 = vpop.permute.xlu0 %2293
    %2295 = vrot.lane.b32.xlu0 %v2264, 104
    %v2296 = vpop.permute.xlu0 %2295
    %2297 = vrot.lane.b32.xlu0 %v2267, 104
    %v2298 = vpop.permute.xlu0 %2297
    %2299 = vrot.lane.b32.xlu0 %v2270, 104
    %v2300 = vpop.permute.xlu0 %2299
    %2301 = vrot.lane.b32.xlu0 %v2273, 104
    %v2302 = vpop.permute.xlu0 %2301
    %2303 = vrot.lane.b32.xlu0 %v2264, 96
    %v2304 = vpop.permute.xlu0 %2303
    %v2305 = vsel %vm453, %v2264, 0
    %v2307 = vsel %vm453, %v2304, 0
    %2309 = vmatpush.xpose.msra.mxu0 0.0
    %2310 = vmatpush.xpose.msra.mxu0 0.0
    %2311 = vmatpush.xpose.msra.mxu0 0.0
    %2312 = vmatpush.xpose.msra.mxu0 0.0
    %2313 = vmatpush.xpose.msra.mxu0 0.0
    %2314 = vmatpush.xpose.msra.mxu0 0.0
    %2315 = vmatpush.xpose.msra.mxu0 0.0
    %2316 = vmatpush.xpose.msra.mxu0 0.0
    %2317 = vmatpush.xpose.msra.mxu0 0.0
    %2318 = vmatpush.xpose.msra.mxu0 0.0
    %2319 = vmatpush.xpose.msra.mxu0 0.0
    %2320 = vmatpush.xpose.msra.mxu0 0.0
    %2321 = vmatpush.xpose.msra.mxu0 0.0
    %2322 = vmatpush.xpose.msra.mxu0 0.0
    %2323 = vmatpush.xpose.msra.mxu0 0.0
    %2324 = vmatpush.xpose.msra.mxu0 %v2307
    %2325 = vmatmul.f32.gmra.mxu0 %v2305
    %v2326 = vpop.f32.mrf.mxu0
    %v2327 = vadd.f32 0.0, %v2326
    %2328 = vdwg.mxu0
    %2329 = vrot.lane.b32.xlu0 %v2267, 96
    %v2330 = vpop.permute.xlu0 %2329
    %v2331 = vsel %vm453, %v2267, 0
    %v2333 = vsel %vm453, %v2330, 0
    %2335 = vmatpush.xpose.msra.mxu0 0.0
    %2336 = vmatpush.xpose.msra.mxu0 0.0
    %2337 = vmatpush.xpose.msra.mxu0 0.0
    %2338 = vmatpush.xpose.msra.mxu0 0.0
    %2339 = vmatpush.xpose.msra.mxu0 0.0
    %2340 = vmatpush.xpose.msra.mxu0 0.0
    %2341 = vmatpush.xpose.msra.mxu0 0.0
    %2342 = vmatpush.xpose.msra.mxu0 0.0
    %2343 = vmatpush.xpose.msra.mxu0 0.0
    %2344 = vmatpush.xpose.msra.mxu0 0.0
    %2345 = vmatpush.xpose.msra.mxu0 0.0
    %2346 = vmatpush.xpose.msra.mxu0 0.0
    %2347 = vmatpush.xpose.msra.mxu0 0.0
    %2348 = vmatpush.xpose.msra.mxu0 0.0
    %2349 = vmatpush.xpose.msra.mxu0 0.0
    %2350 = vmatpush.xpose.msra.mxu0 %v2333
    %2351 = vmatmul.f32.gmra.mxu0 %v2331
    %v2352 = vpop.f32.mrf.mxu0
    %v2353 = vadd.f32 0.0, %v2352
    %2354 = vdwg.mxu0
    %2355 = vrot.lane.b32.xlu0 %v2270, 96
    %v2356 = vpop.permute.xlu0 %2355
    %v2357 = vsel %vm453, %v2270, 0
    %v2359 = vsel %vm453, %v2356, 0
    %2361 = vmatpush.xpose.msra.mxu0 0.0
    %2362 = vmatpush.xpose.msra.mxu0 0.0
    %2363 = vmatpush.xpose.msra.mxu0 0.0
    %2364 = vmatpush.xpose.msra.mxu0 0.0
    %2365 = vmatpush.xpose.msra.mxu0 0.0
    %2366 = vmatpush.xpose.msra.mxu0 0.0
    %2367 = vmatpush.xpose.msra.mxu0 0.0
    %2368 = vmatpush.xpose.msra.mxu0 0.0
    %2369 = vmatpush.xpose.msra.mxu0 0.0
    %2370 = vmatpush.xpose.msra.mxu0 0.0
    %2371 = vmatpush.xpose.msra.mxu0 0.0
    %2372 = vmatpush.xpose.msra.mxu0 0.0
    %2373 = vmatpush.xpose.msra.mxu0 0.0
    %2374 = vmatpush.xpose.msra.mxu0 0.0
    %2375 = vmatpush.xpose.msra.mxu0 0.0
    %2376 = vmatpush.xpose.msra.mxu0 %v2359
    %2377 = vmatmul.f32.gmra.mxu0 %v2357
    %v2378 = vpop.f32.mrf.mxu0
    %v2379 = vadd.f32 0.0, %v2378
    %2380 = vdwg.mxu0
    %2381 = vrot.lane.b32.xlu0 %v2273, 96
    %v2382 = vpop.permute.xlu0 %2381
    %v2383 = vsel %vm453, %v2273, 0
    %v2385 = vsel %vm453, %v2382, 0
    %2387 = vmatpush.xpose.msra.mxu0 0.0
    %2388 = vmatpush.xpose.msra.mxu0 0.0
    %2389 = vmatpush.xpose.msra.mxu0 0.0
    %2390 = vmatpush.xpose.msra.mxu0 0.0
    %2391 = vmatpush.xpose.msra.mxu0 0.0
    %2392 = vmatpush.xpose.msra.mxu0 0.0
    %2393 = vmatpush.xpose.msra.mxu0 0.0
    %2394 = vmatpush.xpose.msra.mxu0 0.0
    %2395 = vmatpush.xpose.msra.mxu0 0.0
    %2396 = vmatpush.xpose.msra.mxu0 0.0
    %2397 = vmatpush.xpose.msra.mxu0 0.0
    %2398 = vmatpush.xpose.msra.mxu0 0.0
    %2399 = vmatpush.xpose.msra.mxu0 0.0
    %2400 = vmatpush.xpose.msra.mxu0 0.0
    %2401 = vmatpush.xpose.msra.mxu0 0.0
    %2402 = vmatpush.xpose.msra.mxu0 %v2385
    %2403 = vmatmul.f32.gmra.mxu0 %v2383
    %v2404 = vpop.f32.mrf.mxu0
    %v2405 = vadd.f32 0.0, %v2404
    %2406 = vdwg.mxu0
    %2407 = vrot.lane.b32.xlu0 %v2280, 96
    %v2408 = vpop.permute.xlu0 %2407
    %v2409 = vsel %vm453, %v2280, 0
    %v2411 = vsel %vm453, %v2408, 0
    %2413 = vmatpush.xpose.msra.mxu0 0.0
    %2414 = vmatpush.xpose.msra.mxu0 0.0
    %2415 = vmatpush.xpose.msra.mxu0 0.0
    %2416 = vmatpush.xpose.msra.mxu0 0.0
    %2417 = vmatpush.xpose.msra.mxu0 0.0
    %2418 = vmatpush.xpose.msra.mxu0 0.0
    %2419 = vmatpush.xpose.msra.mxu0 0.0
    %2420 = vmatpush.xpose.msra.mxu0 0.0
    %2421 = vmatpush.xpose.msra.mxu0 0.0
    %2422 = vmatpush.xpose.msra.mxu0 0.0
    %2423 = vmatpush.xpose.msra.mxu0 0.0
    %2424 = vmatpush.xpose.msra.mxu0 0.0
    %2425 = vmatpush.xpose.msra.mxu0 0.0
    %2426 = vmatpush.xpose.msra.mxu0 0.0
    %2427 = vmatpush.xpose.msra.mxu0 0.0
    %2428 = vmatpush.xpose.msra.mxu0 %v2411
    %2429 = vmatmul.f32.gmra.mxu0 %v2409
    %v2430 = vpop.f32.mrf.mxu0
    %v2431 = vadd.f32 0.0, %v2430
    %2432 = vdwg.mxu0
    %2433 = vrot.lane.b32.xlu0 %v2282, 96
    %v2434 = vpop.permute.xlu0 %2433
    %v2435 = vsel %vm453, %v2282, 0
    %v2437 = vsel %vm453, %v2434, 0
    %2439 = vmatpush.xpose.msra.mxu0 0.0
    %2440 = vmatpush.xpose.msra.mxu0 0.0
    %2441 = vmatpush.xpose.msra.mxu0 0.0
    %2442 = vmatpush.xpose.msra.mxu0 0.0
    %2443 = vmatpush.xpose.msra.mxu0 0.0
    %2444 = vmatpush.xpose.msra.mxu0 0.0
    %2445 = vmatpush.xpose.msra.mxu0 0.0
    %2446 = vmatpush.xpose.msra.mxu0 0.0
    %2447 = vmatpush.xpose.msra.mxu0 0.0
    %2448 = vmatpush.xpose.msra.mxu0 0.0
    %2449 = vmatpush.xpose.msra.mxu0 0.0
    %2450 = vmatpush.xpose.msra.mxu0 0.0
    %2451 = vmatpush.xpose.msra.mxu0 0.0
    %2452 = vmatpush.xpose.msra.mxu0 0.0
    %2453 = vmatpush.xpose.msra.mxu0 0.0
    %2454 = vmatpush.xpose.msra.mxu0 %v2437
    %2455 = vmatmul.f32.gmra.mxu0 %v2435
    %v2456 = vpop.f32.mrf.mxu0
    %v2457 = vadd.f32 0.0, %v2456
    %2458 = vdwg.mxu0
    %2459 = vrot.lane.b32.xlu0 %v2284, 96
    %v2460 = vpop.permute.xlu0 %2459
    %v2461 = vsel %vm453, %v2284, 0
    %v2463 = vsel %vm453, %v2460, 0
    %2465 = vmatpush.xpose.msra.mxu0 0.0
    %2466 = vmatpush.xpose.msra.mxu0 0.0
    %2467 = vmatpush.xpose.msra.mxu0 0.0
    %2468 = vmatpush.xpose.msra.mxu0 0.0
    %2469 = vmatpush.xpose.msra.mxu0 0.0
    %2470 = vmatpush.xpose.msra.mxu0 0.0
    %2471 = vmatpush.xpose.msra.mxu0 0.0
    %2472 = vmatpush.xpose.msra.mxu0 0.0
    %2473 = vmatpush.xpose.msra.mxu0 0.0
    %2474 = vmatpush.xpose.msra.mxu0 0.0
    %2475 = vmatpush.xpose.msra.mxu0 0.0
    %2476 = vmatpush.xpose.msra.mxu0 0.0
    %2477 = vmatpush.xpose.msra.mxu0 0.0
    %2478 = vmatpush.xpose.msra.mxu0 0.0
    %2479 = vmatpush.xpose.msra.mxu0 0.0
    %2480 = vmatpush.xpose.msra.mxu0 %v2463
    %2481 = vmatmul.f32.gmra.mxu0 %v2461
    %v2482 = vpop.f32.mrf.mxu0
    %v2483 = vadd.f32 0.0, %v2482
    %2484 = vdwg.mxu0
    %2485 = vrot.lane.b32.xlu0 %v2286, 96
    %v2486 = vpop.permute.xlu0 %2485
    %v2487 = vsel %vm453, %v2286, 0
    %v2489 = vsel %vm453, %v2486, 0
    %2491 = vmatpush.xpose.msra.mxu0 0.0
    %2492 = vmatpush.xpose.msra.mxu0 0.0
    %2493 = vmatpush.xpose.msra.mxu0 0.0
    %2494 = vmatpush.xpose.msra.mxu0 0.0
    %2495 = vmatpush.xpose.msra.mxu0 0.0
    %2496 = vmatpush.xpose.msra.mxu0 0.0
    %2497 = vmatpush.xpose.msra.mxu0 0.0
    %2498 = vmatpush.xpose.msra.mxu0 0.0
    %2499 = vmatpush.xpose.msra.mxu0 0.0
    %2500 = vmatpush.xpose.msra.mxu0 0.0
    %2501 = vmatpush.xpose.msra.mxu0 0.0
    %2502 = vmatpush.xpose.msra.mxu0 0.0
    %2503 = vmatpush.xpose.msra.mxu0 0.0
    %2504 = vmatpush.xpose.msra.mxu0 0.0
    %2505 = vmatpush.xpose.msra.mxu0 0.0
    %2506 = vmatpush.xpose.msra.mxu0 %v2489
    %2507 = vmatmul.f32.gmra.mxu0 %v2487
    %v2508 = vpop.f32.mrf.mxu0
    %v2509 = vadd.f32 0.0, %v2508
    %2510 = vdwg.mxu0
    %2511 = vrot.lane.b32.xlu0 %v2288, 96
    %v2512 = vpop.permute.xlu0 %2511
    %v2513 = vsel %vm453, %v2288, 0
    %v2515 = vsel %vm453, %v2512, 0
    %2517 = vmatpush.xpose.msra.mxu0 0.0
    %2518 = vmatpush.xpose.msra.mxu0 0.0
    %2519 = vmatpush.xpose.msra.mxu0 0.0
    %2520 = vmatpush.xpose.msra.mxu0 0.0
    %2521 = vmatpush.xpose.msra.mxu0 0.0
    %2522 = vmatpush.xpose.msra.mxu0 0.0
    %2523 = vmatpush.xpose.msra.mxu0 0.0
    %2524 = vmatpush.xpose.msra.mxu0 0.0
    %2525 = vmatpush.xpose.msra.mxu0 0.0
    %2526 = vmatpush.xpose.msra.mxu0 0.0
    %2527 = vmatpush.xpose.msra.mxu0 0.0
    %2528 = vmatpush.xpose.msra.mxu0 0.0
    %2529 = vmatpush.xpose.msra.mxu0 0.0
    %2530 = vmatpush.xpose.msra.mxu0 0.0
    %2531 = vmatpush.xpose.msra.mxu0 0.0
    %2532 = vmatpush.xpose.msra.mxu0 %v2515
    %2533 = vmatmul.f32.gmra.mxu0 %v2513
    %v2534 = vpop.f32.mrf.mxu0
    %v2535 = vadd.f32 0.0, %v2534
    %2536 = vdwg.mxu0
    %2537 = vrot.lane.b32.xlu0 %v2290, 96
    %v2538 = vpop.permute.xlu0 %2537
    %v2539 = vsel %vm453, %v2290, 0
    %v2541 = vsel %vm453, %v2538, 0
    %2543 = vmatpush.xpose.msra.mxu0 0.0
    %2544 = vmatpush.xpose.msra.mxu0 0.0
    %2545 = vmatpush.xpose.msra.mxu0 0.0
    %2546 = vmatpush.xpose.msra.mxu0 0.0
    %2547 = vmatpush.xpose.msra.mxu0 0.0
    %2548 = vmatpush.xpose.msra.mxu0 0.0
    %2549 = vmatpush.xpose.msra.mxu0 0.0
    %2550 = vmatpush.xpose.msra.mxu0 0.0
    %2551 = vmatpush.xpose.msra.mxu0 0.0
    %2552 = vmatpush.xpose.msra.mxu0 0.0
    %2553 = vmatpush.xpose.msra.mxu0 0.0
    %2554 = vmatpush.xpose.msra.mxu0 0.0
    %2555 = vmatpush.xpose.msra.mxu0 0.0
    %2556 = vmatpush.xpose.msra.mxu0 0.0
    %2557 = vmatpush.xpose.msra.mxu0 0.0
    %2558 = vmatpush.xpose.msra.mxu0 %v2541
    %2559 = vmatmul.f32.gmra.mxu0 %v2539
    %v2560 = vpop.f32.mrf.mxu0
    %v2561 = vadd.f32 0.0, %v2560
    %2562 = vdwg.mxu0
    %2563 = vrot.lane.b32.xlu0 %v2292, 96
    %v2564 = vpop.permute.xlu0 %2563
    %v2565 = vsel %vm453, %v2292, 0
    %v2567 = vsel %vm453, %v2564, 0
    %2569 = vmatpush.xpose.msra.mxu0 0.0
    %2570 = vmatpush.xpose.msra.mxu0 0.0
    %2571 = vmatpush.xpose.msra.mxu0 0.0
    %2572 = vmatpush.xpose.msra.mxu0 0.0
    %2573 = vmatpush.xpose.msra.mxu0 0.0
    %2574 = vmatpush.xpose.msra.mxu0 0.0
    %2575 = vmatpush.xpose.msra.mxu0 0.0
    %2576 = vmatpush.xpose.msra.mxu0 0.0
    %2577 = vmatpush.xpose.msra.mxu0 0.0
    %2578 = vmatpush.xpose.msra.mxu0 0.0
    %2579 = vmatpush.xpose.msra.mxu0 0.0
    %2580 = vmatpush.xpose.msra.mxu0 0.0
    %2581 = vmatpush.xpose.msra.mxu0 0.0
    %2582 = vmatpush.xpose.msra.mxu0 0.0
    %2583 = vmatpush.xpose.msra.mxu0 0.0
    %2584 = vmatpush.xpose.msra.mxu0 %v2567
    %2585 = vmatmul.f32.gmra.mxu0 %v2565
    %v2586 = vpop.f32.mrf.mxu0
    %v2587 = vadd.f32 0.0, %v2586
    %2588 = vdwg.mxu0
    %2589 = vrot.lane.b32.xlu0 %v2294, 96
    %v2590 = vpop.permute.xlu0 %2589
    %v2591 = vsel %vm453, %v2294, 0
    %v2593 = vsel %vm453, %v2590, 0
    %2595 = vmatpush.xpose.msra.mxu0 0.0
    %2596 = vmatpush.xpose.msra.mxu0 0.0
    %2597 = vmatpush.xpose.msra.mxu0 0.0
    %2598 = vmatpush.xpose.msra.mxu0 0.0
    %2599 = vmatpush.xpose.msra.mxu0 0.0
    %2600 = vmatpush.xpose.msra.mxu0 0.0
    %2601 = vmatpush.xpose.msra.mxu0 0.0
    %2602 = vmatpush.xpose.msra.mxu0 0.0
    %2603 = vmatpush.xpose.msra.mxu0 0.0
    %2604 = vmatpush.xpose.msra.mxu0 0.0
    %2605 = vmatpush.xpose.msra.mxu0 0.0
    %2606 = vmatpush.xpose.msra.mxu0 0.0
    %2607 = vmatpush.xpose.msra.mxu0 0.0
    %2608 = vmatpush.xpose.msra.mxu0 0.0
    %2609 = vmatpush.xpose.msra.mxu0 0.0
    %2610 = vmatpush.xpose.msra.mxu0 %v2593
    %2611 = vmatmul.f32.gmra.mxu0 %v2591
    %v2612 = vpop.f32.mrf.mxu0
    %v2613 = vadd.f32 0.0, %v2612
    %2614 = vdwg.mxu0
    %2615 = vrot.lane.b32.xlu0 %v2296, 96
    %v2616 = vpop.permute.xlu0 %2615
    %v2617 = vsel %vm453, %v2296, 0
    %v2619 = vsel %vm453, %v2616, 0
    %2621 = vmatpush.xpose.msra.mxu0 0.0
    %2622 = vmatpush.xpose.msra.mxu0 0.0
    %2623 = vmatpush.xpose.msra.mxu0 0.0
    %2624 = vmatpush.xpose.msra.mxu0 0.0
    %2625 = vmatpush.xpose.msra.mxu0 0.0
    %2626 = vmatpush.xpose.msra.mxu0 0.0
    %2627 = vmatpush.xpose.msra.mxu0 0.0
    %2628 = vmatpush.xpose.msra.mxu0 0.0
    %2629 = vmatpush.xpose.msra.mxu0 0.0
    %2630 = vmatpush.xpose.msra.mxu0 0.0
    %2631 = vmatpush.xpose.msra.mxu0 0.0
    %2632 = vmatpush.xpose.msra.mxu0 0.0
    %2633 = vmatpush.xpose.msra.mxu0 0.0
    %2634 = vmatpush.xpose.msra.mxu0 0.0
    %2635 = vmatpush.xpose.msra.mxu0 0.0
    %2636 = vmatpush.xpose.msra.mxu0 %v2619
    %2637 = vmatmul.f32.gmra.mxu0 %v2617
    %v2638 = vpop.f32.mrf.mxu0
    %v2639 = vadd.f32 0.0, %v2638
    %2640 = vdwg.mxu0
    %2641 = vrot.lane.b32.xlu0 %v2298, 96
    %v2642 = vpop.permute.xlu0 %2641
    %v2643 = vsel %vm453, %v2298, 0
    %v2645 = vsel %vm453, %v2642, 0
    %2647 = vmatpush.xpose.msra.mxu0 0.0
    %2648 = vmatpush.xpose.msra.mxu0 0.0
    %2649 = vmatpush.xpose.msra.mxu0 0.0
    %2650 = vmatpush.xpose.msra.mxu0 0.0
    %2651 = vmatpush.xpose.msra.mxu0 0.0
    %2652 = vmatpush.xpose.msra.mxu0 0.0
    %2653 = vmatpush.xpose.msra.mxu0 0.0
    %2654 = vmatpush.xpose.msra.mxu0 0.0
    %2655 = vmatpush.xpose.msra.mxu0 0.0
    %2656 = vmatpush.xpose.msra.mxu0 0.0
    %2657 = vmatpush.xpose.msra.mxu0 0.0
    %2658 = vmatpush.xpose.msra.mxu0 0.0
    %2659 = vmatpush.xpose.msra.mxu0 0.0
    %2660 = vmatpush.xpose.msra.mxu0 0.0
    %2661 = vmatpush.xpose.msra.mxu0 0.0
    %2662 = vmatpush.xpose.msra.mxu0 %v2645
    %2663 = vmatmul.f32.gmra.mxu0 %v2643
    %v2664 = vpop.f32.mrf.mxu0
    %v2665 = vadd.f32 0.0, %v2664
    %2666 = vdwg.mxu0
    %2667 = vrot.lane.b32.xlu0 %v2300, 96
    %v2668 = vpop.permute.xlu0 %2667
    %v2669 = vsel %vm453, %v2300, 0
    %v2671 = vsel %vm453, %v2668, 0
    %2673 = vmatpush.xpose.msra.mxu0 0.0
    %2674 = vmatpush.xpose.msra.mxu0 0.0
    %2675 = vmatpush.xpose.msra.mxu0 0.0
    %2676 = vmatpush.xpose.msra.mxu0 0.0
    %2677 = vmatpush.xpose.msra.mxu0 0.0
    %2678 = vmatpush.xpose.msra.mxu0 0.0
    %2679 = vmatpush.xpose.msra.mxu0 0.0
    %2680 = vmatpush.xpose.msra.mxu0 0.0
    %2681 = vmatpush.xpose.msra.mxu0 0.0
    %2682 = vmatpush.xpose.msra.mxu0 0.0
    %2683 = vmatpush.xpose.msra.mxu0 0.0
    %2684 = vmatpush.xpose.msra.mxu0 0.0
    %2685 = vmatpush.xpose.msra.mxu0 0.0
    %2686 = vmatpush.xpose.msra.mxu0 0.0
    %2687 = vmatpush.xpose.msra.mxu0 0.0
    %2688 = vmatpush.xpose.msra.mxu0 %v2671
    %2689 = vmatmul.f32.gmra.mxu0 %v2669
    %v2690 = vpop.f32.mrf.mxu0
    %v2691 = vadd.f32 0.0, %v2690
    %2692 = vdwg.mxu0
    %2693 = vrot.lane.b32.xlu0 %v2302, 96
    %v2694 = vpop.permute.xlu0 %2693
    %v2695 = vsel %vm453, %v2302, 0
    %v2697 = vsel %vm453, %v2694, 0
    %2699 = vmatpush.xpose.msra.mxu0 0.0
    %2700 = vmatpush.xpose.msra.mxu0 0.0
    %2701 = vmatpush.xpose.msra.mxu0 0.0
    %2702 = vmatpush.xpose.msra.mxu0 0.0
    %2703 = vmatpush.xpose.msra.mxu0 0.0
    %2704 = vmatpush.xpose.msra.mxu0 0.0
    %2705 = vmatpush.xpose.msra.mxu0 0.0
    %2706 = vmatpush.xpose.msra.mxu0 0.0
    %2707 = vmatpush.xpose.msra.mxu0 0.0
    %2708 = vmatpush.xpose.msra.mxu0 0.0
    %2709 = vmatpush.xpose.msra.mxu0 0.0
    %2710 = vmatpush.xpose.msra.mxu0 0.0
    %2711 = vmatpush.xpose.msra.mxu0 0.0
    %2712 = vmatpush.xpose.msra.mxu0 0.0
    %2713 = vmatpush.xpose.msra.mxu0 0.0
    %2714 = vmatpush.xpose.msra.mxu0 %v2697
    %2715 = vmatmul.f32.gmra.mxu0 %v2695
    %v2716 = vpop.f32.mrf.mxu0
    %v2717 = vadd.f32 0.0, %v2716
    %2718 = vdwg.mxu0
    %v2719 = vmul.f32 %v2327, 0.35355338
    %v2720 = vmul.f32 %v2353, 0.35355338
    %v2721 = vmul.f32 %v2379, 0.35355338
    %v2722 = vmul.f32 %v2405, 0.35355338
    %v2723 = vmul.f32 %v2431, 0.35355338
    %v2724 = vmul.f32 %v2457, 0.35355338
    %v2725 = vmul.f32 %v2483, 0.35355338
    %v2726 = vmul.f32 %v2509, 0.35355338
    %v2727 = vmul.f32 %v2535, 0.35355338
    %v2728 = vmul.f32 %v2561, 0.35355338
    %v2729 = vmul.f32 %v2587, 0.35355338
    %v2730 = vmul.f32 %v2613, 0.35355338
    %v2731 = vmul.f32 %v2639, 0.35355338
    %v2732 = vmul.f32 %v2665, 0.35355338
    %v2733 = vmul.f32 %v2691, 0.35355338
    %v2734 = vmul.f32 %v2717, 0.35355338
    %v2735 = vadd.f32 %v2719, %v305
    %v2736 = vadd.f32 %v2720, %v306
    %v2737 = vadd.f32 %v2721, %v307
    %v2738 = vadd.f32 %v2722, %v308
    %v2739 = vadd.f32 %v2723, %v305
    %v2740 = vadd.f32 %v2724, %v306
    %v2741 = vadd.f32 %v2725, %v307
    %v2742 = vadd.f32 %v2726, %v308
    %v2743 = vadd.f32 %v2727, %v305
    %v2744 = vadd.f32 %v2728, %v306
    %v2745 = vadd.f32 %v2729, %v307
    %v2746 = vadd.f32 %v2730, %v308
    %v2747 = vadd.f32 %v2731, %v305
    %v2748 = vadd.f32 %v2732, %v306
    %v2749 = vadd.f32 %v2733, %v307
    %v2750 = vadd.f32 %v2734, %v308
    %v2751 = vsel %vm453, %v2735, -inf
    %2752 = vmax.xlane.f32.xlu0 %v2751
    %v2753 = vpop.xlane.xlu0 %2752
    %v2754 = vsel %vm453, %v2736, -inf
    %2755 = vmax.xlane.f32.xlu0 %v2754
    %v2756 = vpop.xlane.xlu0 %2755
    %v2757 = vsel %vm453, %v2737, -inf
    %2758 = vmax.xlane.f32.xlu0 %v2757
    %v2759 = vpop.xlane.xlu0 %2758
    %v2760 = vsel %vm453, %v2738, -inf
    %2761 = vmax.xlane.f32.xlu0 %v2760
    %v2762 = vpop.xlane.xlu0 %2761
    %v2763 = vsel %vm453, %v2739, -inf
    %2764 = vmax.xlane.f32.xlu0 %v2763
    %v2765 = vpop.xlane.xlu0 %2764
    %v2766 = vsel %vm453, %v2740, -inf
    %2767 = vmax.xlane.f32.xlu0 %v2766
    %v2768 = vpop.xlane.xlu0 %2767
    %v2769 = vsel %vm453, %v2741, -inf
    %2770 = vmax.xlane.f32.xlu0 %v2769
    %v2771 = vpop.xlane.xlu0 %2770
    %v2772 = vsel %vm453, %v2742, -inf
    %2773 = vmax.xlane.f32.xlu0 %v2772
    %v2774 = vpop.xlane.xlu0 %2773
    %v2775 = vsel %vm453, %v2743, -inf
    %2776 = vmax.xlane.f32.xlu0 %v2775
    %v2777 = vpop.xlane.xlu0 %2776
    %v2778 = vsel %vm453, %v2744, -inf
    %2779 = vmax.xlane.f32.xlu0 %v2778
    %v2780 = vpop.xlane.xlu0 %2779
    %v2781 = vsel %vm453, %v2745, -inf
    %2782 = vmax.xlane.f32.xlu0 %v2781
    %v2783 = vpop.xlane.xlu0 %2782
    %v2784 = vsel %vm453, %v2746, -inf
    %2785 = vmax.xlane.f32.xlu0 %v2784
    %v2786 = vpop.xlane.xlu0 %2785
    %v2787 = vsel %vm453, %v2747, -inf
    %2788 = vmax.xlane.f32.xlu0 %v2787
    %v2789 = vpop.xlane.xlu0 %2788
    %v2790 = vsel %vm453, %v2748, -inf
    %2791 = vmax.xlane.f32.xlu0 %v2790
    %v2792 = vpop.xlane.xlu0 %2791
    %v2793 = vsel %vm453, %v2749, -inf
    %2794 = vmax.xlane.f32.xlu0 %v2793
    %v2795 = vpop.xlane.xlu0 %2794
    %v2796 = vsel %vm453, %v2750, -inf
    %2797 = vmax.xlane.f32.xlu0 %v2796
    %v2798 = vpop.xlane.xlu0 %2797
    %v2799 = vsub.f32 %v2735, %v2753
    %v2800 = vsub.f32 %v2736, %v2756
    %v2801 = vsub.f32 %v2737, %v2759
    %v2802 = vsub.f32 %v2738, %v2762
    %v2803 = vsub.f32 %v2739, %v2765
    %v2804 = vsub.f32 %v2740, %v2768
    %v2805 = vsub.f32 %v2741, %v2771
    %v2806 = vsub.f32 %v2742, %v2774
    %v2807 = vsub.f32 %v2743, %v2777
    %v2808 = vsub.f32 %v2744, %v2780
    %v2809 = vsub.f32 %v2745, %v2783
    %v2810 = vsub.f32 %v2746, %v2786
    %v2811 = vsub.f32 %v2747, %v2789
    %v2812 = vsub.f32 %v2748, %v2792
    %v2813 = vsub.f32 %v2749, %v2795
    %v2814 = vsub.f32 %v2750, %v2798
    %v2815 = vmul.f32 %v2799, 1.442695
    %v2816 = vpow.pop %v2815
    %v2817 = vmul.f32 %v2800, 1.442695
    %v2818 = vpow.pop %v2817
    %v2819 = vmul.f32 %v2801, 1.442695
    %v2820 = vpow.pop %v2819
    %v2821 = vmul.f32 %v2802, 1.442695
    %v2822 = vpow.pop %v2821
    %v2823 = vmul.f32 %v2803, 1.442695
    %v2824 = vpow.pop %v2823
    %v2825 = vmul.f32 %v2804, 1.442695
    %v2826 = vpow.pop %v2825
    %v2827 = vmul.f32 %v2805, 1.442695
    %v2828 = vpow.pop %v2827
    %v2829 = vmul.f32 %v2806, 1.442695
    %v2830 = vpow.pop %v2829
    %v2831 = vmul.f32 %v2807, 1.442695
    %v2832 = vpow.pop %v2831
    %v2833 = vmul.f32 %v2808, 1.442695
    %v2834 = vpow.pop %v2833
    %v2835 = vmul.f32 %v2809, 1.442695
    %v2836 = vpow.pop %v2835
    %v2837 = vmul.f32 %v2810, 1.442695
    %v2838 = vpow.pop %v2837
    %v2839 = vmul.f32 %v2811, 1.442695
    %v2840 = vpow.pop %v2839
    %v2841 = vmul.f32 %v2812, 1.442695
    %v2842 = vpow.pop %v2841
    %v2843 = vmul.f32 %v2813, 1.442695
    %v2844 = vpow.pop %v2843
    %v2845 = vmul.f32 %v2814, 1.442695
    %v2846 = vpow.pop %v2845
    %v2847 = vsel %vm453, %v2816, 0.0
    %2848 = vadd.xlane.f32.xlu0 %v2847
    %v2849 = vpop.xlane.xlu0 %2848
    %v2850 = vsel %vm453, %v2818, 0.0
    %2851 = vadd.xlane.f32.xlu0 %v2850
    %v2852 = vpop.xlane.xlu0 %2851
    %v2853 = vsel %vm453, %v2820, 0.0
    %2854 = vadd.xlane.f32.xlu0 %v2853
    %v2855 = vpop.xlane.xlu0 %2854
    %v2856 = vsel %vm453, %v2822, 0.0
    %2857 = vadd.xlane.f32.xlu0 %v2856
    %v2858 = vpop.xlane.xlu0 %2857
    %v2859 = vsel %vm453, %v2824, 0.0
    %2860 = vadd.xlane.f32.xlu0 %v2859
    %v2861 = vpop.xlane.xlu0 %2860
    %v2862 = vsel %vm453, %v2826, 0.0
    %2863 = vadd.xlane.f32.xlu0 %v2862
    %v2864 = vpop.xlane.xlu0 %2863
    %v2865 = vsel %vm453, %v2828, 0.0
    %2866 = vadd.xlane.f32.xlu0 %v2865
    %v2867 = vpop.xlane.xlu0 %2866
    %v2868 = vsel %vm453, %v2830, 0.0
    %2869 = vadd.xlane.f32.xlu0 %v2868
    %v2870 = vpop.xlane.xlu0 %2869
    %v2871 = vsel %vm453, %v2832, 0.0
    %2872 = vadd.xlane.f32.xlu0 %v2871
    %v2873 = vpop.xlane.xlu0 %2872
    %v2874 = vsel %vm453, %v2834, 0.0
    %2875 = vadd.xlane.f32.xlu0 %v2874
    %v2876 = vpop.xlane.xlu0 %2875
    %v2877 = vsel %vm453, %v2836, 0.0
    %2878 = vadd.xlane.f32.xlu0 %v2877
    %v2879 = vpop.xlane.xlu0 %2878
    %v2880 = vsel %vm453, %v2838, 0.0
    %2881 = vadd.xlane.f32.xlu0 %v2880
    %v2882 = vpop.xlane.xlu0 %2881
    %v2883 = vsel %vm453, %v2840, 0.0
    %2884 = vadd.xlane.f32.xlu0 %v2883
    %v2885 = vpop.xlane.xlu0 %2884
    %v2886 = vsel %vm453, %v2842, 0.0
    %2887 = vadd.xlane.f32.xlu0 %v2886
    %v2888 = vpop.xlane.xlu0 %2887
    %v2889 = vsel %vm453, %v2844, 0.0
    %2890 = vadd.xlane.f32.xlu0 %v2889
    %v2891 = vpop.xlane.xlu0 %2890
    %v2892 = vsel %vm453, %v2846, 0.0
    %2893 = vadd.xlane.f32.xlu0 %v2892
    %v2894 = vpop.xlane.xlu0 %2893
    %v2895 = vrcp.pop %v2849
    %v2896 = vmul.f32 %v2849, %v2895
    %v2897 = vsub.f32 1.0, %v2896
    %v2898 = vmul.f32 %v2895, %v2897
    %v2899 = vadd.f32 %v2895, %v2898
    %vm2900 = vweird.f32 %v2849
    %vm2901 = vweird.f32 %v2895
    %vm2902 = vmor %vm2900, %vm2901
    %v2903 = vsel %vm2902, %v2895, %v2899
    %v2904 = vand.u32 2147483647, %v2849
    %vm2905 = vcmp.eq.f32.partialorder %v2904, 8.507059e+37
    %v2906 = vand.u32 %v2849, 2147483648
    %v2907 = vor.u32 1.1754944e-38, %v2906
    %v2908 = vsel %vm2905, %v2907, %v2903
    %v2909 = vmul.f32 %v2816, %v2908
    %v2910 = vrcp.pop %v2852
    %v2911 = vmul.f32 %v2852, %v2910
    %v2912 = vsub.f32 1.0, %v2911
    %v2913 = vmul.f32 %v2910, %v2912
    %v2914 = vadd.f32 %v2910, %v2913
    %vm2915 = vweird.f32 %v2852
    %vm2916 = vweird.f32 %v2910
    %vm2917 = vmor %vm2915, %vm2916
    %v2918 = vsel %vm2917, %v2910, %v2914
    %v2919 = vand.u32 2147483647, %v2852
    %vm2920 = vcmp.eq.f32.partialorder %v2919, 8.507059e+37
    %v2921 = vand.u32 %v2852, 2147483648
    %v2922 = vor.u32 1.1754944e-38, %v2921
    %v2923 = vsel %vm2920, %v2922, %v2918
    %v2924 = vmul.f32 %v2818, %v2923
    %v2925 = vrcp.pop %v2855
    %v2926 = vmul.f32 %v2855, %v2925
    %v2927 = vsub.f32 1.0, %v2926
    %v2928 = vmul.f32 %v2925, %v2927
    %v2929 = vadd.f32 %v2925, %v2928
    %vm2930 = vweird.f32 %v2855
    %vm2931 = vweird.f32 %v2925
    %vm2932 = vmor %vm2930, %vm2931
    %v2933 = vsel %vm2932, %v2925, %v2929
    %v2934 = vand.u32 2147483647, %v2855
    %vm2935 = vcmp.eq.f32.partialorder %v2934, 8.507059e+37
    %v2936 = vand.u32 %v2855, 2147483648
    %v2937 = vor.u32 1.1754944e-38, %v2936
    %v2938 = vsel %vm2935, %v2937, %v2933
    %v2939 = vmul.f32 %v2820, %v2938
    %v2940 = vrcp.pop %v2858
    %v2941 = vmul.f32 %v2858, %v2940
    %v2942 = vsub.f32 1.0, %v2941
    %v2943 = vmul.f32 %v2940, %v2942
    %v2944 = vadd.f32 %v2940, %v2943
    %vm2945 = vweird.f32 %v2858
    %vm2946 = vweird.f32 %v2940
    %vm2947 = vmor %vm2945, %vm2946
    %v2948 = vsel %vm2947, %v2940, %v2944
    %v2949 = vand.u32 2147483647, %v2858
    %vm2950 = vcmp.eq.f32.partialorder %v2949, 8.507059e+37
    %v2951 = vand.u32 %v2858, 2147483648
    %v2952 = vor.u32 1.1754944e-38, %v2951
    %v2953 = vsel %vm2950, %v2952, %v2948
    %v2954 = vmul.f32 %v2822, %v2953
    %v2955 = vrcp.pop %v2861
    %v2956 = vmul.f32 %v2861, %v2955
    %v2957 = vsub.f32 1.0, %v2956
    %v2958 = vmul.f32 %v2955, %v2957
    %v2959 = vadd.f32 %v2955, %v2958
    %vm2960 = vweird.f32 %v2861
    %vm2961 = vweird.f32 %v2955
    %vm2962 = vmor %vm2960, %vm2961
    %v2963 = vsel %vm2962, %v2955, %v2959
    %v2964 = vand.u32 2147483647, %v2861
    %vm2965 = vcmp.eq.f32.partialorder %v2964, 8.507059e+37
    %v2966 = vand.u32 %v2861, 2147483648
    %v2967 = vor.u32 1.1754944e-38, %v2966
    %v2968 = vsel %vm2965, %v2967, %v2963
    %v2969 = vmul.f32 %v2824, %v2968
    %v2970 = vrcp.pop %v2864
    %v2971 = vmul.f32 %v2864, %v2970
    %v2972 = vsub.f32 1.0, %v2971
    %v2973 = vmul.f32 %v2970, %v2972
    %v2974 = vadd.f32 %v2970, %v2973
    %vm2975 = vweird.f32 %v2864
    %vm2976 = vweird.f32 %v2970
    %vm2977 = vmor %vm2975, %vm2976
    %v2978 = vsel %vm2977, %v2970, %v2974
    %v2979 = vand.u32 2147483647, %v2864
    %vm2980 = vcmp.eq.f32.partialorder %v2979, 8.507059e+37
    %v2981 = vand.u32 %v2864, 2147483648
    %v2982 = vor.u32 1.1754944e-38, %v2981
    %v2983 = vsel %vm2980, %v2982, %v2978
    %v2984 = vmul.f32 %v2826, %v2983
    %v2985 = vrcp.pop %v2867
    %v2986 = vmul.f32 %v2867, %v2985
    %v2987 = vsub.f32 1.0, %v2986
    %v2988 = vmul.f32 %v2985, %v2987
    %v2989 = vadd.f32 %v2985, %v2988
    %vm2990 = vweird.f32 %v2867
    %vm2991 = vweird.f32 %v2985
    %vm2992 = vmor %vm2990, %vm2991
    %v2993 = vsel %vm2992, %v2985, %v2989
    %v2994 = vand.u32 2147483647, %v2867
    %vm2995 = vcmp.eq.f32.partialorder %v2994, 8.507059e+37
    %v2996 = vand.u32 %v2867, 2147483648
    %v2997 = vor.u32 1.1754944e-38, %v2996
    %v2998 = vsel %vm2995, %v2997, %v2993
    %v2999 = vmul.f32 %v2828, %v2998
    %v3000 = vrcp.pop %v2870
    %v3001 = vmul.f32 %v2870, %v3000
    %v3002 = vsub.f32 1.0, %v3001
    %v3003 = vmul.f32 %v3000, %v3002
    %v3004 = vadd.f32 %v3000, %v3003
    %vm3005 = vweird.f32 %v2870
    %vm3006 = vweird.f32 %v3000
    %vm3007 = vmor %vm3005, %vm3006
    %v3008 = vsel %vm3007, %v3000, %v3004
    %v3009 = vand.u32 2147483647, %v2870
    %vm3010 = vcmp.eq.f32.partialorder %v3009, 8.507059e+37
    %v3011 = vand.u32 %v2870, 2147483648
    %v3012 = vor.u32 1.1754944e-38, %v3011
    %v3013 = vsel %vm3010, %v3012, %v3008
    %v3014 = vmul.f32 %v2830, %v3013
    %v3015 = vrcp.pop %v2873
    %v3016 = vmul.f32 %v2873, %v3015
    %v3017 = vsub.f32 1.0, %v3016
    %v3018 = vmul.f32 %v3015, %v3017
    %v3019 = vadd.f32 %v3015, %v3018
    %vm3020 = vweird.f32 %v2873
    %vm3021 = vweird.f32 %v3015
    %vm3022 = vmor %vm3020, %vm3021
    %v3023 = vsel %vm3022, %v3015, %v3019
    %v3024 = vand.u32 2147483647, %v2873
    %vm3025 = vcmp.eq.f32.partialorder %v3024, 8.507059e+37
    %v3026 = vand.u32 %v2873, 2147483648
    %v3027 = vor.u32 1.1754944e-38, %v3026
    %v3028 = vsel %vm3025, %v3027, %v3023
    %v3029 = vmul.f32 %v2832, %v3028
    %v3030 = vrcp.pop %v2876
    %v3031 = vmul.f32 %v2876, %v3030
    %v3032 = vsub.f32 1.0, %v3031
    %v3033 = vmul.f32 %v3030, %v3032
    %v3034 = vadd.f32 %v3030, %v3033
    %vm3035 = vweird.f32 %v2876
    %vm3036 = vweird.f32 %v3030
    %vm3037 = vmor %vm3035, %vm3036
    %v3038 = vsel %vm3037, %v3030, %v3034
    %v3039 = vand.u32 2147483647, %v2876
    %vm3040 = vcmp.eq.f32.partialorder %v3039, 8.507059e+37
    %v3041 = vand.u32 %v2876, 2147483648
    %v3042 = vor.u32 1.1754944e-38, %v3041
    %v3043 = vsel %vm3040, %v3042, %v3038
    %v3044 = vmul.f32 %v2834, %v3043
    %v3045 = vrcp.pop %v2879
    %v3046 = vmul.f32 %v2879, %v3045
    %v3047 = vsub.f32 1.0, %v3046
    %v3048 = vmul.f32 %v3045, %v3047
    %v3049 = vadd.f32 %v3045, %v3048
    %vm3050 = vweird.f32 %v2879
    %vm3051 = vweird.f32 %v3045
    %vm3052 = vmor %vm3050, %vm3051
    %v3053 = vsel %vm3052, %v3045, %v3049
    %v3054 = vand.u32 2147483647, %v2879
    %vm3055 = vcmp.eq.f32.partialorder %v3054, 8.507059e+37
    %v3056 = vand.u32 %v2879, 2147483648
    %v3057 = vor.u32 1.1754944e-38, %v3056
    %v3058 = vsel %vm3055, %v3057, %v3053
    %v3059 = vmul.f32 %v2836, %v3058
    %v3060 = vrcp.pop %v2882
    %v3061 = vmul.f32 %v2882, %v3060
    %v3062 = vsub.f32 1.0, %v3061
    %v3063 = vmul.f32 %v3060, %v3062
    %v3064 = vadd.f32 %v3060, %v3063
    %vm3065 = vweird.f32 %v2882
    %vm3066 = vweird.f32 %v3060
    %vm3067 = vmor %vm3065, %vm3066
    %v3068 = vsel %vm3067, %v3060, %v3064
    %v3069 = vand.u32 2147483647, %v2882
    %vm3070 = vcmp.eq.f32.partialorder %v3069, 8.507059e+37
    %v3071 = vand.u32 %v2882, 2147483648
    %v3072 = vor.u32 1.1754944e-38, %v3071
    %v3073 = vsel %vm3070, %v3072, %v3068
    %v3074 = vmul.f32 %v2838, %v3073
    %v3075 = vrcp.pop %v2885
    %v3076 = vmul.f32 %v2885, %v3075
    %v3077 = vsub.f32 1.0, %v3076
    %v3078 = vmul.f32 %v3075, %v3077
    %v3079 = vadd.f32 %v3075, %v3078
    %vm3080 = vweird.f32 %v2885
    %vm3081 = vweird.f32 %v3075
    %vm3082 = vmor %vm3080, %vm3081
    %v3083 = vsel %vm3082, %v3075, %v3079
    %v3084 = vand.u32 2147483647, %v2885
    %vm3085 = vcmp.eq.f32.partialorder %v3084, 8.507059e+37
    %v3086 = vand.u32 %v2885, 2147483648
    %v3087 = vor.u32 1.1754944e-38, %v3086
    %v3088 = vsel %vm3085, %v3087, %v3083
    %v3089 = vmul.f32 %v2840, %v3088
    %v3090 = vrcp.pop %v2888
    %v3091 = vmul.f32 %v2888, %v3090
    %v3092 = vsub.f32 1.0, %v3091
    %v3093 = vmul.f32 %v3090, %v3092
    %v3094 = vadd.f32 %v3090, %v3093
    %vm3095 = vweird.f32 %v2888
    %vm3096 = vweird.f32 %v3090
    %vm3097 = vmor %vm3095, %vm3096
    %v3098 = vsel %vm3097, %v3090, %v3094
    %v3099 = vand.u32 2147483647, %v2888
    %vm3100 = vcmp.eq.f32.partialorder %v3099, 8.507059e+37
    %v3101 = vand.u32 %v2888, 2147483648
    %v3102 = vor.u32 1.1754944e-38, %v3101
    %v3103 = vsel %vm3100, %v3102, %v3098
    %v3104 = vmul.f32 %v2842, %v3103
    %v3105 = vrcp.pop %v2891
    %v3106 = vmul.f32 %v2891, %v3105
    %v3107 = vsub.f32 1.0, %v3106
    %v3108 = vmul.f32 %v3105, %v3107
    %v3109 = vadd.f32 %v3105, %v3108
    %vm3110 = vweird.f32 %v2891
    %vm3111 = vweird.f32 %v3105
    %vm3112 = vmor %vm3110, %vm3111
    %v3113 = vsel %vm3112, %v3105, %v3109
    %v3114 = vand.u32 2147483647, %v2891
    %vm3115 = vcmp.eq.f32.partialorder %v3114, 8.507059e+37
    %v3116 = vand.u32 %v2891, 2147483648
    %v3117 = vor.u32 1.1754944e-38, %v3116
    %v3118 = vsel %vm3115, %v3117, %v3113
    %v3119 = vmul.f32 %v2844, %v3118
    %v3120 = vrcp.pop %v2894
    %v3121 = vmul.f32 %v2894, %v3120
    %v3122 = vsub.f32 1.0, %v3121
    %v3123 = vmul.f32 %v3120, %v3122
    %v3124 = vadd.f32 %v3120, %v3123
    %vm3125 = vweird.f32 %v2894
    %vm3126 = vweird.f32 %v3120
    %vm3127 = vmor %vm3125, %vm3126
    %v3128 = vsel %vm3127, %v3120, %v3124
    %v3129 = vand.u32 2147483647, %v2894
    %vm3130 = vcmp.eq.f32.partialorder %v3129, 8.507059e+37
    %v3131 = vand.u32 %v2894, 2147483648
    %v3132 = vor.u32 1.1754944e-38, %v3131
    %v3133 = vsel %vm3130, %v3132, %v3128
    %v3134 = vmul.f32 %v2846, %v3133
    %3135 = vrot.lane.b32.xlu0 %v2264, 64
    %v3136 = vpop.permute.xlu0 %3135
    %v3139 = vsel %vm453, %v2909, 0
    %3141 = vmatpush.msra.mxu0 0.0
    %3142 = vmatpush.msra.mxu0 0.0
    %3143 = vmatpush.msra.mxu0 0.0
    %3144 = vmatpush.msra.mxu0 0.0
    %3145 = vmatpush.msra.mxu0 0.0
    %3146 = vmatpush.msra.mxu0 0.0
    %3147 = vmatpush.msra.mxu0 0.0
    %3148 = vmatpush.msra.mxu0 0.0
    %3149 = vmatpush.msra.mxu0 0.0
    %3150 = vmatpush.msra.mxu0 0.0
    %3151 = vmatpush.msra.mxu0 0.0
    %3152 = vmatpush.msra.mxu0 0.0
    %3153 = vmatpush.msra.mxu0 0.0
    %3154 = vmatpush.msra.mxu0 0.0
    %3155 = vmatpush.msra.mxu0 0.0
    %3156 = vmatpush.msra.mxu0 %v3136
    %3157 = vmatmul.f32.gmra.mxu0 %v3139
    %v3158 = vpop.f32.mrf.mxu0
    %v3159 = vadd.f32 0.0, %v3158
    %3160 = vdwg.mxu0
    %3161 = vrot.lane.b32.xlu0 %v2267, 64
    %v3162 = vpop.permute.xlu0 %3161
    %v3165 = vsel %vm453, %v2924, 0
    %3167 = vmatpush.msra.mxu0 0.0
    %3168 = vmatpush.msra.mxu0 0.0
    %3169 = vmatpush.msra.mxu0 0.0
    %3170 = vmatpush.msra.mxu0 0.0
    %3171 = vmatpush.msra.mxu0 0.0
    %3172 = vmatpush.msra.mxu0 0.0
    %3173 = vmatpush.msra.mxu0 0.0
    %3174 = vmatpush.msra.mxu0 0.0
    %3175 = vmatpush.msra.mxu0 0.0
    %3176 = vmatpush.msra.mxu0 0.0
    %3177 = vmatpush.msra.mxu0 0.0
    %3178 = vmatpush.msra.mxu0 0.0
    %3179 = vmatpush.msra.mxu0 0.0
    %3180 = vmatpush.msra.mxu0 0.0
    %3181 = vmatpush.msra.mxu0 0.0
    %3182 = vmatpush.msra.mxu0 %v3162
    %3183 = vmatmul.f32.gmra.mxu0 %v3165
    %v3184 = vpop.f32.mrf.mxu0
    %v3185 = vadd.f32 0.0, %v3184
    %3186 = vdwg.mxu0
    %3187 = vrot.lane.b32.xlu0 %v2270, 64
    %v3188 = vpop.permute.xlu0 %3187
    %v3191 = vsel %vm453, %v2939, 0
    %3193 = vmatpush.msra.mxu0 0.0
    %3194 = vmatpush.msra.mxu0 0.0
    %3195 = vmatpush.msra.mxu0 0.0
    %3196 = vmatpush.msra.mxu0 0.0
    %3197 = vmatpush.msra.mxu0 0.0
    %3198 = vmatpush.msra.mxu0 0.0
    %3199 = vmatpush.msra.mxu0 0.0
    %3200 = vmatpush.msra.mxu0 0.0
    %3201 = vmatpush.msra.mxu0 0.0
    %3202 = vmatpush.msra.mxu0 0.0
    %3203 = vmatpush.msra.mxu0 0.0
    %3204 = vmatpush.msra.mxu0 0.0
    %3205 = vmatpush.msra.mxu0 0.0
    %3206 = vmatpush.msra.mxu0 0.0
    %3207 = vmatpush.msra.mxu0 0.0
    %3208 = vmatpush.msra.mxu0 %v3188
    %3209 = vmatmul.f32.gmra.mxu0 %v3191
    %v3210 = vpop.f32.mrf.mxu0
    %v3211 = vadd.f32 0.0, %v3210
    %3212 = vdwg.mxu0
    %3213 = vrot.lane.b32.xlu0 %v2273, 64
    %v3214 = vpop.permute.xlu0 %3213
    %v3217 = vsel %vm453, %v2954, 0
    %3219 = vmatpush.msra.mxu0 0.0
    %3220 = vmatpush.msra.mxu0 0.0
    %3221 = vmatpush.msra.mxu0 0.0
    %3222 = vmatpush.msra.mxu0 0.0
    %3223 = vmatpush.msra.mxu0 0.0
    %3224 = vmatpush.msra.mxu0 0.0
    %3225 = vmatpush.msra.mxu0 0.0
    %3226 = vmatpush.msra.mxu0 0.0
    %3227 = vmatpush.msra.mxu0 0.0
    %3228 = vmatpush.msra.mxu0 0.0
    %3229 = vmatpush.msra.mxu0 0.0
    %3230 = vmatpush.msra.mxu0 0.0
    %3231 = vmatpush.msra.mxu0 0.0
    %3232 = vmatpush.msra.mxu0 0.0
    %3233 = vmatpush.msra.mxu0 0.0
    %3234 = vmatpush.msra.mxu0 %v3214
    %3235 = vmatmul.f32.gmra.mxu0 %v3217
    %v3236 = vpop.f32.mrf.mxu0
    %v3237 = vadd.f32 0.0, %v3236
    %3238 = vdwg.mxu0
    %3239 = vrot.lane.b32.xlu0 %v2280, 64
    %v3240 = vpop.permute.xlu0 %3239
    %v3243 = vsel %vm453, %v2969, 0
    %3245 = vmatpush.msra.mxu0 0.0
    %3246 = vmatpush.msra.mxu0 0.0
    %3247 = vmatpush.msra.mxu0 0.0
    %3248 = vmatpush.msra.mxu0 0.0
    %3249 = vmatpush.msra.mxu0 0.0
    %3250 = vmatpush.msra.mxu0 0.0
    %3251 = vmatpush.msra.mxu0 0.0
    %3252 = vmatpush.msra.mxu0 0.0
    %3253 = vmatpush.msra.mxu0 0.0
    %3254 = vmatpush.msra.mxu0 0.0
    %3255 = vmatpush.msra.mxu0 0.0
    %3256 = vmatpush.msra.mxu0 0.0
    %3257 = vmatpush.msra.mxu0 0.0
    %3258 = vmatpush.msra.mxu0 0.0
    %3259 = vmatpush.msra.mxu0 0.0
    %3260 = vmatpush.msra.mxu0 %v3240
    %3261 = vmatmul.f32.gmra.mxu0 %v3243
    %v3262 = vpop.f32.mrf.mxu0
    %v3263 = vadd.f32 0.0, %v3262
    %3264 = vdwg.mxu0
    %3265 = vrot.lane.b32.xlu0 %v2282, 64
    %v3266 = vpop.permute.xlu0 %3265
    %v3269 = vsel %vm453, %v2984, 0
    %3271 = vmatpush.msra.mxu0 0.0
    %3272 = vmatpush.msra.mxu0 0.0
    %3273 = vmatpush.msra.mxu0 0.0
    %3274 = vmatpush.msra.mxu0 0.0
    %3275 = vmatpush.msra.mxu0 0.0
    %3276 = vmatpush.msra.mxu0 0.0
    %3277 = vmatpush.msra.mxu0 0.0
    %3278 = vmatpush.msra.mxu0 0.0
    %3279 = vmatpush.msra.mxu0 0.0
    %3280 = vmatpush.msra.mxu0 0.0
    %3281 = vmatpush.msra.mxu0 0.0
    %3282 = vmatpush.msra.mxu0 0.0
    %3283 = vmatpush.msra.mxu0 0.0
    %3284 = vmatpush.msra.mxu0 0.0
    %3285 = vmatpush.msra.mxu0 0.0
    %3286 = vmatpush.msra.mxu0 %v3266
    %3287 = vmatmul.f32.gmra.mxu0 %v3269
    %v3288 = vpop.f32.mrf.mxu0
    %v3289 = vadd.f32 0.0, %v3288
    %3290 = vdwg.mxu0
    %3291 = vrot.lane.b32.xlu0 %v2284, 64
    %v3292 = vpop.permute.xlu0 %3291
    %v3295 = vsel %vm453, %v2999, 0
    %3297 = vmatpush.msra.mxu0 0.0
    %3298 = vmatpush.msra.mxu0 0.0
    %3299 = vmatpush.msra.mxu0 0.0
    %3300 = vmatpush.msra.mxu0 0.0
    %3301 = vmatpush.msra.mxu0 0.0
    %3302 = vmatpush.msra.mxu0 0.0
    %3303 = vmatpush.msra.mxu0 0.0
    %3304 = vmatpush.msra.mxu0 0.0
    %3305 = vmatpush.msra.mxu0 0.0
    %3306 = vmatpush.msra.mxu0 0.0
    %3307 = vmatpush.msra.mxu0 0.0
    %3308 = vmatpush.msra.mxu0 0.0
    %3309 = vmatpush.msra.mxu0 0.0
    %3310 = vmatpush.msra.mxu0 0.0
    %3311 = vmatpush.msra.mxu0 0.0
    %3312 = vmatpush.msra.mxu0 %v3292
    %3313 = vmatmul.f32.gmra.mxu0 %v3295
    %v3314 = vpop.f32.mrf.mxu0
    %v3315 = vadd.f32 0.0, %v3314
    %3316 = vdwg.mxu0
    %3317 = vrot.lane.b32.xlu0 %v2286, 64
    %v3318 = vpop.permute.xlu0 %3317
    %v3321 = vsel %vm453, %v3014, 0
    %3323 = vmatpush.msra.mxu0 0.0
    %3324 = vmatpush.msra.mxu0 0.0
    %3325 = vmatpush.msra.mxu0 0.0
    %3326 = vmatpush.msra.mxu0 0.0
    %3327 = vmatpush.msra.mxu0 0.0
    %3328 = vmatpush.msra.mxu0 0.0
    %3329 = vmatpush.msra.mxu0 0.0
    %3330 = vmatpush.msra.mxu0 0.0
    %3331 = vmatpush.msra.mxu0 0.0
    %3332 = vmatpush.msra.mxu0 0.0
    %3333 = vmatpush.msra.mxu0 0.0
    %3334 = vmatpush.msra.mxu0 0.0
    %3335 = vmatpush.msra.mxu0 0.0
    %3336 = vmatpush.msra.mxu0 0.0
    %3337 = vmatpush.msra.mxu0 0.0
    %3338 = vmatpush.msra.mxu0 %v3318
    %3339 = vmatmul.f32.gmra.mxu0 %v3321
    %v3340 = vpop.f32.mrf.mxu0
    %v3341 = vadd.f32 0.0, %v3340
    %3342 = vdwg.mxu0
    %3343 = vrot.lane.b32.xlu0 %v2288, 64
    %v3344 = vpop.permute.xlu0 %3343
    %v3347 = vsel %vm453, %v3029, 0
    %3349 = vmatpush.msra.mxu0 0.0
    %3350 = vmatpush.msra.mxu0 0.0
    %3351 = vmatpush.msra.mxu0 0.0
    %3352 = vmatpush.msra.mxu0 0.0
    %3353 = vmatpush.msra.mxu0 0.0
    %3354 = vmatpush.msra.mxu0 0.0
    %3355 = vmatpush.msra.mxu0 0.0
    %3356 = vmatpush.msra.mxu0 0.0
    %3357 = vmatpush.msra.mxu0 0.0
    %3358 = vmatpush.msra.mxu0 0.0
    %3359 = vmatpush.msra.mxu0 0.0
    %3360 = vmatpush.msra.mxu0 0.0
    %3361 = vmatpush.msra.mxu0 0.0
    %3362 = vmatpush.msra.mxu0 0.0
    %3363 = vmatpush.msra.mxu0 0.0
    %3364 = vmatpush.msra.mxu0 %v3344
    %3365 = vmatmul.f32.gmra.mxu0 %v3347
    %v3366 = vpop.f32.mrf.mxu0
    %v3367 = vadd.f32 0.0, %v3366
    %3368 = vdwg.mxu0
    %3369 = vrot.lane.b32.xlu0 %v2290, 64
    %v3370 = vpop.permute.xlu0 %3369
    %v3373 = vsel %vm453, %v3044, 0
    %3375 = vmatpush.msra.mxu0 0.0
    %3376 = vmatpush.msra.mxu0 0.0
    %3377 = vmatpush.msra.mxu0 0.0
    %3378 = vmatpush.msra.mxu0 0.0
    %3379 = vmatpush.msra.mxu0 0.0
    %3380 = vmatpush.msra.mxu0 0.0
    %3381 = vmatpush.msra.mxu0 0.0
    %3382 = vmatpush.msra.mxu0 0.0
    %3383 = vmatpush.msra.mxu0 0.0
    %3384 = vmatpush.msra.mxu0 0.0
    %3385 = vmatpush.msra.mxu0 0.0
    %3386 = vmatpush.msra.mxu0 0.0
    %3387 = vmatpush.msra.mxu0 0.0
    %3388 = vmatpush.msra.mxu0 0.0
    %3389 = vmatpush.msra.mxu0 0.0
    %3390 = vmatpush.msra.mxu0 %v3370
    %3391 = vmatmul.f32.gmra.mxu0 %v3373
    %v3392 = vpop.f32.mrf.mxu0
    %v3393 = vadd.f32 0.0, %v3392
    %3394 = vdwg.mxu0
    %3395 = vrot.lane.b32.xlu0 %v2292, 64
    %v3396 = vpop.permute.xlu0 %3395
    %v3399 = vsel %vm453, %v3059, 0
    %3401 = vmatpush.msra.mxu0 0.0
    %3402 = vmatpush.msra.mxu0 0.0
    %3403 = vmatpush.msra.mxu0 0.0
    %3404 = vmatpush.msra.mxu0 0.0
    %3405 = vmatpush.msra.mxu0 0.0
    %3406 = vmatpush.msra.mxu0 0.0
    %3407 = vmatpush.msra.mxu0 0.0
    %3408 = vmatpush.msra.mxu0 0.0
    %3409 = vmatpush.msra.mxu0 0.0
    %3410 = vmatpush.msra.mxu0 0.0
    %3411 = vmatpush.msra.mxu0 0.0
    %3412 = vmatpush.msra.mxu0 0.0
    %3413 = vmatpush.msra.mxu0 0.0
    %3414 = vmatpush.msra.mxu0 0.0
    %3415 = vmatpush.msra.mxu0 0.0
    %3416 = vmatpush.msra.mxu0 %v3396
    %3417 = vmatmul.f32.gmra.mxu0 %v3399
    %v3418 = vpop.f32.mrf.mxu0
    %v3419 = vadd.f32 0.0, %v3418
    %3420 = vdwg.mxu0
    %3421 = vrot.lane.b32.xlu0 %v2294, 64
    %v3422 = vpop.permute.xlu0 %3421
    %v3425 = vsel %vm453, %v3074, 0
    %3427 = vmatpush.msra.mxu0 0.0
    %3428 = vmatpush.msra.mxu0 0.0
    %3429 = vmatpush.msra.mxu0 0.0
    %3430 = vmatpush.msra.mxu0 0.0
    %3431 = vmatpush.msra.mxu0 0.0
    %3432 = vmatpush.msra.mxu0 0.0
    %3433 = vmatpush.msra.mxu0 0.0
    %3434 = vmatpush.msra.mxu0 0.0
    %3435 = vmatpush.msra.mxu0 0.0
    %3436 = vmatpush.msra.mxu0 0.0
    %3437 = vmatpush.msra.mxu0 0.0
    %3438 = vmatpush.msra.mxu0 0.0
    %3439 = vmatpush.msra.mxu0 0.0
    %3440 = vmatpush.msra.mxu0 0.0
    %3441 = vmatpush.msra.mxu0 0.0
    %3442 = vmatpush.msra.mxu0 %v3422
    %3443 = vmatmul.f32.gmra.mxu0 %v3425
    %v3444 = vpop.f32.mrf.mxu0
    %v3445 = vadd.f32 0.0, %v3444
    %3446 = vdwg.mxu0
    %3447 = vrot.lane.b32.xlu0 %v2296, 64
    %v3448 = vpop.permute.xlu0 %3447
    %v3451 = vsel %vm453, %v3089, 0
    %3453 = vmatpush.msra.mxu0 0.0
    %3454 = vmatpush.msra.mxu0 0.0
    %3455 = vmatpush.msra.mxu0 0.0
    %3456 = vmatpush.msra.mxu0 0.0
    %3457 = vmatpush.msra.mxu0 0.0
    %3458 = vmatpush.msra.mxu0 0.0
    %3459 = vmatpush.msra.mxu0 0.0
    %3460 = vmatpush.msra.mxu0 0.0
    %3461 = vmatpush.msra.mxu0 0.0
    %3462 = vmatpush.msra.mxu0 0.0
    %3463 = vmatpush.msra.mxu0 0.0
    %3464 = vmatpush.msra.mxu0 0.0
    %3465 = vmatpush.msra.mxu0 0.0
    %3466 = vmatpush.msra.mxu0 0.0
    %3467 = vmatpush.msra.mxu0 0.0
    %3468 = vmatpush.msra.mxu0 %v3448
    %3469 = vmatmul.f32.gmra.mxu0 %v3451
    %v3470 = vpop.f32.mrf.mxu0
    %v3471 = vadd.f32 0.0, %v3470
    %3472 = vdwg.mxu0
    %3473 = vrot.lane.b32.xlu0 %v2298, 64
    %v3474 = vpop.permute.xlu0 %3473
    %v3477 = vsel %vm453, %v3104, 0
    %3479 = vmatpush.msra.mxu0 0.0
    %3480 = vmatpush.msra.mxu0 0.0
    %3481 = vmatpush.msra.mxu0 0.0
    %3482 = vmatpush.msra.mxu0 0.0
    %3483 = vmatpush.msra.mxu0 0.0
    %3484 = vmatpush.msra.mxu0 0.0
    %3485 = vmatpush.msra.mxu0 0.0
    %3486 = vmatpush.msra.mxu0 0.0
    %3487 = vmatpush.msra.mxu0 0.0
    %3488 = vmatpush.msra.mxu0 0.0
    %3489 = vmatpush.msra.mxu0 0.0
    %3490 = vmatpush.msra.mxu0 0.0
    %3491 = vmatpush.msra.mxu0 0.0
    %3492 = vmatpush.msra.mxu0 0.0
    %3493 = vmatpush.msra.mxu0 0.0
    %3494 = vmatpush.msra.mxu0 %v3474
    %3495 = vmatmul.f32.gmra.mxu0 %v3477
    %v3496 = vpop.f32.mrf.mxu0
    %v3497 = vadd.f32 0.0, %v3496
    %3498 = vdwg.mxu0
    %3499 = vrot.lane.b32.xlu0 %v2300, 64
    %v3500 = vpop.permute.xlu0 %3499
    %v3503 = vsel %vm453, %v3119, 0
    %3505 = vmatpush.msra.mxu0 0.0
    %3506 = vmatpush.msra.mxu0 0.0
    %3507 = vmatpush.msra.mxu0 0.0
    %3508 = vmatpush.msra.mxu0 0.0
    %3509 = vmatpush.msra.mxu0 0.0
    %3510 = vmatpush.msra.mxu0 0.0
    %3511 = vmatpush.msra.mxu0 0.0
    %3512 = vmatpush.msra.mxu0 0.0
    %3513 = vmatpush.msra.mxu0 0.0
    %3514 = vmatpush.msra.mxu0 0.0
    %3515 = vmatpush.msra.mxu0 0.0
    %3516 = vmatpush.msra.mxu0 0.0
    %3517 = vmatpush.msra.mxu0 0.0
    %3518 = vmatpush.msra.mxu0 0.0
    %3519 = vmatpush.msra.mxu0 0.0
    %3520 = vmatpush.msra.mxu0 %v3500
    %3521 = vmatmul.f32.gmra.mxu0 %v3503
    %v3522 = vpop.f32.mrf.mxu0
    %v3523 = vadd.f32 0.0, %v3522
    %3524 = vdwg.mxu0
    %3525 = vrot.lane.b32.xlu0 %v2302, 64
    %v3526 = vpop.permute.xlu0 %3525
    %v3529 = vsel %vm453, %v3134, 0
    %3531 = vmatpush.msra.mxu0 0.0
    %3532 = vmatpush.msra.mxu0 0.0
    %3533 = vmatpush.msra.mxu0 0.0
    %3534 = vmatpush.msra.mxu0 0.0
    %3535 = vmatpush.msra.mxu0 0.0
    %3536 = vmatpush.msra.mxu0 0.0
    %3537 = vmatpush.msra.mxu0 0.0
    %3538 = vmatpush.msra.mxu0 0.0
    %3539 = vmatpush.msra.mxu0 0.0
    %3540 = vmatpush.msra.mxu0 0.0
    %3541 = vmatpush.msra.mxu0 0.0
    %3542 = vmatpush.msra.mxu0 0.0
    %3543 = vmatpush.msra.mxu0 0.0
    %3544 = vmatpush.msra.mxu0 0.0
    %3545 = vmatpush.msra.mxu0 0.0
    %3546 = vmatpush.msra.mxu0 %v3526
    %3547 = vmatmul.f32.gmra.mxu0 %v3529
    %v3548 = vpop.f32.mrf.mxu0
    %v3549 = vadd.f32 0.0, %v3548
    %3550 = vdwg.mxu0
    %3555 = vrot.lane.b32.xlu0 %v3263, 8
    %v3556 = vpop.permute.xlu0 %3555
    %3557 = vrot.lane.b32.xlu0 %v3289, 8
    %v3558 = vpop.permute.xlu0 %3557
    %3559 = vrot.lane.b32.xlu0 %v3315, 8
    %v3560 = vpop.permute.xlu0 %3559
    %3561 = vrot.lane.b32.xlu0 %v3341, 8
    %v3562 = vpop.permute.xlu0 %3561
    %3571 = vrot.lane.b32.xlu0 %v3367, 16
    %v3572 = vpop.permute.xlu0 %3571
    %3573 = vrot.lane.b32.xlu0 %v3393, 16
    %v3574 = vpop.permute.xlu0 %3573
    %3575 = vrot.lane.b32.xlu0 %v3419, 16
    %v3576 = vpop.permute.xlu0 %3575
    %3577 = vrot.lane.b32.xlu0 %v3445, 16
    %v3578 = vpop.permute.xlu0 %3577
    %3587 = vrot.lane.b32.xlu0 %v3471, 24
    %v3588 = vpop.permute.xlu0 %3587
    %3589 = vrot.lane.b32.xlu0 %v3497, 24
    %v3590 = vpop.permute.xlu0 %3589
    %3591 = vrot.lane.b32.xlu0 %v3523, 24
    %v3592 = vpop.permute.xlu0 %3591
    %3593 = vrot.lane.b32.xlu0 %v3549, 24
    %v3594 = vpop.permute.xlu0 %3593
    %v3599 = vsel %vm453, %v3159, %v3556
    %v3600 = vsel %vm453, %v3185, %v3558
    %v3601 = vsel %vm453, %v3211, %v3560
    %v3602 = vsel %vm453, %v3237, %v3562
    %v3603 = vsel %vm1752, %v3599, %v3572
    %v3604 = vsel %vm1752, %v3600, %v3574
    %v3605 = vsel %vm1752, %v3601, %v3576
    %v3606 = vsel %vm1752, %v3602, %v3578
    %v3607 = vsel %vm1757, %v3603, %v3588
    %v3608 = vsel %vm1757, %v3604, %v3590
    %v3609 = vsel %vm1757, %v3605, %v3592
    %v3610 = vsel %vm1757, %v3606, %v3594
    %v3611 = vperm.slane %v25, 3
    %v3613 = vsel %vm192, %v3607, 0
    %v3616 = vsel %vm192, %v3608, 0
    %v3619 = vsel %vm192, %v3609, 0
    %v3622 = vsel %vm192, %v3610, 0
    %v3625 = vsel %vm192, %v2177, 0
    %v3628 = vsel %vm192, %v2178, 0
    %v3631 = vsel %vm192, %v2179, 0
    %v3634 = vsel %vm192, %v2180, 0
    %3636 = vmatpush.xpose.msra.mxu0 0.0
    %3637 = vmatpush.xpose.msra.mxu0 0.0
    %3638 = vmatpush.xpose.msra.mxu0 0.0
    %3639 = vmatpush.xpose.msra.mxu0 0.0
    %3640 = vmatpush.xpose.msra.mxu0 0.0
    %3641 = vmatpush.xpose.msra.mxu0 0.0
    %3642 = vmatpush.xpose.msra.mxu0 0.0
    %3643 = vmatpush.xpose.msra.mxu0 0.0
    %3644 = vmatpush.xpose.msra.mxu0 0.0
    %3645 = vmatpush.xpose.msra.mxu0 0.0
    %3646 = vmatpush.xpose.msra.mxu0 0.0
    %3647 = vmatpush.xpose.msra.mxu0 0.0
    %3648 = vmatpush.xpose.msra.mxu0 %v3634
    %3649 = vmatpush.xpose.msra.mxu0 %v3631
    %3650 = vmatpush.xpose.msra.mxu0 %v3628
    %3651 = vmatpush.xpose.msra.mxu0 %v3625
    %3652 = vmatmul.f32.gmra.mxu0 %v3613
    %v3653 = vpop.f32.mrf.mxu0
    %v3654 = vadd.f32 %v3611, %v3653
    %3655 = vmatmul.f32.gmra.mxu0 %v3616
    %v3656 = vpop.f32.mrf.mxu0
    %v3657 = vadd.f32 %v3611, %v3656
    %3658 = vmatmul.f32.gmra.mxu0 %v3619
    %v3659 = vpop.f32.mrf.mxu0
    %v3660 = vadd.f32 %v3611, %v3659
    %3661 = vmatmul.f32.gmra.mxu0 %v3622
    %v3662 = vpop.f32.mrf.mxu0
    %v3663 = vadd.f32 %v3611, %v3662
    %3664 = vdwg.mxu0
    %v3665 = vadd.f32 %v2160, %v3654
    %v3666 = vadd.f32 %v2161, %v3657
    %v3667 = vadd.f32 %v2162, %v3660
    %v3668 = vadd.f32 %v2163, %v3663
    %v3669 = vsel %vm192, %v3665, 0.0
    %3670 = vadd.xlane.f32.xlu0 %v3669
    %v3671 = vpop.xlane.xlu0 %3670
    %v3672 = vsel %vm192, %v3666, 0.0
    %3673 = vadd.xlane.f32.xlu0 %v3672
    %v3674 = vpop.xlane.xlu0 %3673
    %v3675 = vsel %vm192, %v3667, 0.0
    %3676 = vadd.xlane.f32.xlu0 %v3675
    %v3677 = vpop.xlane.xlu0 %3676
    %v3678 = vsel %vm192, %v3668, 0.0
    %3679 = vadd.xlane.f32.xlu0 %v3678
    %v3680 = vpop.xlane.xlu0 %3679
    %v3681 = vmul.f32 %v3671, %v211
    %v3682 = vmul.f32 %v3674, %v211
    %v3683 = vmul.f32 %v3677, %v211
    %v3684 = vmul.f32 %v3680, %v211
    %v3685 = vsub.f32 %v3665, %v3681
    %v3686 = vsub.f32 %v3666, %v3682
    %v3687 = vsub.f32 %v3667, %v3683
    %v3688 = vsub.f32 %v3668, %v3684
    %v3689 = vmul.f32 %v3685, %v3685
    %v3690 = vmul.f32 %v3686, %v3686
    %v3691 = vmul.f32 %v3687, %v3687
    %v3692 = vmul.f32 %v3688, %v3688
    %v3693 = vsel %vm192, %v3689, 0.0
    %3694 = vadd.xlane.f32.xlu0 %v3693
    %v3695 = vpop.xlane.xlu0 %3694
    %v3696 = vsel %vm192, %v3690, 0.0
    %3697 = vadd.xlane.f32.xlu0 %v3696
    %v3698 = vpop.xlane.xlu0 %3697
    %v3699 = vsel %vm192, %v3691, 0.0
    %3700 = vadd.xlane.f32.xlu0 %v3699
    %v3701 = vpop.xlane.xlu0 %3700
    %v3702 = vsel %vm192, %v3692, 0.0
    %3703 = vadd.xlane.f32.xlu0 %v3702
    %v3704 = vpop.xlane.xlu0 %3703
    %v3705 = vmul.f32 %v3695, %v211
    %v3706 = vmul.f32 %v3698, %v211
    %v3707 = vmul.f32 %v3701, %v211
    %v3708 = vmul.f32 %v3704, %v211
    %v3709 = vadd.f32 %v3705, 1e-05
    %v3710 = vadd.f32 %v3706, 1e-05
    %v3711 = vadd.f32 %v3707, 1e-05
    %v3712 = vadd.f32 %v3708, 1e-05
    %v3713 = vrsqrt.pop %v3709
    %v3714 = vmul.f32 %v3713, %v3709
    %v3715 = vmul.f32 %v3714, %v3713
    %v3716 = vmul.f32 0.5, %v3715
    %v3717 = vsub.f32 1.5, %v3716
    %v3718 = vmul.f32 %v3713, %v3717
    %vm3719 = vweird.f32 %v3709
    %vm3720 = vweird.f32 %v3713
    %vm3721 = vmor %vm3719, %vm3720
    %v3722 = vsel %vm3721, %v3713, %v3718
    %v3723 = vrsqrt.pop %v3710
    %v3724 = vmul.f32 %v3723, %v3710
    %v3725 = vmul.f32 %v3724, %v3723
    %v3726 = vmul.f32 0.5, %v3725
    %v3727 = vsub.f32 1.5, %v3726
    %v3728 = vmul.f32 %v3723, %v3727
    %vm3729 = vweird.f32 %v3710
    %vm3730 = vweird.f32 %v3723
    %vm3731 = vmor %vm3729, %vm3730
    %v3732 = vsel %vm3731, %v3723, %v3728
    %v3733 = vrsqrt.pop %v3711
    %v3734 = vmul.f32 %v3733, %v3711
    %v3735 = vmul.f32 %v3734, %v3733
    %v3736 = vmul.f32 0.5, %v3735
    %v3737 = vsub.f32 1.5, %v3736
    %v3738 = vmul.f32 %v3733, %v3737
    %vm3739 = vweird.f32 %v3711
    %vm3740 = vweird.f32 %v3733
    %vm3741 = vmor %vm3739, %vm3740
    %v3742 = vsel %vm3741, %v3733, %v3738
    %v3743 = vrsqrt.pop %v3712
    %v3744 = vmul.f32 %v3743, %v3712
    %v3745 = vmul.f32 %v3744, %v3743
    %v3746 = vmul.f32 0.5, %v3745
    %v3747 = vsub.f32 1.5, %v3746
    %v3748 = vmul.f32 %v3743, %v3747
    %vm3749 = vweird.f32 %v3712
    %vm3750 = vweird.f32 %v3743
    %vm3751 = vmor %vm3749, %vm3750
    %v3752 = vsel %vm3751, %v3743, %v3748
    %v3753 = vmul.f32 %v3685, %v3722
    %v3754 = vmul.f32 %v3686, %v3732
    %v3755 = vmul.f32 %v3687, %v3742
    %v3756 = vmul.f32 %v3688, %v3752
    %v3757 = vperm.slane %v25, 4
    %v3758 = vmul.f32 %v3753, %v3757
    %v3759 = vmul.f32 %v3754, %v3757
    %v3760 = vmul.f32 %v3755, %v3757
    %v3761 = vmul.f32 %v3756, %v3757
    %v3762 = vperm.slane %v25, 5
    %v3763 = vadd.f32 %v3758, %v3762
    %v3764 = vadd.f32 %v3759, %v3762
    %v3765 = vadd.f32 %v3760, %v3762
    %v3766 = vadd.f32 %v3761, %v3762
    %v3767 = vperm.slane %v25, 6
    %v3769 = vsel %vm192, %v3763, 0
    %v3772 = vsel %vm192, %v3764, 0
    %v3775 = vsel %vm192, %v3765, 0
    %v3778 = vsel %vm192, %v3766, 0
    %v3781 = vsel %vm192, %v2181, 0
    %v3784 = vsel %vm192, %v2182, 0
    %v3787 = vsel %vm192, %v2183, 0
    %v3790 = vsel %vm192, %v2184, 0
    %v3793 = vsel %vm192, %v2185, 0
    %v3796 = vsel %vm192, %v2186, 0
    %v3799 = vsel %vm192, %v2187, 0
    %v3802 = vsel %vm192, %v2188, 0
    %3804 = vmatpush.xpose.msra.mxu0 0.0
    %3805 = vmatpush.xpose.msra.mxu0 0.0
    %3806 = vmatpush.xpose.msra.mxu0 0.0
    %3807 = vmatpush.xpose.msra.mxu0 0.0
    %3808 = vmatpush.xpose.msra.mxu0 0.0
    %3809 = vmatpush.xpose.msra.mxu0 0.0
    %3810 = vmatpush.xpose.msra.mxu0 0.0
    %3811 = vmatpush.xpose.msra.mxu0 0.0
    %3812 = vmatpush.xpose.msra.mxu0 %v3802
    %3813 = vmatpush.xpose.msra.mxu0 %v3799
    %3814 = vmatpush.xpose.msra.mxu0 %v3796
    %3815 = vmatpush.xpose.msra.mxu0 %v3793
    %3816 = vmatpush.xpose.msra.mxu0 %v3790
    %3817 = vmatpush.xpose.msra.mxu0 %v3787
    %3818 = vmatpush.xpose.msra.mxu0 %v3784
    %3819 = vmatpush.xpose.msra.mxu0 %v3781
    %3820 = vmatmul.f32.gmra.mxu0 %v3769
    %v3821 = vpop.f32.mrf.mxu0
    %v3822 = vadd.f32 %v3767, %v3821
    %3823 = vmatmul.f32.gmra.mxu0 %v3772
    %v3824 = vpop.f32.mrf.mxu0
    %v3825 = vadd.f32 %v3767, %v3824
    %3826 = vmatmul.f32.gmra.mxu0 %v3775
    %v3827 = vpop.f32.mrf.mxu0
    %v3828 = vadd.f32 %v3767, %v3827
    %3829 = vmatmul.f32.gmra.mxu0 %v3778
    %v3830 = vpop.f32.mrf.mxu0
    %v3831 = vadd.f32 %v3767, %v3830
    %3832 = vdwg.mxu0
    %v3833 = vmul.f32 %v3822, %v3822
    %v3834 = vmul.f32 %v3825, %v3825
    %v3835 = vmul.f32 %v3828, %v3828
    %v3836 = vmul.f32 %v3831, %v3831
    %v3837 = vmul.f32 %v3822, %v3833
    %v3838 = vmul.f32 %v3825, %v3834
    %v3839 = vmul.f32 %v3828, %v3835
    %v3840 = vmul.f32 %v3831, %v3836
    %v3841 = vmul.f32 %v3837, 0.044715
    %v3842 = vmul.f32 %v3838, 0.044715
    %v3843 = vmul.f32 %v3839, 0.044715
    %v3844 = vmul.f32 %v3840, 0.044715
    %v3845 = vadd.f32 %v3822, %v3841
    %v3846 = vadd.f32 %v3825, %v3842
    %v3847 = vadd.f32 %v3828, %v3843
    %v3848 = vadd.f32 %v3831, %v3844
    %v3849 = vmul.f32 %v3845, 0.7978846
    %v3850 = vmul.f32 %v3846, 0.7978846
    %v3851 = vmul.f32 %v3847, 0.7978846
    %v3852 = vmul.f32 %v3848, 0.7978846
    %v3853 = vtanh.pop %v3849
    %v3854 = vtanh.pop %v3850
    %v3855 = vtanh.pop %v3851
    %v3856 = vtanh.pop %v3852
    %v3857 = vadd.f32 %v3853, 1.0
    %v3858 = vadd.f32 %v3854, 1.0
    %v3859 = vadd.f32 %v3855, 1.0
    %v3860 = vadd.f32 %v3856, 1.0
    %v3861 = vmul.f32 %v3857, 0.5
    %v3862 = vmul.f32 %v3858, 0.5
    %v3863 = vmul.f32 %v3859, 0.5
    %v3864 = vmul.f32 %v3860, 0.5
    %v3865 = vmul.f32 %v3822, %v3861
    %v3866 = vmul.f32 %v3825, %v3862
    %v3867 = vmul.f32 %v3828, %v3863
    %v3868 = vmul.f32 %v3831, %v3864
    %v3869 = vperm.slane %v25, 7
    %v3871 = vsel %vm103, %v3865, 0
    %v3874 = vsel %vm103, %v3866, 0
    %v3877 = vsel %vm103, %v3867, 0
    %v3880 = vsel %vm103, %v3868, 0
    %3882 = vmatpush.msra.mxu0 0.0
    %3883 = vmatpush.msra.mxu0 0.0
    %3884 = vmatpush.msra.mxu0 0.0
    %3885 = vmatpush.msra.mxu0 0.0
    %3886 = vmatpush.msra.mxu0 0.0
    %3887 = vmatpush.msra.mxu0 0.0
    %3888 = vmatpush.msra.mxu0 0.0
    %3889 = vmatpush.msra.mxu0 0.0
    %3890 = vmatpush.msra.mxu0 %v2196
    %3891 = vmatpush.msra.mxu0 %v2195
    %3892 = vmatpush.msra.mxu0 %v2194
    %3893 = vmatpush.msra.mxu0 %v2193
    %3894 = vmatpush.msra.mxu0 %v2192
    %3895 = vmatpush.msra.mxu0 %v2191
    %3896 = vmatpush.msra.mxu0 %v2190
    %3897 = vmatpush.msra.mxu0 %v2189
    %3898 = vmatmul.f32.gmra.mxu0 %v3871
    %v3899 = vpop.f32.mrf.mxu0
    %v3900 = vadd.f32 %v3869, %v3899
    %3901 = vmatmul.f32.gmra.mxu0 %v3874
    %v3902 = vpop.f32.mrf.mxu0
    %v3903 = vadd.f32 %v3869, %v3902
    %3904 = vmatmul.f32.gmra.mxu0 %v3877
    %v3905 = vpop.f32.mrf.mxu0
    %v3906 = vadd.f32 %v3869, %v3905
    %3907 = vmatmul.f32.gmra.mxu0 %v3880
    %v3908 = vpop.f32.mrf.mxu0
    %v3909 = vadd.f32 %v3869, %v3908
    %3910 = vdwg.mxu0
    %v3911 = vadd.f32 %v3763, %v3900
    %v3912 = vadd.f32 %v3764, %v3903
    %v3913 = vadd.f32 %v3765, %v3906
    %v3914 = vadd.f32 %v3766, %v3909
    %v3915 = vsel %vm192, %v3911, 0.0
    %3916 = vadd.xlane.f32.xlu0 %v3915
    %v3917 = vpop.xlane.xlu0 %3916
    %v3918 = vsel %vm192, %v3912, 0.0
    %3919 = vadd.xlane.f32.xlu0 %v3918
    %v3920 = vpop.xlane.xlu0 %3919
    %v3921 = vsel %vm192, %v3913, 0.0
    %3922 = vadd.xlane.f32.xlu0 %v3921
    %v3923 = vpop.xlane.xlu0 %3922
    %v3924 = vsel %vm192, %v3914, 0.0
    %3925 = vadd.xlane.f32.xlu0 %v3924
    %v3926 = vpop.xlane.xlu0 %3925
    %v3927 = vmul.f32 %v3917, %v211
    %v3928 = vmul.f32 %v3920, %v211
    %v3929 = vmul.f32 %v3923, %v211
    %v3930 = vmul.f32 %v3926, %v211
    %v3931 = vsub.f32 %v3911, %v3927
    %v3932 = vsub.f32 %v3912, %v3928
    %v3933 = vsub.f32 %v3913, %v3929
    %v3934 = vsub.f32 %v3914, %v3930
    %v3935 = vmul.f32 %v3931, %v3931
    %v3936 = vmul.f32 %v3932, %v3932
    %v3937 = vmul.f32 %v3933, %v3933
    %v3938 = vmul.f32 %v3934, %v3934
    %v3939 = vsel %vm192, %v3935, 0.0
    %3940 = vadd.xlane.f32.xlu0 %v3939
    %v3941 = vpop.xlane.xlu0 %3940
    %v3942 = vsel %vm192, %v3936, 0.0
    %3943 = vadd.xlane.f32.xlu0 %v3942
    %v3944 = vpop.xlane.xlu0 %3943
    %v3945 = vsel %vm192, %v3937, 0.0
    %3946 = vadd.xlane.f32.xlu0 %v3945
    %v3947 = vpop.xlane.xlu0 %3946
    %v3948 = vsel %vm192, %v3938, 0.0
    %3949 = vadd.xlane.f32.xlu0 %v3948
    %v3950 = vpop.xlane.xlu0 %3949
    %v3951 = vmul.f32 %v3941, %v211
    %v3952 = vmul.f32 %v3944, %v211
    %v3953 = vmul.f32 %v3947, %v211
    %v3954 = vmul.f32 %v3950, %v211
    %v3955 = vadd.f32 %v3951, 1e-05
    %v3956 = vadd.f32 %v3952, 1e-05
    %v3957 = vadd.f32 %v3953, 1e-05
    %v3958 = vadd.f32 %v3954, 1e-05
    %v3959 = vrsqrt.pop %v3955
    %v3960 = vmul.f32 %v3959, %v3955
    %v3961 = vmul.f32 %v3960, %v3959
    %v3962 = vmul.f32 0.5, %v3961
    %v3963 = vsub.f32 1.5, %v3962
    %v3964 = vmul.f32 %v3959, %v3963
    %vm3965 = vweird.f32 %v3955
    %vm3966 = vweird.f32 %v3959
    %vm3967 = vmor %vm3965, %vm3966
    %v3968 = vsel %vm3967, %v3959, %v3964
    %v3969 = vrsqrt.pop %v3956
    %v3970 = vmul.f32 %v3969, %v3956
    %v3971 = vmul.f32 %v3970, %v3969
    %v3972 = vmul.f32 0.5, %v3971
    %v3973 = vsub.f32 1.5, %v3972
    %v3974 = vmul.f32 %v3969, %v3973
    %vm3975 = vweird.f32 %v3956
    %vm3976 = vweird.f32 %v3969
    %vm3977 = vmor %vm3975, %vm3976
    %v3978 = vsel %vm3977, %v3969, %v3974
    %v3979 = vrsqrt.pop %v3957
    %v3980 = vmul.f32 %v3979, %v3957
    %v3981 = vmul.f32 %v3980, %v3979
    %v3982 = vmul.f32 0.5, %v3981
    %v3983 = vsub.f32 1.5, %v3982
    %v3984 = vmul.f32 %v3979, %v3983
    %vm3985 = vweird.f32 %v3957
    %vm3986 = vweird.f32 %v3979
    %vm3987 = vmor %vm3985, %vm3986
    %v3988 = vsel %vm3987, %v3979, %v3984
    %v3989 = vrsqrt.pop %v3958
    %v3990 = vmul.f32 %v3989, %v3958
    %v3991 = vmul.f32 %v3990, %v3989
    %v3992 = vmul.f32 0.5, %v3991
    %v3993 = vsub.f32 1.5, %v3992
    %v3994 = vmul.f32 %v3989, %v3993
    %vm3995 = vweird.f32 %v3958
    %vm3996 = vweird.f32 %v3989
    %vm3997 = vmor %vm3995, %vm3996
    %v3998 = vsel %vm3997, %v3989, %v3994
    %v3999 = vmul.f32 %v3931, %v3968
    %v4000 = vmul.f32 %v3932, %v3978
    %v4001 = vmul.f32 %v3933, %v3988
    %v4002 = vmul.f32 %v3934, %v3998
    %v4003 = vperm.slane %v26, 0
    %v4004 = vmul.f32 %v3999, %v4003
    %v4005 = vmul.f32 %v4000, %v4003
    %v4006 = vmul.f32 %v4001, %v4003
    %v4007 = vmul.f32 %v4002, %v4003
    %v4008 = vperm.slane %v26, 1
    %v4009 = vadd.f32 %v4004, %v4008
    %v4010 = vadd.f32 %v4005, %v4008
    %v4011 = vadd.f32 %v4006, %v4008
    %v4012 = vadd.f32 %v4007, %v4008
    %v4013 = vld [vmem:[%s5] sm:$0xff]
    %v4014 = vld [vmem:[%s5 + $0x8] sm:$0xff]
    %v4015 = vld [vmem:[%s5 + $0x10] sm:$0xff]
    %v4016 = vld [vmem:[%s5 + $0x18] sm:$0xff]
    %v4017 = vld [vmem:[%s5 + $0x20] sm:$0x1f]
    %v4018 = vld [vmem:[%s5 + $0x28] sm:$0x1f]
    %v4020 = vsel %vm192, %v4009, 0
    %v4023 = vsel %vm192, %v4010, 0
    %v4026 = vsel %vm192, %v4011, 0
    %v4029 = vsel %vm192, %v4012, 0
    %v4032 = vsel %vm192, %v4013, 0
    %v4035 = vsel %vm192, %v4014, 0
    %v4038 = vsel %vm192, %v4015, 0
    %v4041 = vsel %vm192, %v4016, 0
    %4043 = vmatpush.xpose.msra.mxu0 0.0
    %4044 = vmatpush.xpose.msra.mxu0 0.0
    %4045 = vmatpush.xpose.msra.mxu0 0.0
    %4046 = vmatpush.xpose.msra.mxu0 0.0
    %4047 = vmatpush.xpose.msra.mxu0 0.0
    %4048 = vmatpush.xpose.msra.mxu0 0.0
    %4049 = vmatpush.xpose.msra.mxu0 0.0
    %4050 = vmatpush.xpose.msra.mxu0 0.0
    %4051 = vmatpush.xpose.msra.mxu0 0.0
    %4052 = vmatpush.xpose.msra.mxu0 0.0
    %4053 = vmatpush.xpose.msra.mxu0 0.0
    %4054 = vmatpush.xpose.msra.mxu0 0.0
    %4055 = vmatpush.xpose.msra.mxu0 %v4041
    %4056 = vmatpush.xpose.msra.mxu0 %v4038
    %4057 = vmatpush.xpose.msra.mxu0 %v4035
    %4058 = vmatpush.xpose.msra.mxu0 %v4032
    %4059 = vmatmul.f32.gmra.mxu0 %v4020
    %v4060 = vpop.f32.mrf.mxu0
    %v4061 = vadd.f32 0.0, %v4060
    %4062 = vmatmul.f32.gmra.mxu0 %v4023
    %v4063 = vpop.f32.mrf.mxu0
    %v4064 = vadd.f32 0.0, %v4063
    %4065 = vmatmul.f32.gmra.mxu0 %v4026
    %v4066 = vpop.f32.mrf.mxu0
    %v4067 = vadd.f32 0.0, %v4066
    %4068 = vmatmul.f32.gmra.mxu0 %v4029
    %v4069 = vpop.f32.mrf.mxu0
    %v4070 = vadd.f32 0.0, %v4069
    %4071 = vdwg.mxu0
    %v4072 = vtanh.pop %v4061
    %v4073 = vtanh.pop %v4064
    %v4074 = vtanh.pop %v4067
    %v4075 = vtanh.pop %v4070
    %v4077 = vsel %vm192, %v4072, 0
    %v4080 = vsel %vm192, %v4073, 0
    %v4083 = vsel %vm192, %v4074, 0
    %v4086 = vsel %vm192, %v4075, 0
    %v4089 = vsel %vm192, %v4017, 0
    %4091 = vmatpush.xpose.msra.mxu0 0.0
    %4092 = vmatpush.xpose.msra.mxu0 0.0
    %4093 = vmatpush.xpose.msra.mxu0 0.0
    %4094 = vmatpush.xpose.msra.mxu0 0.0
    %4095 = vmatpush.xpose.msra.mxu0 0.0
    %4096 = vmatpush.xpose.msra.mxu0 0.0
    %4097 = vmatpush.xpose.msra.mxu0 0.0
    %4098 = vmatpush.xpose.msra.mxu0 0.0
    %4099 = vmatpush.xpose.msra.mxu0 0.0
    %4100 = vmatpush.xpose.msra.mxu0 0.0
    %4101 = vmatpush.xpose.msra.mxu0 0.0
    %4102 = vmatpush.xpose.msra.mxu0 0.0
    %4103 = vmatpush.xpose.msra.mxu0 0.0
    %4104 = vmatpush.xpose.msra.mxu0 0.0
    %4105 = vmatpush.xpose.msra.mxu0 0.0
    %4106 = vmatpush.xpose.msra.mxu0 %v4089
    %4107 = vmatmul.f32.gmra.mxu0 %v4077
    %v4108 = vpop.f32.mrf.mxu0
    %v4109 = vadd.f32 0.0, %v4108
    %4110 = vmatmul.f32.gmra.mxu0 %v4080
    %v4111 = vpop.f32.mrf.mxu0
    %v4112 = vadd.f32 0.0, %v4111
    %4113 = vmatmul.f32.gmra.mxu0 %v4083
    %v4114 = vpop.f32.mrf.mxu0
    %v4115 = vadd.f32 0.0, %v4114
    %4116 = vmatmul.f32.gmra.mxu0 %v4086
    %v4117 = vpop.f32.mrf.mxu0
    %v4118 = vadd.f32 0.0, %v4117
    %4119 = vdwg.mxu0
    %4120 = vxpose.xlu0.b32.start [1/16] %v4109, 128
    %4121 = vxpose.xlu0.b32.cont [2/16] %v4112, 128
    %4122 = vxpose.xlu0.b32.cont [3/16] 0.0, 128
    %4123 = vxpose.xlu0.b32.cont [4/16] 0.0, 128
    %4124 = vxpose.xlu0.b32.cont [5/16] 0.0, 128
    %4125 = vxpose.xlu0.b32.cont [6/16] 0.0, 128
    %4126 = vxpose.xlu0.b32.cont [7/16] 0.0, 128
    %4127 = vxpose.xlu0.b32.cont [8/16] 0.0, 128
    %4128 = vxpose.xlu0.b32.cont [9/16] 0.0, 128
    %4129 = vxpose.xlu0.b32.cont [10/16] 0.0, 128
    %4130 = vxpose.xlu0.b32.cont [11/16] 0.0, 128
    %4131 = vxpose.xlu0.b32.cont [12/16] 0.0, 128
    %4132 = vxpose.xlu0.b32.cont [13/16] 0.0, 128
    %4133 = vxpose.xlu0.b32.cont [14/16] 0.0, 128
    %4134 = vxpose.xlu0.b32.cont [15/16] 0.0, 128
    %4135 = vxpose.xlu0.b32.end [16/16] 0.0, 128
    %v4136 = vpop.trf.xlu0
    %v4137 = vpop.trf.xlu0
    %v4138 = vpop.trf.xlu0
    %v4139 = vpop.trf.xlu0
    %v4140 = vpop.trf.xlu0
    %v4141 = vpop.trf.xlu0
    %v4142 = vpop.trf.xlu0
    %v4143 = vpop.trf.xlu0
    %v4144 = vpop.trf.xlu0
    %v4145 = vpop.trf.xlu0
    %v4146 = vpop.trf.xlu0
    %v4147 = vpop.trf.xlu0
    %v4148 = vpop.trf.xlu0
    %v4149 = vpop.trf.xlu0
    %v4150 = vpop.trf.xlu0
    %v4151 = vpop.trf.xlu0
    %4152 = vxpose.xlu0.b32.start [1/16] %v4115, 128
    %4153 = vxpose.xlu0.b32.cont [2/16] %v4118, 128
    %4154 = vxpose.xlu0.b32.cont [3/16] 0.0, 128
    %4155 = vxpose.xlu0.b32.cont [4/16] 0.0, 128
    %4156 = vxpose.xlu0.b32.cont [5/16] 0.0, 128
    %4157 = vxpose.xlu0.b32.cont [6/16] 0.0, 128
    %4158 = vxpose.xlu0.b32.cont [7/16] 0.0, 128
    %4159 = vxpose.xlu0.b32.cont [8/16] 0.0, 128
    %4160 = vxpose.xlu0.b32.cont [9/16] 0.0, 128
    %4161 = vxpose.xlu0.b32.cont [10/16] 0.0, 128
    %4162 = vxpose.xlu0.b32.cont [11/16] 0.0, 128
    %4163 = vxpose.xlu0.b32.cont [12/16] 0.0, 128
    %4164 = vxpose.xlu0.b32.cont [13/16] 0.0, 128
    %4165 = vxpose.xlu0.b32.cont [14/16] 0.0, 128
    %4166 = vxpose.xlu0.b32.cont [15/16] 0.0, 128
    %4167 = vxpose.xlu0.b32.end [16/16] 0.0, 128
    %v4168 = vpop.trf.xlu0
    %v4169 = vpop.trf.xlu0
    %v4170 = vpop.trf.xlu0
    %v4171 = vpop.trf.xlu0
    %v4172 = vpop.trf.xlu0
    %v4173 = vpop.trf.xlu0
    %v4174 = vpop.trf.xlu0
    %v4175 = vpop.trf.xlu0
    %v4176 = vpop.trf.xlu0
    %v4177 = vpop.trf.xlu0
    %v4178 = vpop.trf.xlu0
    %v4179 = vpop.trf.xlu0
    %v4180 = vpop.trf.xlu0
    %v4181 = vpop.trf.xlu0
    %v4182 = vpop.trf.xlu0
    %v4183 = vpop.trf.xlu0
    %vm4184 = vcmask 126976
    %v4185 = vsel %vm4184, %v4136, -inf
    %4186 = vmax.xlane.f32.xlu0 %v4185
    %v4187 = vpop.xlane.xlu0 %4186
    %v4188 = vsel %vm4184, %v4168, -inf
    %4189 = vmax.xlane.f32.xlu0 %v4188
    %v4190 = vpop.xlane.xlu0 %4189
    %v4191 = vsub.f32 %v4136, %v4187
    %v4192 = vsub.f32 %v4168, %v4190
    %v4193 = vmul.f32 %v4191, 1.442695
    %v4194 = vpow.pop %v4193
    %v4195 = vmul.f32 %v4192, 1.442695
    %v4196 = vpow.pop %v4195
    %v4197 = vsel %vm4184, %v4194, 0.0
    %4198 = vadd.xlane.f32.xlu0 %v4197
    %v4199 = vpop.xlane.xlu0 %4198
    %v4200 = vsel %vm4184, %v4196, 0.0
    %4201 = vadd.xlane.f32.xlu0 %v4200
    %v4202 = vpop.xlane.xlu0 %4201
    %v4203 = vrcp.pop %v4199
    %v4204 = vmul.f32 %v4199, %v4203
    %v4205 = vsub.f32 1.0, %v4204
    %v4206 = vmul.f32 %v4203, %v4205
    %v4207 = vadd.f32 %v4203, %v4206
    %vm4208 = vweird.f32 %v4199
    %vm4209 = vweird.f32 %v4203
    %vm4210 = vmor %vm4208, %vm4209
    %v4211 = vsel %vm4210, %v4203, %v4207
    %v4212 = vand.u32 2147483647, %v4199
    %vm4213 = vcmp.eq.f32.partialorder %v4212, 8.507059e+37
    %v4214 = vand.u32 %v4199, 2147483648
    %v4215 = vor.u32 1.1754944e-38, %v4214
    %v4216 = vsel %vm4213, %v4215, %v4211
    %v4217 = vmul.f32 %v4194, %v4216
    %v4218 = vrcp.pop %v4202
    %v4219 = vmul.f32 %v4202, %v4218
    %v4220 = vsub.f32 1.0, %v4219
    %v4221 = vmul.f32 %v4218, %v4220
    %v4222 = vadd.f32 %v4218, %v4221
    %vm4223 = vweird.f32 %v4202
    %vm4224 = vweird.f32 %v4218
    %vm4225 = vmor %vm4223, %vm4224
    %v4226 = vsel %vm4225, %v4218, %v4222
    %v4227 = vand.u32 2147483647, %v4202
    %vm4228 = vcmp.eq.f32.partialorder %v4227, 8.507059e+37
    %v4229 = vand.u32 %v4202, 2147483648
    %v4230 = vor.u32 1.1754944e-38, %v4229
    %v4231 = vsel %vm4228, %v4230, %v4226
    %v4232 = vmul.f32 %v4196, %v4231
    %v4234 = vsel %vm1752, %v4217, 0
    %4236 = vmatpush.msra.mxu0 0.0
    %4237 = vmatpush.msra.mxu0 0.0
    %4238 = vmatpush.msra.mxu0 0.0
    %4239 = vmatpush.msra.mxu0 0.0
    %4240 = vmatpush.msra.mxu0 0.0
    %4241 = vmatpush.msra.mxu0 0.0
    %4242 = vmatpush.msra.mxu0 0.0
    %4243 = vmatpush.msra.mxu0 0.0
    %4244 = vmatpush.msra.mxu0 0.0
    %4245 = vmatpush.msra.mxu0 0.0
    %4246 = vmatpush.msra.mxu0 0.0
    %4247 = vmatpush.msra.mxu0 0.0
    %4248 = vmatpush.msra.mxu0 0.0
    %4249 = vmatpush.msra.mxu0 0.0
    %4250 = vmatpush.msra.mxu0 %v4010
    %4251 = vmatpush.msra.mxu0 %v4009
    %4252 = vmatmul.f32.gmra.mxu0 %v4234
    %v4253 = vpop.f32.mrf.mxu0
    %v4254 = vadd.f32 0.0, %v4253
    %4255 = vdwg.mxu0
    %v4257 = vsel %vm1752, %v4232, 0
    %4259 = vmatpush.msra.mxu0 0.0
    %4260 = vmatpush.msra.mxu0 0.0
    %4261 = vmatpush.msra.mxu0 0.0
    %4262 = vmatpush.msra.mxu0 0.0
    %4263 = vmatpush.msra.mxu0 0.0
    %4264 = vmatpush.msra.mxu0 0.0
    %4265 = vmatpush.msra.mxu0 0.0
    %4266 = vmatpush.msra.mxu0 0.0
    %4267 = vmatpush.msra.mxu0 0.0
    %4268 = vmatpush.msra.mxu0 0.0
    %4269 = vmatpush.msra.mxu0 0.0
    %4270 = vmatpush.msra.mxu0 0.0
    %4271 = vmatpush.msra.mxu0 0.0
    %4272 = vmatpush.msra.mxu0 0.0
    %4273 = vmatpush.msra.mxu0 %v4012
    %4274 = vmatpush.msra.mxu0 %v4011
    %4275 = vmatmul.f32.gmra.mxu0 %v4257
    %v4276 = vpop.f32.mrf.mxu0
    %v4277 = vadd.f32 0.0, %v4276
    %4278 = vdwg.mxu0
    %v4279 = vmul.f32 %v4018, %v4254
    %v4280 = vmul.f32 %v4018, %v4277
    %vm4281 = vcmask 258048
    %v4282 = vsel %vm4281, %v4279, 0.0
    %4283 = vadd.xlane.f32.xlu0 %v4282
    %v4284 = vpop.xlane.xlu0 %4283
    %v4285 = vsel %vm4281, %v4280, 0.0
    %4286 = vadd.xlane.f32.xlu0 %v4285
    %v4287 = vpop.xlane.xlu0 %4286
    %v4288 = vperm.slane %v26, 2
    %v4290 = vlaneseq
    %v4291 = vshrl.u32 %v4290, 7
    %4293 = vset.pattern.permute.xlu0 %v4291
    %4294 = vperm.xlu0 %4293, %v4288
    %v4295 = vpop.permute.xlu0 %4294
    %v4297 = vadd.f32 %v4284, %v4295
    %v4298 = vadd.f32 %v4287, %v4295
    %4301 = vset.pattern.permute.xlu0 0
    %4302 = vperm.xlu0 %4301, %v4297
    %v4303 = vpop.permute.xlu0 %4302
    %4304 = vset.pattern.permute.xlu0 0
    %4305 = vperm.xlu0 %4304, %v4298
    %v4306 = vpop.permute.xlu0 %4305
    %v4307 = vperm.slane %v4303, %v32
    %v4308 = vperm.slane %v4306, %v32
    %vm4309 = vcmask 1041409
    %v4310 = vsel %vm4309, %v4308, %v4307
    %vm4312 = vcmask 33792
    %4313 = vst.msk [vmem:[#allocation2] sm:$0x3] %vm4312, %v4310
    // Predicated region
    $region26: #{roberta_laat_forward.1} parent=1 // pred_check
      _
    $region27: #{roberta_laat_forward.1} parent=1 // pred_check_branch
      %4315 = sbr.rel (0) target = $region29
    $region28: #{roberta_laat_forward.1} parent=1 // pred_region
      %4317 = vsyncadd [#allocation3], 0
      %s4319 = sshll.u32 [#allocation2], 4
      %s4320 = int_to_ptr.vmem [resolvable:$true] %s4319
      %s4321 = sshll.u32 %s6, 4
      %s4322 = int_to_ptr.hbm [resolvable:$true] %s4321
      %4324 = dma.vmem_to_hbm [thread:$0]  %s4320, 32, %s4322, [#allocation3]
    $region29: #{roberta_laat_forward.1} parent=1 // pred_fallthru
      _
    // Predicated region
    $region30: #{roberta_laat_forward.1} parent=1 // pred_check
      _
    $region31: #{roberta_laat_forward.1} parent=1 // pred_check_branch
      %4326 = sbr.rel (0) target = $region33
    $region32: #{roberta_laat_forward.1} parent=1 // pred_region
      %4328 = dma.done [#allocation3], 32
    $region33: #{roberta_laat_forward.1} parent=1 // pred_fallthru
      _
    %4329 = vsyncpa [#allocation3], 1

</llo_original>
